<compile_context>
chip_gen: v6e
topology: v6e:2x2x1
jax: 0.10.0
libtpu: 0.0.40
codegen_flags: <defaults>
</compile_context>

<pallas_src>
import functools
import math

import jax
import jax.numpy as jnp
from jax.experimental import pallas as pl
from jax.experimental.pallas import tpu as pltpu

EPS = 1e-5


# --------------------------------------------------------------------------------------
# Fused kernel: one grid step == one decoder layer (attention + BN1 + FFN + BN2).
# --------------------------------------------------------------------------------------
def _fused_decoder_kernel(q_ref, k_ref, v_ref,
                          bn1w_ref, bn1b_ref, w1_ref, b1_ref, w2_ref, b2_ref,
                          bn2w_ref, bn2b_ref,
                          o_ref, x_sc, *, num_heads):
    layer = pl.program_id(0)
    n, d_model = q_ref.shape
    m = k_ref.shape[0]
    d_att = d_model // num_heads
    scale = 1.0 / math.sqrt(d_att)

    @pl.when(layer == 0)
    def _():
        x_sc[...] = q_ref[...].astype(jnp.float32)

    x = x_sc[...]                                                  # (n, d_model) f32

    # ---- multi-head cross attention, (n, h, d) order so the merge is a pure reshape ----
    q3 = x.reshape(n, num_heads, d_att)
    k3 = k_ref[...].astype(jnp.float32).reshape(m, num_heads, d_att)
    v3 = v_ref[...].astype(jnp.float32).reshape(m, num_heads, d_att)
    s = jnp.einsum("nhd,mhd->nhm", q3, k3,
                   preferred_element_type=jnp.float32) * scale      # (n, H, m)
    s_max = jnp.max(s, axis=-1, keepdims=True)
    p = jnp.exp(s - s_max)
    p = p / jnp.sum(p, axis=-1, keepdims=True)                      # exact softmax
    ctx = jnp.einsum("nhm,mhd->nhd", p.astype(v3.dtype), v3,
                     preferred_element_type=jnp.float32).reshape(n, d_model)
    xr = x + ctx                                                    # residual

    # ---- BatchNorm1d #1 (training-mode batch stats, biased variance) ----
    mu1 = jnp.mean(xr, axis=0, keepdims=True)
    var1 = jnp.mean((xr - mu1) ** 2, axis=0, keepdims=True)
    na = (xr - mu1) / jnp.sqrt(var1 + EPS) * bn1w_ref[0] + bn1b_ref[0]

    # ---- FFN + residual (operands stay in the weight dtype; f32 accumulation) ----
    h = jnp.dot(na.astype(w1_ref.dtype), w1_ref[0],
                preferred_element_type=jnp.float32) + b1_ref[0]
    h = jnp.maximum(h, 0.0)
    ffn = jnp.dot(h.astype(w2_ref.dtype), w2_ref[0],
                  preferred_element_type=jnp.float32) + b2_ref[0]
    y = na + ffn

    # ---- BatchNorm1d #2; result carried to the next layer in VMEM scratch ----
    mu2 = jnp.mean(y, axis=0, keepdims=True)
    var2 = jnp.mean((y - mu2) ** 2, axis=0, keepdims=True)
    x_sc[...] = (y - mu2) / jnp.sqrt(var2 + EPS) * bn2w_ref[0] + bn2b_ref[0]

    @pl.when(layer == pl.num_programs(0) - 1)
    def _():
        o_ref[...] = x_sc[...].astype(o_ref.dtype)


# --------------------------------------------------------------------------------------
# Wrapper
# --------------------------------------------------------------------------------------
def decoder(Q, K, V, layer_params, *, num_heads):
    """Q: (U, S, D); K/V: (U, M, D); layer_params: list of per-layer dicts. -> (U, S, D)."""
    U, S, D = Q.shape
    _, M, _ = K.shape
    n, m = U * S, U * M
    L = len(layer_params)
    d_ff = layer_params[0]["w1"].shape[1]
    assert D % num_heads == 0

    q2 = Q.reshape(n, D)
    k2 = K.reshape(m, D)
    v2 = V.reshape(m, D)

    # Stack per-layer parameters along a leading layer axis (indexed by the grid).
    stack = lambda key, shp: jnp.stack([p[key].reshape(shp) for p in layer_params])
    bn1_w = stack("bn1_w", (1, D));  bn1_b = stack("bn1_b", (1, D))
    bn2_w = stack("bn2_w", (1, D));  bn2_b = stack("bn2_b", (1, D))
    w1 = stack("w1", (D, d_ff));     b1 = stack("b1", (1, d_ff))
    w2 = stack("w2", (d_ff, D));     b2 = stack("b2", (1, D))

    # Rough VMEM working-set guard for the fully-resident path (inputs + weights
    # (double-buffered) + scratch + largest temporaries), all f32.
    approx_bytes = 4 * (3 * n * D + 2 * m * D
                        + 2 * (2 * D * d_ff + d_ff + 5 * D)
                        + 2 * n * num_heads * m + n * d_ff + 4 * n * D)
    assert approx_bytes < 12 * 1024 * 1024, (
        "fused-resident decoder sized for small models; "
        "TODO(synk): tiled flash-attention path for large n/m/d_ff")

    row3 = lambda d: pl.BlockSpec((1, 1, d), lambda l: (l, 0, 0))
    kernel = functools.partial(_fused_decoder_kernel, num_heads=num_heads)

    out2 = pl.pallas_call(
        kernel,
        out_shape=jax.ShapeDtypeStruct((n, D), Q.dtype),
        grid_spec=pltpu.PrefetchScalarGridSpec(
            num_scalar_prefetch=0,
            grid=(L,),
            in_specs=[pl.BlockSpec((n, D), lambda l: (0, 0)),      # Q (resident)
                      pl.BlockSpec((m, D), lambda l: (0, 0)),      # K (resident)
                      pl.BlockSpec((m, D), lambda l: (0, 0)),      # V (resident)
                      row3(D), row3(D),                            # bn1 scale / shift
                      pl.BlockSpec((1, D, d_ff), lambda l: (l, 0, 0)),  # w1
                      row3(d_ff),                                  # b1
                      pl.BlockSpec((1, d_ff, D), lambda l: (l, 0, 0)),  # w2
                      row3(D),                                     # b2
                      row3(D), row3(D)],                           # bn2 scale / shift
            out_specs=pl.BlockSpec((n, D), lambda l: (0, 0)),
            scratch_shapes=[pltpu.VMEM((n, D), jnp.float32)]),
        compiler_params=pltpu.CompilerParams(
            dimension_semantics=("arbitrary",)),   # layers are sequentially dependent
    )(q2, k2, v2, bn1_w, bn1_b, w1, b1, w2, b2, bn2_w, bn2_b)
    return out2.reshape(U, S, D)


# --------------------------------------------------------------------------------------
# Pure-JAX reference (mirrors the PyTorch forward; dropout = identity, BN batch stats)
# --------------------------------------------------------------------------------------
def _reference(Q, K, V, layer_params, *, num_heads):
    U, S, D = Q.shape
    _, M, _ = K.shape
    n, m = U * S, U * M
    d_att = D // num_heads
    k = K.reshape(m, D).astype(jnp.float32)
    v = V.reshape(m, D).astype(jnp.float32)
    x = Q.reshape(n, D).astype(jnp.float32)

    def bn(z, w, b):
        mu = jnp.mean(z, axis=0, keepdims=True)
        var = jnp.var(z, axis=0, keepdims=True)
        return (z - mu) / jnp.sqrt(var + EPS) * w + b

    for prm in layer_params:
        q = x
        qh = q.reshape(n, num_heads, d_att).transpose(1, 0, 2)
        kh = k.reshape(m, num_heads, d_att).transpose(1, 0, 2)
        vh = v.reshape(m, num_heads, d_att).transpose(1, 0, 2)
        s = jnp.einsum("hnd,hmd->hnm", qh, kh) / (d_att ** 0.5)
        w_att = jax.nn.softmax(s, axis=-1)
        ctx = jnp.einsum("hnm,hmd->hnd", w_att, vh).transpose(1, 0, 2).reshape(n, D)
        xx = q + ctx
        na = bn(xx, prm["bn1_w"], prm["bn1_b"])
        h1 = jnp.maximum(na @ prm["w1"] + prm["b1"], 0.0)
        ffn = h1 @ prm["w2"] + prm["b2"]
        y = na + ffn
        x = bn(y, prm["bn2_w"], prm["bn2_b"])
    return x.reshape(U, S, D)


if __name__ == "__main__":
    # Small shapes consistent with the module.
    num_unsensed, seq_len, num_sensed = 2, 8, 4
    d_model, num_heads, d_ff, num_layers = 32, 4, 64, 2

    key = jax.random.PRNGKey(0)
    kq, kk, kv, kp = jax.random.split(key, 4)

    Q = jax.random.normal(kq, (num_unsensed, seq_len, d_model), jnp.float32)
    K = jax.random.normal(kk, (num_unsensed, num_sensed, d_model), jnp.float32)
    V = jax.random.normal(kv, (num_unsensed, num_sensed, d_model), jnp.float32)

    layer_params = []
    for l in range(num_layers):
        ks = jax.random.split(jax.random.fold_in(kp, l), 8)
        layer_params.append({
            "bn1_w": 1.0 + 0.1 * jax.random.normal(ks[0], (d_model,), jnp.float32),
            "bn1_b": 0.1 * jax.random.normal(ks[1], (d_model,), jnp.float32),
            "bn2_w": 1.0 + 0.1 * jax.random.normal(ks[2], (d_model,), jnp.float32),
            "bn2_b": 0.1 * jax.random.normal(ks[3], (d_model,), jnp.float32),
            # Linear weights stored pre-transposed: (in_features, out_features).
            "w1": 0.1 * jax.random.normal(ks[4], (d_model, d_ff), jnp.float32),
            "b1": 0.1 * jax.random.normal(ks[5], (d_ff,), jnp.float32),
            "w2": 0.1 * jax.random.normal(ks[6], (d_ff, d_model), jnp.float32),
            "b2": 0.1 * jax.random.normal(ks[7], (d_model,), jnp.float32),
        })

    run = jax.jit(functools.partial(decoder, num_heads=num_heads))
    out = jax.block_until_ready(run(Q, K, V, layer_params))

    ref = _reference(Q, K, V, layer_params, num_heads=num_heads)
    assert out.shape == (num_unsensed, seq_len, d_model)
    max_err = float(jnp.max(jnp.abs(out - ref)))
    # f32 matmuls at TPU DEFAULT precision run the MXU with bf16-rounded operands (both
    # in the Pallas kernel and in the XLA reference, but with different pass/accumulation
    # orders), and the two BatchNorms per layer amplify that difference.  Outputs are
    # BN-normalised O(1), so a 1e-2 tolerance (~1%) still catches structural bugs while
    # tolerating the platform's matmul rounding; the approximate-reciprocal error source
    # from the previous version has been removed entirely.
    assert jnp.allclose(out, ref, atol=1e-2, rtol=1e-2), max_err
    print("KERNEL_OK")
</pallas_src>

<mosaic_0001>
module attributes {stable_mosaic.version = 11 : i64} {
  func.func @_fused_decoder_kernel(%arg0: i32, %arg1: memref<16x32xf32, #tpu.memory_space<vmem>>, %arg2: memref<8x32xf32, #tpu.memory_space<vmem>>, %arg3: memref<8x32xf32, #tpu.memory_space<vmem>>, %arg4: memref<1x1x32xf32, #tpu.memory_space<vmem>>, %arg5: memref<1x1x32xf32, #tpu.memory_space<vmem>>, %arg6: memref<1x32x64xf32, #tpu.memory_space<vmem>>, %arg7: memref<1x1x64xf32, #tpu.memory_space<vmem>>, %arg8: memref<1x64x32xf32, #tpu.memory_space<vmem>>, %arg9: memref<1x1x32xf32, #tpu.memory_space<vmem>>, %arg10: memref<1x1x32xf32, #tpu.memory_space<vmem>>, %arg11: memref<1x1x32xf32, #tpu.memory_space<vmem>>, %arg12: memref<16x32xf32, #tpu.memory_space<vmem>>, %arg13: memref<16x32xf32, #tpu.memory_space<vmem>>) attributes {dimension_semantics = [#tpu.dimension_semantics<arbitrary>], iteration_bounds = array<i64: 2>, scalar_prefetch = 0 : i64, scratch_operands = 1 : i64, tpu.core_type = #tpu.core_type<tc>, window_params = [{pipeline_mode = #tpu.pipeline_mode<synchronous>, transform_indices = @transform_0, window_bounds = array<i64: 16, 32>}, {pipeline_mode = #tpu.pipeline_mode<synchronous>, transform_indices = @transform_1, window_bounds = array<i64: 8, 32>}, {pipeline_mode = #tpu.pipeline_mode<synchronous>, transform_indices = @transform_2, window_bounds = array<i64: 8, 32>}, {transform_indices = @transform_3, window_bounds = array<i64: 1, 1, 32>}, {transform_indices = @transform_4, window_bounds = array<i64: 1, 1, 32>}, {transform_indices = @transform_5, window_bounds = array<i64: 1, 32, 64>}, {transform_indices = @transform_6, window_bounds = array<i64: 1, 1, 64>}, {transform_indices = @transform_7, window_bounds = array<i64: 1, 64, 32>}, {transform_indices = @transform_8, window_bounds = array<i64: 1, 1, 32>}, {transform_indices = @transform_9, window_bounds = array<i64: 1, 1, 32>}, {transform_indices = @transform_10, window_bounds = array<i64: 1, 1, 32>}, {pipeline_mode = #tpu.pipeline_mode<synchronous>, transform_indices = @transform_11, window_bounds = array<i64: 16, 32>}]} {
    %c0_i32 = arith.constant 0 : i32
    %0 = arith.cmpi eq, %arg0, %c0_i32 : i32
    %1 = arith.extui %0 : i1 to i32
    %c0_i32_0 = arith.constant 0 : i32
    %2 = arith.cmpi ne, %1, %c0_i32_0 : i32
    scf.if %2 {
      %c0_50 = arith.constant 0 : index
      %c0_51 = arith.constant 0 : index
      %99 = vector.load %arg1[%c0_50, %c0_51] : memref<16x32xf32, #tpu.memory_space<vmem>>, vector<16x32xf32>
      %c0_52 = arith.constant 0 : index
      %c0_53 = arith.constant 0 : index
      %100 = vector.load %arg13[%c0_52, %c0_53] : memref<16x32xf32, #tpu.memory_space<vmem>>, vector<16x32xf32>
      tpu.vector_store %arg13[%c0_52, %c0_53], %99 {strides = array<i32>} : memref<16x32xf32, #tpu.memory_space<vmem>>, vector<16x32xf32>,
    } else {
    }
    %c0 = arith.constant 0 : index
    %c0_1 = arith.constant 0 : index
    %3 = vector.load %arg13[%c0, %c0_1] : memref<16x32xf32, #tpu.memory_space<vmem>>, vector<16x32xf32>
    %4 = vector.shape_cast %3 : vector<16x32xf32> to vector<16x4x8xf32>
    %c0_2 = arith.constant 0 : index
    %c0_3 = arith.constant 0 : index
    %5 = vector.load %arg2[%c0_2, %c0_3] : memref<8x32xf32, #tpu.memory_space<vmem>>, vector<8x32xf32>
    %6 = vector.shape_cast %5 : vector<8x32xf32> to vector<8x4x8xf32>
    %c0_4 = arith.constant 0 : index
    %c0_5 = arith.constant 0 : index
    %7 = vector.load %arg3[%c0_4, %c0_5] : memref<8x32xf32, #tpu.memory_space<vmem>>, vector<8x32xf32>
    %8 = vector.shape_cast %7 : vector<8x32xf32> to vector<8x4x8xf32>
    "tpu.trace_start"() <{level = 10 : i32, message = "nhd,mhd->nhm"}> : () -> ()
    %cst = arith.constant dense<0.000000e+00> : vector<4x8x16xf32>
    %9 = tpu.matmul %6, %4, %cst {dimension_numbers = #tpu.dot_dimension_numbers<[2], [2], [0], [0], [0, 1, 0, 0, 1, 0], [1], [1]>} : vector<8x4x8xf32>, vector<16x4x8xf32>, vector<4x8x16xf32> -> vector<4x8x16xf32>
    %10 = tpu.transpose %9, [2, 0, 1] : vector<4x8x16xf32> -> vector<16x4x8xf32>
    "tpu.trace_stop"() : () -> ()
    %cst_6 = arith.constant 0.353553385 : f32
    %11 = vector.broadcast %cst_6 : f32 to vector<16x4x8xf32>
    %12 = arith.mulf %10, %11 : vector<16x4x8xf32>
    %cst_7 = arith.constant dense<0xFF800000> : vector<16x4xf32>
    %13 = vector.multi_reduction <maximumf>, %12, %cst_7 [2] : vector<16x4x8xf32> to vector<16x4xf32>
    %14 = vector.shape_cast %13 : vector<16x4xf32> to vector<16x4x1xf32>
    %15 = vector.broadcast %14 : vector<16x4x1xf32> to vector<16x4x8xf32>
    %16 = arith.subf %12, %15 : vector<16x4x8xf32>
    %17 = math.exp %16 : vector<16x4x8xf32>
    %cst_8 = arith.constant dense<0.000000e+00> : vector<16x4xf32>
    %18 = vector.multi_reduction <add>, %17, %cst_8 [2] : vector<16x4x8xf32> to vector<16x4xf32>
    %19 = vector.shape_cast %18 : vector<16x4xf32> to vector<16x4x1xf32>
    %20 = vector.broadcast %19 : vector<16x4x1xf32> to vector<16x4x8xf32>
    %21 = arith.divf %17, %20 : vector<16x4x8xf32>
    "tpu.trace_start"() <{level = 10 : i32, message = "nhm,mhd->nhd"}> : () -> ()
    %cst_9 = arith.constant dense<0.000000e+00> : vector<4x8x16xf32>
    %22 = tpu.matmul %8, %21, %cst_9 {dimension_numbers = #tpu.dot_dimension_numbers<[0], [2], [2], [0], [0, 1, 0, 2, 1, 0], [1], [1]>} : vector<8x4x8xf32>, vector<16x4x8xf32>, vector<4x8x16xf32> -> vector<4x8x16xf32>
    %23 = tpu.transpose %22, [2, 0, 1] : vector<4x8x16xf32> -> vector<16x4x8xf32>
    "tpu.trace_stop"() : () -> ()
    %24 = vector.shape_cast %23 : vector<16x4x8xf32> to vector<16x32xf32>
    %25 = arith.addf %3, %24 : vector<16x32xf32>
    %cst_10 = arith.constant dense<0.000000e+00> : vector<32xf32>
    %26 = vector.multi_reduction <add>, %25, %cst_10 [0] : vector<16x32xf32> to vector<32xf32>
    %27 = vector.shape_cast %26 : vector<32xf32> to vector<1x32xf32>
    %cst_11 = arith.constant 1.600000e+01 : f32
    %28 = vector.broadcast %cst_11 : f32 to vector<1x32xf32>
    %29 = arith.divf %27, %28 : vector<1x32xf32>
    %30 = vector.broadcast %29 : vector<1x32xf32> to vector<16x32xf32>
    %31 = arith.subf %25, %30 : vector<16x32xf32>
    %32 = arith.mulf %31, %31 : vector<16x32xf32>
    %cst_12 = arith.constant dense<0.000000e+00> : vector<32xf32>
    %33 = vector.multi_reduction <add>, %32, %cst_12 [0] : vector<16x32xf32> to vector<32xf32>
    %34 = vector.shape_cast %33 : vector<32xf32> to vector<1x32xf32>
    %cst_13 = arith.constant 1.600000e+01 : f32
    %35 = vector.broadcast %cst_13 : f32 to vector<1x32xf32>
    %36 = arith.divf %34, %35 : vector<1x32xf32>
    %37 = vector.broadcast %29 : vector<1x32xf32> to vector<16x32xf32>
    %38 = arith.subf %25, %37 : vector<16x32xf32>
    %cst_14 = arith.constant 9.99999974E-6 : f32
    %39 = vector.broadcast %cst_14 : f32 to vector<1x32xf32>
    %40 = arith.addf %36, %39 : vector<1x32xf32>
    %41 = math.sqrt %40 : vector<1x32xf32>
    %42 = vector.broadcast %41 : vector<1x32xf32> to vector<16x32xf32>
    %43 = arith.divf %38, %42 : vector<16x32xf32>
    %c0_15 = arith.constant 0 : index
    %c0_16 = arith.constant 0 : index
    %c0_17 = arith.constant 0 : index
    %44 = vector.load %arg4[%c0_15, %c0_16, %c0_17] : memref<1x1x32xf32, #tpu.memory_space<vmem>>, vector<1x1x32xf32>
    %45 = vector.shape_cast %44 : vector<1x1x32xf32> to vector<1x32xf32>
    %46 = vector.broadcast %45 : vector<1x32xf32> to vector<16x32xf32>
    %47 = arith.mulf %43, %46 : vector<16x32xf32>
    %c0_18 = arith.constant 0 : index
    %c0_19 = arith.constant 0 : index
    %c0_20 = arith.constant 0 : index
    %48 = vector.load %arg5[%c0_18, %c0_19, %c0_20] : memref<1x1x32xf32, #tpu.memory_space<vmem>>, vector<1x1x32xf32>
    %49 = vector.shape_cast %48 : vector<1x1x32xf32> to vector<1x32xf32>
    %50 = vector.broadcast %49 : vector<1x32xf32> to vector<16x32xf32>
    %51 = arith.addf %47, %50 : vector<16x32xf32>
    %c0_21 = arith.constant 0 : index
    %c0_22 = arith.constant 0 : index
    %c0_23 = arith.constant 0 : index
    %52 = vector.load %arg6[%c0_21, %c0_22, %c0_23] : memref<1x32x64xf32, #tpu.memory_space<vmem>>, vector<1x32x64xf32>
    %53 = vector.shape_cast %52 : vector<1x32x64xf32> to vector<32x64xf32>
    %cst_24 = arith.constant dense<0.000000e+00> : vector<16x64xf32>
    %54 = tpu.matmul %51, %53, %cst_24 {dimension_numbers = #tpu.dot_dimension_numbers<[1], [0], [0], [1], [0, 0, 1, 1], [], []>} : vector<16x32xf32>, vector<32x64xf32>, vector<16x64xf32> -> vector<16x64xf32>
    %c0_25 = arith.constant 0 : index
    %c0_26 = arith.constant 0 : index
    %c0_27 = arith.constant 0 : index
    %55 = vector.load %arg7[%c0_25, %c0_26, %c0_27] : memref<1x1x64xf32, #tpu.memory_space<vmem>>, vector<1x1x64xf32>
    %56 = vector.shape_cast %55 : vector<1x1x64xf32> to vector<1x64xf32>
    %57 = vector.broadcast %56 : vector<1x64xf32> to vector<16x64xf32>
    %58 = arith.addf %54, %57 : vector<16x64xf32>
    %cst_28 = arith.constant 0.000000e+00 : f32
    %59 = vector.broadcast %cst_28 : f32 to vector<16x64xf32>
    %60 = arith.maximumf %58, %59 : vector<16x64xf32>
    %c0_29 = arith.constant 0 : index
    %c0_30 = arith.constant 0 : index
    %c0_31 = arith.constant 0 : index
    %61 = vector.load %arg8[%c0_29, %c0_30, %c0_31] : memref<1x64x32xf32, #tpu.memory_space<vmem>>, vector<1x64x32xf32>
    %62 = vector.shape_cast %61 : vector<1x64x32xf32> to vector<64x32xf32>
    %cst_32 = arith.constant dense<0.000000e+00> : vector<16x32xf32>
    %63 = tpu.matmul %60, %62, %cst_32 {dimension_numbers = #tpu.dot_dimension_numbers<[1], [0], [0], [1], [0, 0, 1, 1], [], []>} : vector<16x64xf32>, vector<64x32xf32>, vector<16x32xf32> -> vector<16x32xf32>
    %c0_33 = arith.constant 0 : index
    %c0_34 = arith.constant 0 : index
    %c0_35 = arith.constant 0 : index
    %64 = vector.load %arg9[%c0_33, %c0_34, %c0_35] : memref<1x1x32xf32, #tpu.memory_space<vmem>>, vector<1x1x32xf32>
    %65 = vector.shape_cast %64 : vector<1x1x32xf32> to vector<1x32xf32>
    %66 = vector.broadcast %65 : vector<1x32xf32> to vector<16x32xf32>
    %67 = arith.addf %63, %66 : vector<16x32xf32>
    %68 = arith.addf %51, %67 : vector<16x32xf32>
    %cst_36 = arith.constant dense<0.000000e+00> : vector<32xf32>
    %69 = vector.multi_reduction <add>, %68, %cst_36 [0] : vector<16x32xf32> to vector<32xf32>
    %70 = vector.shape_cast %69 : vector<32xf32> to vector<1x32xf32>
    %cst_37 = arith.constant 1.600000e+01 : f32
    %71 = vector.broadcast %cst_37 : f32 to vector<1x32xf32>
    %72 = arith.divf %70, %71 : vector<1x32xf32>
    %73 = vector.broadcast %72 : vector<1x32xf32> to vector<16x32xf32>
    %74 = arith.subf %68, %73 : vector<16x32xf32>
    %75 = arith.mulf %74, %74 : vector<16x32xf32>
    %cst_38 = arith.constant dense<0.000000e+00> : vector<32xf32>
    %76 = vector.multi_reduction <add>, %75, %cst_38 [0] : vector<16x32xf32> to vector<32xf32>
    %77 = vector.shape_cast %76 : vector<32xf32> to vector<1x32xf32>
    %cst_39 = arith.constant 1.600000e+01 : f32
    %78 = vector.broadcast %cst_39 : f32 to vector<1x32xf32>
    %79 = arith.divf %77, %78 : vector<1x32xf32>
    %80 = vector.broadcast %72 : vector<1x32xf32> to vector<16x32xf32>
    %81 = arith.subf %68, %80 : vector<16x32xf32>
    %cst_40 = arith.constant 9.99999974E-6 : f32
    %82 = vector.broadcast %cst_40 : f32 to vector<1x32xf32>
    %83 = arith.addf %79, %82 : vector<1x32xf32>
    %84 = math.sqrt %83 : vector<1x32xf32>
    %85 = vector.broadcast %84 : vector<1x32xf32> to vector<16x32xf32>
    %86 = arith.divf %81, %85 : vector<16x32xf32>
    %c0_41 = arith.constant 0 : index
    %c0_42 = arith.constant 0 : index
    %c0_43 = arith.constant 0 : index
    %87 = vector.load %arg10[%c0_41, %c0_42, %c0_43] : memref<1x1x32xf32, #tpu.memory_space<vmem>>, vector<1x1x32xf32>
    %88 = vector.shape_cast %87 : vector<1x1x32xf32> to vector<1x32xf32>
    %89 = vector.broadcast %88 : vector<1x32xf32> to vector<16x32xf32>
    %90 = arith.mulf %86, %89 : vector<16x32xf32>
    %c0_44 = arith.constant 0 : index
    %c0_45 = arith.constant 0 : index
    %c0_46 = arith.constant 0 : index
    %91 = vector.load %arg11[%c0_44, %c0_45, %c0_46] : memref<1x1x32xf32, #tpu.memory_space<vmem>>, vector<1x1x32xf32>
    %92 = vector.shape_cast %91 : vector<1x1x32xf32> to vector<1x32xf32>
    %93 = vector.broadcast %92 : vector<1x32xf32> to vector<16x32xf32>
    %94 = arith.addf %90, %93 : vector<16x32xf32>
    %c0_47 = arith.constant 0 : index
    %c0_48 = arith.constant 0 : index
    %95 = vector.load %arg13[%c0_47, %c0_48] : memref<16x32xf32, #tpu.memory_space<vmem>>, vector<16x32xf32>
    tpu.vector_store %arg13[%c0_47, %c0_48], %94 {strides = array<i32>} : memref<16x32xf32, #tpu.memory_space<vmem>>, vector<16x32xf32>,
    %c1_i32 = arith.constant 1 : i32
    %96 = arith.cmpi eq, %arg0, %c1_i32 : i32
    %97 = arith.extui %96 : i1 to i32
    %c0_i32_49 = arith.constant 0 : i32
    %98 = arith.cmpi ne, %97, %c0_i32_49 : i32
    scf.if %98 {
      %c0_50 = arith.constant 0 : index
      %c0_51 = arith.constant 0 : index
      %99 = vector.load %arg13[%c0_50, %c0_51] : memref<16x32xf32, #tpu.memory_space<vmem>>, vector<16x32xf32>
      %c0_52 = arith.constant 0 : index
      %c0_53 = arith.constant 0 : index
      %100 = vector.load %arg12[%c0_52, %c0_53] : memref<16x32xf32, #tpu.memory_space<vmem>>, vector<16x32xf32>
      tpu.vector_store %arg12[%c0_52, %c0_53], %99 {strides = array<i32>} : memref<16x32xf32, #tpu.memory_space<vmem>>, vector<16x32xf32>,
    } else {
    }
    return
  }
  func.func @transform_0(%arg0: i32) -> (i32, i32) {
    %c0_i32 = arith.constant 0 : i32
    %c0_i32_0 = arith.constant 0 : i32
    %c0_i32_1 = arith.constant 0 : i32
    return %c0_i32, %c0_i32_0 : i32, i32
  }
  func.func @transform_1(%arg0: i32) -> (i32, i32) {
    %c0_i32 = arith.constant 0 : i32
    %c0_i32_0 = arith.constant 0 : i32
    %c0_i32_1 = arith.constant 0 : i32
    return %c0_i32, %c0_i32_0 : i32, i32
  }
  func.func @transform_2(%arg0: i32) -> (i32, i32) {
    %c0_i32 = arith.constant 0 : i32
    %c0_i32_0 = arith.constant 0 : i32
    %c0_i32_1 = arith.constant 0 : i32
    return %c0_i32, %c0_i32_0 : i32, i32
  }
  func.func @transform_3(%arg0: i32) -> (i32, i32, i32) {
    %c0_i32 = arith.constant 0 : i32
    %c0_i32_0 = arith.constant 0 : i32
    %c0_i32_1 = arith.constant 0 : i32
    return %arg0, %c0_i32, %c0_i32_0 : i32, i32, i32
  }
  func.func @transform_4(%arg0: i32) -> (i32, i32, i32) {
    %c0_i32 = arith.constant 0 : i32
    %c0_i32_0 = arith.constant 0 : i32
    %c0_i32_1 = arith.constant 0 : i32
    return %arg0, %c0_i32, %c0_i32_0 : i32, i32, i32
  }
  func.func @transform_5(%arg0: i32) -> (i32, i32, i32) {
    %c0_i32 = arith.constant 0 : i32
    %c0_i32_0 = arith.constant 0 : i32
    %c0_i32_1 = arith.constant 0 : i32
    return %arg0, %c0_i32, %c0_i32_0 : i32, i32, i32
  }
  func.func @transform_6(%arg0: i32) -> (i32, i32, i32) {
    %c0_i32 = arith.constant 0 : i32
    %c0_i32_0 = arith.constant 0 : i32
    %c0_i32_1 = arith.constant 0 : i32
    return %arg0, %c0_i32, %c0_i32_0 : i32, i32, i32
  }
  func.func @transform_7(%arg0: i32) -> (i32, i32, i32) {
    %c0_i32 = arith.constant 0 : i32
    %c0_i32_0 = arith.constant 0 : i32
    %c0_i32_1 = arith.constant 0 : i32
    return %arg0, %c0_i32, %c0_i32_0 : i32, i32, i32
  }
  func.func @transform_8(%arg0: i32) -> (i32, i32, i32) {
    %c0_i32 = arith.constant 0 : i32
    %c0_i32_0 = arith.constant 0 : i32
    %c0_i32_1 = arith.constant 0 : i32
    return %arg0, %c0_i32, %c0_i32_0 : i32, i32, i32
  }
  func.func @transform_9(%arg0: i32) -> (i32, i32, i32) {
    %c0_i32 = arith.constant 0 : i32
    %c0_i32_0 = arith.constant 0 : i32
    %c0_i32_1 = arith.constant 0 : i32
    return %arg0, %c0_i32, %c0_i32_0 : i32, i32, i32
  }
  func.func @transform_10(%arg0: i32) -> (i32, i32, i32) {
    %c0_i32 = arith.constant 0 : i32
    %c0_i32_0 = arith.constant 0 : i32
    %c0_i32_1 = arith.constant 0 : i32
    return %arg0, %c0_i32, %c0_i32_0 : i32, i32, i32
  }
  func.func @transform_11(%arg0: i32) -> (i32, i32) {
    %c0_i32 = arith.constant 0 : i32
    %c0_i32_0 = arith.constant 0 : i32
    %c0_i32_1 = arith.constant 0 : i32
    return %c0_i32, %c0_i32_0 : i32, i32
  }
}

</mosaic_0001>

<llo_original>
// kernel: decoder.1
$region0: #{decoder.1}
  #allocation0 [shape = 'u32[]', space=smem, size = 0x4, offset = 0x4, fixed_abs, tag = 'smem constant byte address 0x4 - core index']
  #allocation1 [shape = 'u32[144,128]{1,0:T(1,128)}', space=vmem, size = 0x12000, scoped, tag = 'internal scratch']
  #allocation2 [shape = 'f32[16,32]{1,0:T(8,128)}', space=vmem, size = 0x2000, scoped, tag = 'scratch operand']
  %s0 = inlined_call_operand.vmem [shape: f32[16,32], index: 0, kind: input, shape index: {}]
  %s1 = inlined_call_operand.vmem [shape: f32[8,32], index: 1, kind: input, shape index: {}]
  %s2 = inlined_call_operand.vmem [shape: f32[8,32], index: 2, kind: input, shape index: {}]
  %s3 = inlined_call_operand.vmem [shape: f32[2,1,32], index: 3, kind: input, shape index: {}]
  %s4 = inlined_call_operand.vmem [shape: f32[2,1,32], index: 4, kind: input, shape index: {}]
  %s5 = inlined_call_operand.vmem [shape: f32[2,32,64], index: 5, kind: input, shape index: {}]
  %s6 = inlined_call_operand.vmem [shape: f32[2,1,64], index: 6, kind: input, shape index: {}]
  %s7 = inlined_call_operand.vmem [shape: f32[2,64,32], index: 7, kind: input, shape index: {}]
  %s8 = inlined_call_operand.vmem [shape: f32[2,1,32], index: 8, kind: input, shape index: {}]
  %s9 = inlined_call_operand.vmem [shape: f32[2,1,32], index: 9, kind: input, shape index: {}]
  %s10 = inlined_call_operand.vmem [shape: f32[2,1,32], index: 10, kind: input, shape index: {}]
  %s11 = inlined_call_operand.hbm [shape: f32[16,32], index: 11, kind: output, shape index: {}]
  %s12 = sld [smem:[#allocation0]]
  $region85: #{decoder.1} parent=0
    _
  %s14 = ssub.s32 1, %s12
  %s15 = scalar_select 0, %s14, %s12
  $region1: #{decoder.1} parent=0
    #allocation3 [shape = 'u8[8192]{0}', space=vmem, size = 0x2000, scoped, tag = 'output window, operand 0, single buffered']
    #allocation4 [shape = 's32[2]{0}', space=sflag, size = 0x8, scoped, tag = 'scoped memory for decoder.1']
    %16 = vsyncpa [#allocation4], 0
    loop: start=0, step=1, limit=4
    $region2: #{decoder.1} parent=1 // loop_pre_header
      _
    $region3: #{decoder.1} parent=1 // loop_header
      %s18 = sphi 0, %s22
      %p19 = scmp.ge.s32.totalorder %s18, 4
      %s26 = sphi 0, %s26
      %s28 = sphi 0, %s26
      %s29 = sphi 0, %s28
      %s43 = sphi 0, %s29
      %s47 = sphi 0, %s47
      %s49 = sphi 0, %s47
      %s50 = sphi 0, %s49
      %s64 = sphi 0, %s50
      %s68 = sphi 0, %s68
      %s70 = sphi 0, %s68
      %s71 = sphi 0, %s70
      %s85 = sphi 0, %s71
      %s91 = sphi 0, %s93
      %s94 = sphi 0, %s91
      %s95 = sphi 0, %s94
      %s111 = sphi 0, %s95
      %s117 = sphi 0, %s119
      %s120 = sphi 0, %s117
      %s121 = sphi 0, %s120
      %s137 = sphi 0, %s121
      %s143 = sphi 0, %s145
      %s146 = sphi 0, %s143
      %s147 = sphi 0, %s146
      %s163 = sphi 0, %s147
      %s169 = sphi 0, %s171
      %s172 = sphi 0, %s169
      %s173 = sphi 0, %s172
      %s189 = sphi 0, %s173
      %s195 = sphi 0, %s197
      %s198 = sphi 0, %s195
      %s199 = sphi 0, %s198
      %s215 = sphi 0, %s199
      %s221 = sphi 0, %s223
      %s224 = sphi 0, %s221
      %s225 = sphi 0, %s224
      %s241 = sphi 0, %s225
      %s247 = sphi 0, %s249
      %s250 = sphi 0, %s247
      %s251 = sphi 0, %s250
      %s267 = sphi 0, %s251
      %s273 = sphi 0, %s275
      %s276 = sphi 0, %s273
      %s277 = sphi 0, %s276
      %s293 = sphi 0, %s277
      %s297 = sphi 0, %s297
      %s299 = sphi 0, %s297
      %s300 = sphi 0, %s299
      %s314 = sphi 0, %s300
    $region4: #{decoder.1} parent=1 // loop_header_branch
      %21 = sbr.rel (%p19) target = $region8
    $region5: #{decoder.1} parent=1 // loop_body
      %s23 = ssub.s32 %s18, 1
      %s24 = ssub.s32 %s18, 2
      %s25 = sadd.s32 %s18, 1
      %s27 = sadd.s32 %s26, 1
      %p30 = scmp.eq.s32.totalorder %s18, 1
      %p31 = scmp.ne.s32.totalorder %s26, %s28
      %p32 = scmp.eq.s32.totalorder %s18, 0
      %p33 = por %p31, %p32
      %p34 = scmp.ne.s32.totalorder %s26, %s28
      %p35 = scmp.eq.s32.totalorder %s23, 1
      %p36 = por %p34, %p35
      %p37 = scmp.ne.s32.totalorder %s28, %s29
      %p38 = scmp.eq.s32.totalorder %s23, 0
      %p39 = por %p37, %p38
      %p40 = scmp.ne.s32.totalorder %s28, %s29
      %p41 = scmp.eq.s32.totalorder %s24, 1
      %p42 = por %p40, %p41
      %p44 = scmp.ne.s32.totalorder %s29, %s43
      %p45 = scmp.eq.s32.totalorder %s24, 0
      %p46 = por %p44, %p45
      %s48 = sadd.s32 %s47, 1
      %p51 = scmp.eq.s32.totalorder %s18, 1
      %p52 = scmp.ne.s32.totalorder %s47, %s49
      %p53 = scmp.eq.s32.totalorder %s18, 0
      %p54 = por %p52, %p53
      %p55 = scmp.ne.s32.totalorder %s47, %s49
      %p56 = scmp.eq.s32.totalorder %s23, 1
      %p57 = por %p55, %p56
      %p58 = scmp.ne.s32.totalorder %s49, %s50
      %p59 = scmp.eq.s32.totalorder %s23, 0
      %p60 = por %p58, %p59
      %p61 = scmp.ne.s32.totalorder %s49, %s50
      %p62 = scmp.eq.s32.totalorder %s24, 1
      %p63 = por %p61, %p62
      %p65 = scmp.ne.s32.totalorder %s50, %s64
      %p66 = scmp.eq.s32.totalorder %s24, 0
      %p67 = por %p65, %p66
      %s69 = sadd.s32 %s68, 1
      %p72 = scmp.eq.s32.totalorder %s18, 1
      %p73 = scmp.ne.s32.totalorder %s68, %s70
      %p74 = scmp.eq.s32.totalorder %s18, 0
      %p75 = por %p73, %p74
      %p76 = scmp.ne.s32.totalorder %s68, %s70
      %p77 = scmp.eq.s32.totalorder %s23, 1
      %p78 = por %p76, %p77
      %p79 = scmp.ne.s32.totalorder %s70, %s71
      %p80 = scmp.eq.s32.totalorder %s23, 0
      %p81 = por %p79, %p80
      %p82 = scmp.ne.s32.totalorder %s70, %s71
      %p83 = scmp.eq.s32.totalorder %s24, 1
      %p84 = por %p82, %p83
      %p86 = scmp.ne.s32.totalorder %s71, %s85
      %p87 = scmp.eq.s32.totalorder %s24, 0
      %p88 = por %p86, %p87
      %s89 = ssub.s32 %s18, %s25
      %p90 = scmp.eq.s32.totalorder %s89, 0
      %s92 = sadd.s32 %s91, 1
      %s93 = scalar_select %p90, %s91, %s92
      %p96 = pneg %p90
      %p97 = scmp.eq.s32.totalorder %s18, 1
      %p98 = por %p96, %p97
      %p99 = scmp.ne.s32.totalorder %s91, %s94
      %p100 = scmp.eq.s32.totalorder %s18, 0
      %p101 = por %p99, %p100
      %p102 = scmp.ne.s32.totalorder %s91, %s94
      %p103 = scmp.eq.s32.totalorder %s23, 1
      %p104 = por %p102, %p103
      %p105 = scmp.ne.s32.totalorder %s94, %s95
      %p106 = scmp.eq.s32.totalorder %s23, 0
      %p107 = por %p105, %p106
      %p108 = scmp.ne.s32.totalorder %s94, %s95
      %p109 = scmp.eq.s32.totalorder %s24, 1
      %p110 = por %p108, %p109
      %p112 = scmp.ne.s32.totalorder %s95, %s111
      %p113 = scmp.eq.s32.totalorder %s24, 0
      %p114 = por %p112, %p113
      %s115 = ssub.s32 %s18, %s25
      %p116 = scmp.eq.s32.totalorder %s115, 0
      %s118 = sadd.s32 %s117, 1
      %s119 = scalar_select %p116, %s117, %s118
      %p122 = pneg %p116
      %p123 = scmp.eq.s32.totalorder %s18, 1
      %p124 = por %p122, %p123
      %p125 = scmp.ne.s32.totalorder %s117, %s120
      %p126 = scmp.eq.s32.totalorder %s18, 0
      %p127 = por %p125, %p126
      %p128 = scmp.ne.s32.totalorder %s117, %s120
      %p129 = scmp.eq.s32.totalorder %s23, 1
      %p130 = por %p128, %p129
      %p131 = scmp.ne.s32.totalorder %s120, %s121
      %p132 = scmp.eq.s32.totalorder %s23, 0
      %p133 = por %p131, %p132
      %p134 = scmp.ne.s32.totalorder %s120, %s121
      %p135 = scmp.eq.s32.totalorder %s24, 1
      %p136 = por %p134, %p135
      %p138 = scmp.ne.s32.totalorder %s121, %s137
      %p139 = scmp.eq.s32.totalorder %s24, 0
      %p140 = por %p138, %p139
      %s141 = ssub.s32 %s18, %s25
      %p142 = scmp.eq.s32.totalorder %s141, 0
      %s144 = sadd.s32 %s143, 1
      %s145 = scalar_select %p142, %s143, %s144
      %p148 = pneg %p142
      %p149 = scmp.eq.s32.totalorder %s18, 1
      %p150 = por %p148, %p149
      %p151 = scmp.ne.s32.totalorder %s143, %s146
      %p152 = scmp.eq.s32.totalorder %s18, 0
      %p153 = por %p151, %p152
      %p154 = scmp.ne.s32.totalorder %s143, %s146
      %p155 = scmp.eq.s32.totalorder %s23, 1
      %p156 = por %p154, %p155
      %p157 = scmp.ne.s32.totalorder %s146, %s147
      %p158 = scmp.eq.s32.totalorder %s23, 0
      %p159 = por %p157, %p158
      %p160 = scmp.ne.s32.totalorder %s146, %s147
      %p161 = scmp.eq.s32.totalorder %s24, 1
      %p162 = por %p160, %p161
      %p164 = scmp.ne.s32.totalorder %s147, %s163
      %p165 = scmp.eq.s32.totalorder %s24, 0
      %p166 = por %p164, %p165
      %s167 = ssub.s32 %s18, %s25
      %p168 = scmp.eq.s32.totalorder %s167, 0
      %s170 = sadd.s32 %s169, 1
      %s171 = scalar_select %p168, %s169, %s170
      %p174 = pneg %p168
      %p175 = scmp.eq.s32.totalorder %s18, 1
      %p176 = por %p174, %p175
      %p177 = scmp.ne.s32.totalorder %s169, %s172
      %p178 = scmp.eq.s32.totalorder %s18, 0
      %p179 = por %p177, %p178
      %p180 = scmp.ne.s32.totalorder %s169, %s172
      %p181 = scmp.eq.s32.totalorder %s23, 1
      %p182 = por %p180, %p181
      %p183 = scmp.ne.s32.totalorder %s172, %s173
      %p184 = scmp.eq.s32.totalorder %s23, 0
      %p185 = por %p183, %p184
      %p186 = scmp.ne.s32.totalorder %s172, %s173
      %p187 = scmp.eq.s32.totalorder %s24, 1
      %p188 = por %p186, %p187
      %p190 = scmp.ne.s32.totalorder %s173, %s189
      %p191 = scmp.eq.s32.totalorder %s24, 0
      %p192 = por %p190, %p191
      %s193 = ssub.s32 %s18, %s25
      %p194 = scmp.eq.s32.totalorder %s193, 0
      %s196 = sadd.s32 %s195, 1
      %s197 = scalar_select %p194, %s195, %s196
      %p200 = pneg %p194
      %p201 = scmp.eq.s32.totalorder %s18, 1
      %p202 = por %p200, %p201
      %p203 = scmp.ne.s32.totalorder %s195, %s198
      %p204 = scmp.eq.s32.totalorder %s18, 0
      %p205 = por %p203, %p204
      %p206 = scmp.ne.s32.totalorder %s195, %s198
      %p207 = scmp.eq.s32.totalorder %s23, 1
      %p208 = por %p206, %p207
      %p209 = scmp.ne.s32.totalorder %s198, %s199
      %p210 = scmp.eq.s32.totalorder %s23, 0
      %p211 = por %p209, %p210
      %p212 = scmp.ne.s32.totalorder %s198, %s199
      %p213 = scmp.eq.s32.totalorder %s24, 1
      %p214 = por %p212, %p213
      %p216 = scmp.ne.s32.totalorder %s199, %s215
      %p217 = scmp.eq.s32.totalorder %s24, 0
      %p218 = por %p216, %p217
      %s219 = ssub.s32 %s18, %s25
      %p220 = scmp.eq.s32.totalorder %s219, 0
      %s222 = sadd.s32 %s221, 1
      %s223 = scalar_select %p220, %s221, %s222
      %p226 = pneg %p220
      %p227 = scmp.eq.s32.totalorder %s18, 1
      %p228 = por %p226, %p227
      %p229 = scmp.ne.s32.totalorder %s221, %s224
      %p230 = scmp.eq.s32.totalorder %s18, 0
      %p231 = por %p229, %p230
      %p232 = scmp.ne.s32.totalorder %s221, %s224
      %p233 = scmp.eq.s32.totalorder %s23, 1
      %p234 = por %p232, %p233
      %p235 = scmp.ne.s32.totalorder %s224, %s225
      %p236 = scmp.eq.s32.totalorder %s23, 0
      %p237 = por %p235, %p236
      %p238 = scmp.ne.s32.totalorder %s224, %s225
      %p239 = scmp.eq.s32.totalorder %s24, 1
      %p240 = por %p238, %p239
      %p242 = scmp.ne.s32.totalorder %s225, %s241
      %p243 = scmp.eq.s32.totalorder %s24, 0
      %p244 = por %p242, %p243
      %s245 = ssub.s32 %s18, %s25
      %p246 = scmp.eq.s32.totalorder %s245, 0
      %s248 = sadd.s32 %s247, 1
      %s249 = scalar_select %p246, %s247, %s248
      %p252 = pneg %p246
      %p253 = scmp.eq.s32.totalorder %s18, 1
      %p254 = por %p252, %p253
      %p255 = scmp.ne.s32.totalorder %s247, %s250
      %p256 = scmp.eq.s32.totalorder %s18, 0
      %p257 = por %p255, %p256
      %p258 = scmp.ne.s32.totalorder %s247, %s250
      %p259 = scmp.eq.s32.totalorder %s23, 1
      %p260 = por %p258, %p259
      %p261 = scmp.ne.s32.totalorder %s250, %s251
      %p262 = scmp.eq.s32.totalorder %s23, 0
      %p263 = por %p261, %p262
      %p264 = scmp.ne.s32.totalorder %s250, %s251
      %p265 = scmp.eq.s32.totalorder %s24, 1
      %p266 = por %p264, %p265
      %p268 = scmp.ne.s32.totalorder %s251, %s267
      %p269 = scmp.eq.s32.totalorder %s24, 0
      %p270 = por %p268, %p269
      %s271 = ssub.s32 %s18, %s25
      %p272 = scmp.eq.s32.totalorder %s271, 0
      %s274 = sadd.s32 %s273, 1
      %s275 = scalar_select %p272, %s273, %s274
      %p278 = pneg %p272
      %p279 = scmp.eq.s32.totalorder %s18, 1
      %p280 = por %p278, %p279
      %p281 = scmp.ne.s32.totalorder %s273, %s276
      %p282 = scmp.eq.s32.totalorder %s18, 0
      %p283 = por %p281, %p282
      %p284 = scmp.ne.s32.totalorder %s273, %s276
      %p285 = scmp.eq.s32.totalorder %s23, 1
      %p286 = por %p284, %p285
      %p287 = scmp.ne.s32.totalorder %s276, %s277
      %p288 = scmp.eq.s32.totalorder %s23, 0
      %p289 = por %p287, %p288
      %p290 = scmp.ne.s32.totalorder %s276, %s277
      %p291 = scmp.eq.s32.totalorder %s24, 1
      %p292 = por %p290, %p291
      %p294 = scmp.ne.s32.totalorder %s277, %s293
      %p295 = scmp.eq.s32.totalorder %s24, 0
      %p296 = por %p294, %p295
      %s298 = sadd.s32 %s297, 1
      %p301 = scmp.eq.s32.totalorder %s18, 1
      %p302 = scmp.ne.s32.totalorder %s297, %s299
      %p303 = scmp.eq.s32.totalorder %s18, 0
      %p304 = por %p302, %p303
      %p305 = scmp.ne.s32.totalorder %s297, %s299
      %p306 = scmp.eq.s32.totalorder %s23, 1
      %p307 = por %p305, %p306
      %p308 = scmp.ne.s32.totalorder %s299, %s300
      %p309 = scmp.eq.s32.totalorder %s23, 0
      %p310 = por %p308, %p309
      %p311 = scmp.ne.s32.totalorder %s299, %s300
      %p312 = scmp.eq.s32.totalorder %s24, 1
      %p313 = por %p311, %p312
      %p315 = scmp.ne.s32.totalorder %s300, %s314
      %p316 = scmp.eq.s32.totalorder %s24, 0
      %p317 = por %p315, %p316
      %p318 = scmp.le.s32.totalorder 1, %s18
      %p319 = scmp.lt.s32.totalorder %s18, 3
      %p320 = pnand %p318, %p319
      %p321 = pneg %p320
      // Predicated region
      $region9: #{decoder.1} parent=5 // pred_check
        _
      $region10: #{decoder.1} parent=5 // pred_check_branch
        %323 = sbr.rel (%p320) target = $region12
      $region11: #{decoder.1} parent=5 // pred_region
        %s324 = ssub.s32 %s18, 1
        // Predicated region
        $region13: #{decoder.1} parent=11 // pred_check
          %p325 = pneg %p39
        $region14: #{decoder.1} parent=11 // pred_check_branch
          %327 = sbr.rel (%p325) target = $region16
        $region15: #{decoder.1} parent=11 // pred_region
          _
        $region16: #{decoder.1} parent=11 // pred_fallthru
          _
        // Predicated region
        $region17: #{decoder.1} parent=11 // pred_check
          %p328 = pneg %p60
        $region18: #{decoder.1} parent=11 // pred_check_branch
          %330 = sbr.rel (%p328) target = $region20
        $region19: #{decoder.1} parent=11 // pred_region
          _
        $region20: #{decoder.1} parent=11 // pred_fallthru
          _
        // Predicated region
        $region21: #{decoder.1} parent=11 // pred_check
          %p331 = pneg %p81
        $region22: #{decoder.1} parent=11 // pred_check_branch
          %333 = sbr.rel (%p331) target = $region24
        $region23: #{decoder.1} parent=11 // pred_region
          _
        $region24: #{decoder.1} parent=11 // pred_fallthru
          _
      $region12: #{decoder.1} parent=5 // pred_fallthru
        _
      %p334 = scmp.lt.s32.totalorder %s18, 2
      // Predicated region
      $region25: #{decoder.1} parent=5 // pred_check
        %p335 = pneg %p334
      $region26: #{decoder.1} parent=5 // pred_check_branch
        %337 = sbr.rel (%p335) target = $region28
      $region27: #{decoder.1} parent=5 // pred_region
        // Predicated region
        $region29: #{decoder.1} parent=27 // pred_check
          %p338 = pneg %p101
        $region30: #{decoder.1} parent=27 // pred_check_branch
          %340 = sbr.rel (%p338) target = $region32
        $region31: #{decoder.1} parent=27 // pred_region
          %p341 = scmp.lt.s32.totalorder %s18, 1
          %s342 = scalar_select %p341, %s18, 1
          %s343 = scalar_lea.vmem %s3, %s342
        $region32: #{decoder.1} parent=27 // pred_fallthru
          _
        // Predicated region
        $region33: #{decoder.1} parent=27 // pred_check
          %p344 = pneg %p127
        $region34: #{decoder.1} parent=27 // pred_check_branch
          %346 = sbr.rel (%p344) target = $region36
        $region35: #{decoder.1} parent=27 // pred_region
          %p347 = scmp.lt.s32.totalorder %s18, 1
          %s348 = scalar_select %p347, %s18, 1
          %s349 = scalar_lea.vmem %s4, %s348
        $region36: #{decoder.1} parent=27 // pred_fallthru
          _
        // Predicated region
        $region37: #{decoder.1} parent=27 // pred_check
          %p350 = pneg %p153
        $region38: #{decoder.1} parent=27 // pred_check_branch
          %352 = sbr.rel (%p350) target = $region40
        $region39: #{decoder.1} parent=27 // pred_region
          %p353 = scmp.lt.s32.totalorder %s18, 1
          %s354 = scalar_select %p353, %s18, 1
          %s355 = smul.addr %s354, 4
          %s356 = smul.addr %s355, 8
          %s357 = scalar_lea.vmem %s5, %s356
        $region40: #{decoder.1} parent=27 // pred_fallthru
          _
        // Predicated region
        $region41: #{decoder.1} parent=27 // pred_check
          %p358 = pneg %p179
        $region42: #{decoder.1} parent=27 // pred_check_branch
          %360 = sbr.rel (%p358) target = $region44
        $region43: #{decoder.1} parent=27 // pred_region
          %p361 = scmp.lt.s32.totalorder %s18, 1
          %s362 = scalar_select %p361, %s18, 1
          %s363 = scalar_lea.vmem %s6, %s362
        $region44: #{decoder.1} parent=27 // pred_fallthru
          _
        // Predicated region
        $region45: #{decoder.1} parent=27 // pred_check
          %p364 = pneg %p205
        $region46: #{decoder.1} parent=27 // pred_check_branch
          %366 = sbr.rel (%p364) target = $region48
        $region47: #{decoder.1} parent=27 // pred_region
          %p367 = scmp.lt.s32.totalorder %s18, 1
          %s368 = scalar_select %p367, %s18, 1
          %s369 = smul.addr %s368, 8
          %s370 = smul.addr %s369, 8
          %s371 = scalar_lea.vmem %s7, %s370
        $region48: #{decoder.1} parent=27 // pred_fallthru
          _
        // Predicated region
        $region49: #{decoder.1} parent=27 // pred_check
          %p372 = pneg %p231
        $region50: #{decoder.1} parent=27 // pred_check_branch
          %374 = sbr.rel (%p372) target = $region52
        $region51: #{decoder.1} parent=27 // pred_region
          %p375 = scmp.lt.s32.totalorder %s18, 1
          %s376 = scalar_select %p375, %s18, 1
          %s377 = scalar_lea.vmem %s8, %s376
        $region52: #{decoder.1} parent=27 // pred_fallthru
          _
        // Predicated region
        $region53: #{decoder.1} parent=27 // pred_check
          %p378 = pneg %p257
        $region54: #{decoder.1} parent=27 // pred_check_branch
          %380 = sbr.rel (%p378) target = $region56
        $region55: #{decoder.1} parent=27 // pred_region
          %p381 = scmp.lt.s32.totalorder %s18, 1
          %s382 = scalar_select %p381, %s18, 1
          %s383 = scalar_lea.vmem %s9, %s382
        $region56: #{decoder.1} parent=27 // pred_fallthru
          _
        // Predicated region
        $region57: #{decoder.1} parent=27 // pred_check
          %p384 = pneg %p283
        $region58: #{decoder.1} parent=27 // pred_check_branch
          %386 = sbr.rel (%p384) target = $region60
        $region59: #{decoder.1} parent=27 // pred_region
          %p387 = scmp.lt.s32.totalorder %s18, 1
          %s388 = scalar_select %p387, %s18, 1
          %s389 = scalar_lea.vmem %s10, %s388
        $region60: #{decoder.1} parent=27 // pred_fallthru
          _
      $region28: #{decoder.1} parent=5 // pred_fallthru
        _
      %p390 = scmp.le.s32.totalorder 1, %s18
      %p391 = scmp.lt.s32.totalorder %s18, 3
      %p392 = pnand %p390, %p391
      %p393 = pneg %p392
      // Predicated region
      $region61: #{decoder.1} parent=5 // pred_check
        _
      $region62: #{decoder.1} parent=5 // pred_check_branch
        %395 = sbr.rel (%p392) target = $region64
      $region63: #{decoder.1} parent=5 // pred_region
        %s396 = ssub.s32 %s18, 1
        %p397 = pneg %p39
        %p398 = pneg %p36
        %p399 = pneg %p60
        %p400 = pneg %p57
        %p401 = pneg %p81
        %p402 = pneg %p78
        %p403 = scmp.lt.s32.totalorder %s23, 1
        %s404 = scalar_select %p403, %s23, 1
        %s405 = scalar_lea.vmem %s3, %s404
        %p406 = pneg %p107
        %p407 = pneg %p104
        %p408 = scmp.lt.s32.totalorder %s23, 1
        %s409 = scalar_select %p408, %s23, 1
        %s410 = scalar_lea.vmem %s4, %s409
        %p411 = pneg %p133
        %p412 = pneg %p130
        %p413 = scmp.lt.s32.totalorder %s23, 1
        %s414 = scalar_select %p413, %s23, 1
        %s415 = smul.addr %s414, 4
        %s416 = smul.addr %s415, 8
        %s417 = scalar_lea.vmem %s5, %s416
        %p418 = pneg %p159
        %p419 = pneg %p156
        %p420 = scmp.lt.s32.totalorder %s23, 1
        %s421 = scalar_select %p420, %s23, 1
        %s422 = scalar_lea.vmem %s6, %s421
        %p423 = pneg %p185
        %p424 = pneg %p182
        %p425 = scmp.lt.s32.totalorder %s23, 1
        %s426 = scalar_select %p425, %s23, 1
        %s427 = smul.addr %s426, 8
        %s428 = smul.addr %s427, 8
        %s429 = scalar_lea.vmem %s7, %s428
        %p430 = pneg %p211
        %p431 = pneg %p208
        %p432 = scmp.lt.s32.totalorder %s23, 1
        %s433 = scalar_select %p432, %s23, 1
        %s434 = scalar_lea.vmem %s8, %s433
        %p435 = pneg %p237
        %p436 = pneg %p234
        %p437 = scmp.lt.s32.totalorder %s23, 1
        %s438 = scalar_select %p437, %s23, 1
        %s439 = scalar_lea.vmem %s9, %s438
        %p440 = pneg %p263
        %p441 = pneg %p260
        %p442 = scmp.lt.s32.totalorder %s23, 1
        %s443 = scalar_select %p442, %s23, 1
        %s444 = scalar_lea.vmem %s10, %s443
        %p445 = pneg %p289
        %p446 = pneg %p286
        %p447 = pneg %p310
        %p448 = pneg %p307
        %p449 = scmp.lt.s32.totalorder %s23, 1
        %s450 = scalar_select %p449, %s23, 1
        %s451 = scalar_lea.vmem %s3, %s450
        %p452 = scmp.lt.s32.totalorder %s23, 1
        %s453 = scalar_select %p452, %s23, 1
        %s454 = scalar_lea.vmem %s4, %s453
        %p455 = scmp.lt.s32.totalorder %s23, 1
        %s456 = scalar_select %p455, %s23, 1
        %s457 = smul.addr %s456, 4
        %s458 = smul.addr %s457, 8
        %s459 = scalar_lea.vmem %s5, %s458
        %p460 = scmp.lt.s32.totalorder %s23, 1
        %s461 = scalar_select %p460, %s23, 1
        %s462 = scalar_lea.vmem %s6, %s461
        %p463 = scmp.lt.s32.totalorder %s23, 1
        %s464 = scalar_select %p463, %s23, 1
        %s465 = smul.addr %s464, 8
        %s466 = smul.addr %s465, 8
        %s467 = scalar_lea.vmem %s7, %s466
        %p468 = scmp.lt.s32.totalorder %s23, 1
        %s469 = scalar_select %p468, %s23, 1
        %s470 = scalar_lea.vmem %s8, %s469
        %p471 = scmp.lt.s32.totalorder %s23, 1
        %s472 = scalar_select %p471, %s23, 1
        %s473 = scalar_lea.vmem %s9, %s472
        %p474 = scmp.lt.s32.totalorder %s23, 1
        %s475 = scalar_select %p474, %s23, 1
        %s476 = scalar_lea.vmem %s10, %s475
        %p477 = scmp.eq.s32.totalorder %s23, 0
        // Predicated region
        $region65: #{decoder.1} parent=63 // pred_check
          %p478 = pneg %p477
        $region66: #{decoder.1} parent=63 // pred_check_branch
          %480 = sbr.rel (%p478) target = $region68
        $region67: #{decoder.1} parent=63 // pred_region
          %v481 = vld [vmem:[%s0] sm:$0xff]
          %v482 = vld [vmem:[%s0 + $0x8] sm:$0xff]
          %vm483 = vcmask 261120
          %484 = vst.msk [vmem:[#allocation2] sm:$0xff] %vm483, %v481
          %485 = vst.msk [vmem:[#allocation2 + $0x8] sm:$0xff] %vm483, %v482
        $region68: #{decoder.1} parent=63 // pred_fallthru
          _
        %v486 = vld [vmem:[#allocation2] sm:$0xff]
        %v487 = vld [vmem:[#allocation2 + $0x8] sm:$0xff]
        %490 = vrot.lane.b32.xlu0 %v486, 120
        %v491 = vpop.permute.xlu0 %490
        %492 = vrot.lane.b32.xlu0 %v487, 120
        %v493 = vpop.permute.xlu0 %492
        %496 = vrot.lane.b32.xlu0 %v486, 112
        %v497 = vpop.permute.xlu0 %496
        %498 = vrot.lane.b32.xlu0 %v487, 112
        %v499 = vpop.permute.xlu0 %498
        %502 = vrot.lane.b32.xlu0 %v486, 104
        %v503 = vpop.permute.xlu0 %502
        %504 = vrot.lane.b32.xlu0 %v487, 104
        %v505 = vpop.permute.xlu0 %504
        %v508 = vld [vmem:[%s1] sm:$0xff]
        %510 = vrot.lane.b32.xlu0 %v508, 120
        %v511 = vpop.permute.xlu0 %510
        %512 = vrot.lane.b32.xlu0 %v508, 112
        %v513 = vpop.permute.xlu0 %512
        %514 = vrot.lane.b32.xlu0 %v508, 104
        %v515 = vpop.permute.xlu0 %514
        %v516 = vld [vmem:[%s2] sm:$0xff]
        %518 = vrot.lane.b32.xlu0 %v516, 120
        %v519 = vpop.permute.xlu0 %518
        %521 = vrot.lane.b32.xlu0 %v516, 112
        %v522 = vpop.permute.xlu0 %521
        %524 = vrot.lane.b32.xlu0 %v516, 104
        %v525 = vpop.permute.xlu0 %524
        %527 = vxpose.xlu0.b32.start [1/16] %v486, 128
        %528 = vxpose.xlu0.b32.cont [2/16] %v487, 128
        %529 = vxpose.xlu0.b32.cont [3/16] 0.0, 128
        %530 = vxpose.xlu0.b32.cont [4/16] 0.0, 128
        %531 = vxpose.xlu0.b32.cont [5/16] 0.0, 128
        %532 = vxpose.xlu0.b32.cont [6/16] 0.0, 128
        %533 = vxpose.xlu0.b32.cont [7/16] 0.0, 128
        %534 = vxpose.xlu0.b32.cont [8/16] 0.0, 128
        %535 = vxpose.xlu0.b32.cont [9/16] 0.0, 128
        %536 = vxpose.xlu0.b32.cont [10/16] 0.0, 128
        %537 = vxpose.xlu0.b32.cont [11/16] 0.0, 128
        %538 = vxpose.xlu0.b32.cont [12/16] 0.0, 128
        %539 = vxpose.xlu0.b32.cont [13/16] 0.0, 128
        %540 = vxpose.xlu0.b32.cont [14/16] 0.0, 128
        %541 = vxpose.xlu0.b32.cont [15/16] 0.0, 128
        %542 = vxpose.xlu0.b32.end [16/16] 0.0, 128
        %v543 = vpop.trf.xlu0
        %v544 = vpop.trf.xlu0
        %v545 = vpop.trf.xlu0
        %v546 = vpop.trf.xlu0
        %v547 = vpop.trf.xlu0
        %v548 = vpop.trf.xlu0
        %v549 = vpop.trf.xlu0
        %v550 = vpop.trf.xlu0
        %v551 = vpop.trf.xlu0
        %v552 = vpop.trf.xlu0
        %v553 = vpop.trf.xlu0
        %v554 = vpop.trf.xlu0
        %v555 = vpop.trf.xlu0
        %v556 = vpop.trf.xlu0
        %v557 = vpop.trf.xlu0
        %v558 = vpop.trf.xlu0
        %559 = vxpose.xlu0.b32.start [1/16] %v491, 128
        %560 = vxpose.xlu0.b32.cont [2/16] %v493, 128
        %561 = vxpose.xlu0.b32.cont [3/16] 0.0, 128
        %562 = vxpose.xlu0.b32.cont [4/16] 0.0, 128
        %563 = vxpose.xlu0.b32.cont [5/16] 0.0, 128
        %564 = vxpose.xlu0.b32.cont [6/16] 0.0, 128
        %565 = vxpose.xlu0.b32.cont [7/16] 0.0, 128
        %566 = vxpose.xlu0.b32.cont [8/16] 0.0, 128
        %567 = vxpose.xlu0.b32.cont [9/16] 0.0, 128
        %568 = vxpose.xlu0.b32.cont [10/16] 0.0, 128
        %569 = vxpose.xlu0.b32.cont [11/16] 0.0, 128
        %570 = vxpose.xlu0.b32.cont [12/16] 0.0, 128
        %571 = vxpose.xlu0.b32.cont [13/16] 0.0, 128
        %572 = vxpose.xlu0.b32.cont [14/16] 0.0, 128
        %573 = vxpose.xlu0.b32.cont [15/16] 0.0, 128
        %574 = vxpose.xlu0.b32.end [16/16] 0.0, 128
        %v575 = vpop.trf.xlu0
        %v576 = vpop.trf.xlu0
        %v577 = vpop.trf.xlu0
        %v578 = vpop.trf.xlu0
        %v579 = vpop.trf.xlu0
        %v580 = vpop.trf.xlu0
        %v581 = vpop.trf.xlu0
        %v582 = vpop.trf.xlu0
        %v583 = vpop.trf.xlu0
        %v584 = vpop.trf.xlu0
        %v585 = vpop.trf.xlu0
        %v586 = vpop.trf.xlu0
        %v587 = vpop.trf.xlu0
        %v588 = vpop.trf.xlu0
        %v589 = vpop.trf.xlu0
        %v590 = vpop.trf.xlu0
        %591 = vxpose.xlu0.b32.start [1/16] %v497, 128
        %592 = vxpose.xlu0.b32.cont [2/16] %v499, 128
        %593 = vxpose.xlu0.b32.cont [3/16] 0.0, 128
        %594 = vxpose.xlu0.b32.cont [4/16] 0.0, 128
        %595 = vxpose.xlu0.b32.cont [5/16] 0.0, 128
        %596 = vxpose.xlu0.b32.cont [6/16] 0.0, 128
        %597 = vxpose.xlu0.b32.cont [7/16] 0.0, 128
        %598 = vxpose.xlu0.b32.cont [8/16] 0.0, 128
        %599 = vxpose.xlu0.b32.cont [9/16] 0.0, 128
        %600 = vxpose.xlu0.b32.cont [10/16] 0.0, 128
        %601 = vxpose.xlu0.b32.cont [11/16] 0.0, 128
        %602 = vxpose.xlu0.b32.cont [12/16] 0.0, 128
        %603 = vxpose.xlu0.b32.cont [13/16] 0.0, 128
        %604 = vxpose.xlu0.b32.cont [14/16] 0.0, 128
        %605 = vxpose.xlu0.b32.cont [15/16] 0.0, 128
        %606 = vxpose.xlu0.b32.end [16/16] 0.0, 128
        %v607 = vpop.trf.xlu0
        %v608 = vpop.trf.xlu0
        %v609 = vpop.trf.xlu0
        %v610 = vpop.trf.xlu0
        %v611 = vpop.trf.xlu0
        %v612 = vpop.trf.xlu0
        %v613 = vpop.trf.xlu0
        %v614 = vpop.trf.xlu0
        %v615 = vpop.trf.xlu0
        %v616 = vpop.trf.xlu0
        %v617 = vpop.trf.xlu0
        %v618 = vpop.trf.xlu0
        %v619 = vpop.trf.xlu0
        %v620 = vpop.trf.xlu0
        %v621 = vpop.trf.xlu0
        %v622 = vpop.trf.xlu0
        %623 = vxpose.xlu0.b32.start [1/16] %v503, 128
        %624 = vxpose.xlu0.b32.cont [2/16] %v505, 128
        %625 = vxpose.xlu0.b32.cont [3/16] 0.0, 128
        %626 = vxpose.xlu0.b32.cont [4/16] 0.0, 128
        %627 = vxpose.xlu0.b32.cont [5/16] 0.0, 128
        %628 = vxpose.xlu0.b32.cont [6/16] 0.0, 128
        %629 = vxpose.xlu0.b32.cont [7/16] 0.0, 128
        %630 = vxpose.xlu0.b32.cont [8/16] 0.0, 128
        %631 = vxpose.xlu0.b32.cont [9/16] 0.0, 128
        %632 = vxpose.xlu0.b32.cont [10/16] 0.0, 128
        %633 = vxpose.xlu0.b32.cont [11/16] 0.0, 128
        %634 = vxpose.xlu0.b32.cont [12/16] 0.0, 128
        %635 = vxpose.xlu0.b32.cont [13/16] 0.0, 128
        %636 = vxpose.xlu0.b32.cont [14/16] 0.0, 128
        %637 = vxpose.xlu0.b32.cont [15/16] 0.0, 128
        %638 = vxpose.xlu0.b32.end [16/16] 0.0, 128
        %v639 = vpop.trf.xlu0
        %v640 = vpop.trf.xlu0
        %v641 = vpop.trf.xlu0
        %v642 = vpop.trf.xlu0
        %v643 = vpop.trf.xlu0
        %v644 = vpop.trf.xlu0
        %v645 = vpop.trf.xlu0
        %v646 = vpop.trf.xlu0
        %v647 = vpop.trf.xlu0
        %v648 = vpop.trf.xlu0
        %v649 = vpop.trf.xlu0
        %v650 = vpop.trf.xlu0
        %v651 = vpop.trf.xlu0
        %v652 = vpop.trf.xlu0
        %v653 = vpop.trf.xlu0
        %v654 = vpop.trf.xlu0
        %vm655 = vcmask 64512
        %v656 = vsel %vm655, %v508, 0
        %658 = vmatprep.subr.mxu0 0.0
        %659 = vmatpush1.msra.mxu0 0.0
        %660 = vmatprep.subr.mxu0 0.0
        %661 = vmatpush1.msra.mxu0 0.0
        %662 = vmatprep.subr.mxu0 0.0
        %663 = vmatpush1.msra.mxu0 0.0
        %664 = vmatprep.subr.mxu0 0.0
        %665 = vmatpush1.msra.mxu0 0.0
        %666 = vmatprep.subr.mxu0 0.0
        %667 = vmatpush1.msra.mxu0 0.0
        %668 = vmatprep.subr.mxu0 0.0
        %669 = vmatpush1.msra.mxu0 0.0
        %670 = vmatprep.subr.mxu0 0.0
        %671 = vmatpush1.msra.mxu0 0.0
        %672 = vmatprep.subr.mxu0 0.0
        %673 = vmatpush1.msra.mxu0 0.0
        %674 = vmatprep.subr.mxu0 0.0
        %675 = vmatpush1.msra.mxu0 0.0
        %676 = vmatprep.subr.mxu0 0.0
        %677 = vmatpush1.msra.mxu0 0.0
        %678 = vmatprep.subr.mxu0 0.0
        %679 = vmatpush1.msra.mxu0 0.0
        %680 = vmatprep.subr.mxu0 0.0
        %681 = vmatpush1.msra.mxu0 0.0
        %682 = vmatprep.subr.mxu0 0.0
        %683 = vmatpush1.msra.mxu0 0.0
        %684 = vmatprep.subr.mxu0 0.0
        %685 = vmatpush1.msra.mxu0 0.0
        %686 = vmatprep.subr.mxu0 0.0
        %687 = vmatpush1.msra.mxu0 0.0
        %688 = vmatprep.subr.mxu0 0.0
        %689 = vmatpush1.msra.mxu0 %v543
        %690 = vmatprep.subr.mxu0 0.0
        %691 = vmatpush2.msra.mxu0 0.0
        %692 = vmatprep.subr.mxu0 0.0
        %693 = vmatpush2.msra.mxu0 0.0
        %694 = vmatprep.subr.mxu0 0.0
        %695 = vmatpush2.msra.mxu0 0.0
        %696 = vmatprep.subr.mxu0 0.0
        %697 = vmatpush2.msra.mxu0 0.0
        %698 = vmatprep.subr.mxu0 0.0
        %699 = vmatpush2.msra.mxu0 0.0
        %700 = vmatprep.subr.mxu0 0.0
        %701 = vmatpush2.msra.mxu0 0.0
        %702 = vmatprep.subr.mxu0 0.0
        %703 = vmatpush2.msra.mxu0 0.0
        %704 = vmatprep.subr.mxu0 0.0
        %705 = vmatpush2.msra.mxu0 0.0
        %706 = vmatprep.subr.mxu0 0.0
        %707 = vmatpush2.msra.mxu0 0.0
        %708 = vmatprep.subr.mxu0 0.0
        %709 = vmatpush2.msra.mxu0 0.0
        %710 = vmatprep.subr.mxu0 0.0
        %711 = vmatpush2.msra.mxu0 0.0
        %712 = vmatprep.subr.mxu0 0.0
        %713 = vmatpush2.msra.mxu0 0.0
        %714 = vmatprep.subr.mxu0 0.0
        %715 = vmatpush2.msra.mxu0 0.0
        %716 = vmatprep.subr.mxu0 0.0
        %717 = vmatpush2.msra.mxu0 0.0
        %718 = vmatprep.subr.mxu0 0.0
        %719 = vmatpush2.msra.mxu0 0.0
        %720 = vmatprep.subr.mxu0 0.0
        %721 = vmatpush2.msra.mxu0 0.0
        %722 = vmatprep.mubr.f32.mxu0 0.0
        %723 = vmatmul.mubr.f32.gmra.mxu0 %v656
        %v724 = vpop.f32.mrf.mxu0
        %v725 = vadd.f32 0.0, %v724
        %v726 = vpop.f32.mrf.mxu0
        %727 = vdwg.mxu0
        %v728 = vsel %vm655, %v511, 0
        %730 = vmatprep.subr.mxu0 0.0
        %731 = vmatpush1.msra.mxu0 0.0
        %732 = vmatprep.subr.mxu0 0.0
        %733 = vmatpush1.msra.mxu0 0.0
        %734 = vmatprep.subr.mxu0 0.0
        %735 = vmatpush1.msra.mxu0 0.0
        %736 = vmatprep.subr.mxu0 0.0
        %737 = vmatpush1.msra.mxu0 0.0
        %738 = vmatprep.subr.mxu0 0.0
        %739 = vmatpush1.msra.mxu0 0.0
        %740 = vmatprep.subr.mxu0 0.0
        %741 = vmatpush1.msra.mxu0 0.0
        %742 = vmatprep.subr.mxu0 0.0
        %743 = vmatpush1.msra.mxu0 0.0
        %744 = vmatprep.subr.mxu0 0.0
        %745 = vmatpush1.msra.mxu0 0.0
        %746 = vmatprep.subr.mxu0 0.0
        %747 = vmatpush1.msra.mxu0 0.0
        %748 = vmatprep.subr.mxu0 0.0
        %749 = vmatpush1.msra.mxu0 0.0
        %750 = vmatprep.subr.mxu0 0.0
        %751 = vmatpush1.msra.mxu0 0.0
        %752 = vmatprep.subr.mxu0 0.0
        %753 = vmatpush1.msra.mxu0 0.0
        %754 = vmatprep.subr.mxu0 0.0
        %755 = vmatpush1.msra.mxu0 0.0
        %756 = vmatprep.subr.mxu0 0.0
        %757 = vmatpush1.msra.mxu0 0.0
        %758 = vmatprep.subr.mxu0 0.0
        %759 = vmatpush1.msra.mxu0 0.0
        %760 = vmatprep.subr.mxu0 0.0
        %761 = vmatpush1.msra.mxu0 %v575
        %762 = vmatprep.subr.mxu0 0.0
        %763 = vmatpush2.msra.mxu0 0.0
        %764 = vmatprep.subr.mxu0 0.0
        %765 = vmatpush2.msra.mxu0 0.0
        %766 = vmatprep.subr.mxu0 0.0
        %767 = vmatpush2.msra.mxu0 0.0
        %768 = vmatprep.subr.mxu0 0.0
        %769 = vmatpush2.msra.mxu0 0.0
        %770 = vmatprep.subr.mxu0 0.0
        %771 = vmatpush2.msra.mxu0 0.0
        %772 = vmatprep.subr.mxu0 0.0
        %773 = vmatpush2.msra.mxu0 0.0
        %774 = vmatprep.subr.mxu0 0.0
        %775 = vmatpush2.msra.mxu0 0.0
        %776 = vmatprep.subr.mxu0 0.0
        %777 = vmatpush2.msra.mxu0 0.0
        %778 = vmatprep.subr.mxu0 0.0
        %779 = vmatpush2.msra.mxu0 0.0
        %780 = vmatprep.subr.mxu0 0.0
        %781 = vmatpush2.msra.mxu0 0.0
        %782 = vmatprep.subr.mxu0 0.0
        %783 = vmatpush2.msra.mxu0 0.0
        %784 = vmatprep.subr.mxu0 0.0
        %785 = vmatpush2.msra.mxu0 0.0
        %786 = vmatprep.subr.mxu0 0.0
        %787 = vmatpush2.msra.mxu0 0.0
        %788 = vmatprep.subr.mxu0 0.0
        %789 = vmatpush2.msra.mxu0 0.0
        %790 = vmatprep.subr.mxu0 0.0
        %791 = vmatpush2.msra.mxu0 0.0
        %792 = vmatprep.subr.mxu0 0.0
        %793 = vmatpush2.msra.mxu0 0.0
        %794 = vmatprep.mubr.f32.mxu0 0.0
        %795 = vmatmul.mubr.f32.gmra.mxu0 %v728
        %v796 = vpop.f32.mrf.mxu0
        %v797 = vadd.f32 0.0, %v796
        %v798 = vpop.f32.mrf.mxu0
        %799 = vdwg.mxu0
        %v800 = vsel %vm655, %v513, 0
        %802 = vmatprep.subr.mxu0 0.0
        %803 = vmatpush1.msra.mxu0 0.0
        %804 = vmatprep.subr.mxu0 0.0
        %805 = vmatpush1.msra.mxu0 0.0
        %806 = vmatprep.subr.mxu0 0.0
        %807 = vmatpush1.msra.mxu0 0.0
        %808 = vmatprep.subr.mxu0 0.0
        %809 = vmatpush1.msra.mxu0 0.0
        %810 = vmatprep.subr.mxu0 0.0
        %811 = vmatpush1.msra.mxu0 0.0
        %812 = vmatprep.subr.mxu0 0.0
        %813 = vmatpush1.msra.mxu0 0.0
        %814 = vmatprep.subr.mxu0 0.0
        %815 = vmatpush1.msra.mxu0 0.0
        %816 = vmatprep.subr.mxu0 0.0
        %817 = vmatpush1.msra.mxu0 0.0
        %818 = vmatprep.subr.mxu0 0.0
        %819 = vmatpush1.msra.mxu0 0.0
        %820 = vmatprep.subr.mxu0 0.0
        %821 = vmatpush1.msra.mxu0 0.0
        %822 = vmatprep.subr.mxu0 0.0
        %823 = vmatpush1.msra.mxu0 0.0
        %824 = vmatprep.subr.mxu0 0.0
        %825 = vmatpush1.msra.mxu0 0.0
        %826 = vmatprep.subr.mxu0 0.0
        %827 = vmatpush1.msra.mxu0 0.0
        %828 = vmatprep.subr.mxu0 0.0
        %829 = vmatpush1.msra.mxu0 0.0
        %830 = vmatprep.subr.mxu0 0.0
        %831 = vmatpush1.msra.mxu0 0.0
        %832 = vmatprep.subr.mxu0 0.0
        %833 = vmatpush1.msra.mxu0 %v607
        %834 = vmatprep.subr.mxu0 0.0
        %835 = vmatpush2.msra.mxu0 0.0
        %836 = vmatprep.subr.mxu0 0.0
        %837 = vmatpush2.msra.mxu0 0.0
        %838 = vmatprep.subr.mxu0 0.0
        %839 = vmatpush2.msra.mxu0 0.0
        %840 = vmatprep.subr.mxu0 0.0
        %841 = vmatpush2.msra.mxu0 0.0
        %842 = vmatprep.subr.mxu0 0.0
        %843 = vmatpush2.msra.mxu0 0.0
        %844 = vmatprep.subr.mxu0 0.0
        %845 = vmatpush2.msra.mxu0 0.0
        %846 = vmatprep.subr.mxu0 0.0
        %847 = vmatpush2.msra.mxu0 0.0
        %848 = vmatprep.subr.mxu0 0.0
        %849 = vmatpush2.msra.mxu0 0.0
        %850 = vmatprep.subr.mxu0 0.0
        %851 = vmatpush2.msra.mxu0 0.0
        %852 = vmatprep.subr.mxu0 0.0
        %853 = vmatpush2.msra.mxu0 0.0
        %854 = vmatprep.subr.mxu0 0.0
        %855 = vmatpush2.msra.mxu0 0.0
        %856 = vmatprep.subr.mxu0 0.0
        %857 = vmatpush2.msra.mxu0 0.0
        %858 = vmatprep.subr.mxu0 0.0
        %859 = vmatpush2.msra.mxu0 0.0
        %860 = vmatprep.subr.mxu0 0.0
        %861 = vmatpush2.msra.mxu0 0.0
        %862 = vmatprep.subr.mxu0 0.0
        %863 = vmatpush2.msra.mxu0 0.0
        %864 = vmatprep.subr.mxu0 0.0
        %865 = vmatpush2.msra.mxu0 0.0
        %866 = vmatprep.mubr.f32.mxu0 0.0
        %867 = vmatmul.mubr.f32.gmra.mxu0 %v800
        %v868 = vpop.f32.mrf.mxu0
        %v869 = vadd.f32 0.0, %v868
        %v870 = vpop.f32.mrf.mxu0
        %871 = vdwg.mxu0
        %v872 = vsel %vm655, %v515, 0
        %874 = vmatprep.subr.mxu0 0.0
        %875 = vmatpush1.msra.mxu0 0.0
        %876 = vmatprep.subr.mxu0 0.0
        %877 = vmatpush1.msra.mxu0 0.0
        %878 = vmatprep.subr.mxu0 0.0
        %879 = vmatpush1.msra.mxu0 0.0
        %880 = vmatprep.subr.mxu0 0.0
        %881 = vmatpush1.msra.mxu0 0.0
        %882 = vmatprep.subr.mxu0 0.0
        %883 = vmatpush1.msra.mxu0 0.0
        %884 = vmatprep.subr.mxu0 0.0
        %885 = vmatpush1.msra.mxu0 0.0
        %886 = vmatprep.subr.mxu0 0.0
        %887 = vmatpush1.msra.mxu0 0.0
        %888 = vmatprep.subr.mxu0 0.0
        %889 = vmatpush1.msra.mxu0 0.0
        %890 = vmatprep.subr.mxu0 0.0
        %891 = vmatpush1.msra.mxu0 0.0
        %892 = vmatprep.subr.mxu0 0.0
        %893 = vmatpush1.msra.mxu0 0.0
        %894 = vmatprep.subr.mxu0 0.0
        %895 = vmatpush1.msra.mxu0 0.0
        %896 = vmatprep.subr.mxu0 0.0
        %897 = vmatpush1.msra.mxu0 0.0
        %898 = vmatprep.subr.mxu0 0.0
        %899 = vmatpush1.msra.mxu0 0.0
        %900 = vmatprep.subr.mxu0 0.0
        %901 = vmatpush1.msra.mxu0 0.0
        %902 = vmatprep.subr.mxu0 0.0
        %903 = vmatpush1.msra.mxu0 0.0
        %904 = vmatprep.subr.mxu0 0.0
        %905 = vmatpush1.msra.mxu0 %v639
        %906 = vmatprep.subr.mxu0 0.0
        %907 = vmatpush2.msra.mxu0 0.0
        %908 = vmatprep.subr.mxu0 0.0
        %909 = vmatpush2.msra.mxu0 0.0
        %910 = vmatprep.subr.mxu0 0.0
        %911 = vmatpush2.msra.mxu0 0.0
        %912 = vmatprep.subr.mxu0 0.0
        %913 = vmatpush2.msra.mxu0 0.0
        %914 = vmatprep.subr.mxu0 0.0
        %915 = vmatpush2.msra.mxu0 0.0
        %916 = vmatprep.subr.mxu0 0.0
        %917 = vmatpush2.msra.mxu0 0.0
        %918 = vmatprep.subr.mxu0 0.0
        %919 = vmatpush2.msra.mxu0 0.0
        %920 = vmatprep.subr.mxu0 0.0
        %921 = vmatpush2.msra.mxu0 0.0
        %922 = vmatprep.subr.mxu0 0.0
        %923 = vmatpush2.msra.mxu0 0.0
        %924 = vmatprep.subr.mxu0 0.0
        %925 = vmatpush2.msra.mxu0 0.0
        %926 = vmatprep.subr.mxu0 0.0
        %927 = vmatpush2.msra.mxu0 0.0
        %928 = vmatprep.subr.mxu0 0.0
        %929 = vmatpush2.msra.mxu0 0.0
        %930 = vmatprep.subr.mxu0 0.0
        %931 = vmatpush2.msra.mxu0 0.0
        %932 = vmatprep.subr.mxu0 0.0
        %933 = vmatpush2.msra.mxu0 0.0
        %934 = vmatprep.subr.mxu0 0.0
        %935 = vmatpush2.msra.mxu0 0.0
        %936 = vmatprep.subr.mxu0 0.0
        %937 = vmatpush2.msra.mxu0 0.0
        %938 = vmatprep.mubr.f32.mxu0 0.0
        %939 = vmatmul.mubr.f32.gmra.mxu0 %v872
        %v940 = vpop.f32.mrf.mxu0
        %v941 = vadd.f32 0.0, %v940
        %v942 = vpop.f32.mrf.mxu0
        %943 = vdwg.mxu0
        %944 = vxpose.xlu0.b32.start [1/16] %v725, 128
        %945 = vxpose.xlu0.b32.cont [2/16] 0.0, 128
        %946 = vxpose.xlu0.b32.cont [3/16] 0.0, 128
        %947 = vxpose.xlu0.b32.cont [4/16] 0.0, 128
        %948 = vxpose.xlu0.b32.cont [5/16] 0.0, 128
        %949 = vxpose.xlu0.b32.cont [6/16] 0.0, 128
        %950 = vxpose.xlu0.b32.cont [7/16] 0.0, 128
        %951 = vxpose.xlu0.b32.cont [8/16] 0.0, 128
        %952 = vxpose.xlu0.b32.cont [9/16] 0.0, 128
        %953 = vxpose.xlu0.b32.cont [10/16] 0.0, 128
        %954 = vxpose.xlu0.b32.cont [11/16] 0.0, 128
        %955 = vxpose.xlu0.b32.cont [12/16] 0.0, 128
        %956 = vxpose.xlu0.b32.cont [13/16] 0.0, 128
        %957 = vxpose.xlu0.b32.cont [14/16] 0.0, 128
        %958 = vxpose.xlu0.b32.cont [15/16] 0.0, 128
        %959 = vxpose.xlu0.b32.end [16/16] 0.0, 128
        %v960 = vpop.trf.xlu0
        %v961 = vpop.trf.xlu0
        %v962 = vpop.trf.xlu0
        %v963 = vpop.trf.xlu0
        %v964 = vpop.trf.xlu0
        %v965 = vpop.trf.xlu0
        %v966 = vpop.trf.xlu0
        %v967 = vpop.trf.xlu0
        %v968 = vpop.trf.xlu0
        %v969 = vpop.trf.xlu0
        %v970 = vpop.trf.xlu0
        %v971 = vpop.trf.xlu0
        %v972 = vpop.trf.xlu0
        %v973 = vpop.trf.xlu0
        %v974 = vpop.trf.xlu0
        %v975 = vpop.trf.xlu0
        %976 = vxpose.xlu0.b32.start [1/16] %v797, 128
        %977 = vxpose.xlu0.b32.cont [2/16] 0.0, 128
        %978 = vxpose.xlu0.b32.cont [3/16] 0.0, 128
        %979 = vxpose.xlu0.b32.cont [4/16] 0.0, 128
        %980 = vxpose.xlu0.b32.cont [5/16] 0.0, 128
        %981 = vxpose.xlu0.b32.cont [6/16] 0.0, 128
        %982 = vxpose.xlu0.b32.cont [7/16] 0.0, 128
        %983 = vxpose.xlu0.b32.cont [8/16] 0.0, 128
        %984 = vxpose.xlu0.b32.cont [9/16] 0.0, 128
        %985 = vxpose.xlu0.b32.cont [10/16] 0.0, 128
        %986 = vxpose.xlu0.b32.cont [11/16] 0.0, 128
        %987 = vxpose.xlu0.b32.cont [12/16] 0.0, 128
        %988 = vxpose.xlu0.b32.cont [13/16] 0.0, 128
        %989 = vxpose.xlu0.b32.cont [14/16] 0.0, 128
        %990 = vxpose.xlu0.b32.cont [15/16] 0.0, 128
        %991 = vxpose.xlu0.b32.end [16/16] 0.0, 128
        %v992 = vpop.trf.xlu0
        %v993 = vpop.trf.xlu0
        %v994 = vpop.trf.xlu0
        %v995 = vpop.trf.xlu0
        %v996 = vpop.trf.xlu0
        %v997 = vpop.trf.xlu0
        %v998 = vpop.trf.xlu0
        %v999 = vpop.trf.xlu0
        %v1000 = vpop.trf.xlu0
        %v1001 = vpop.trf.xlu0
        %v1002 = vpop.trf.xlu0
        %v1003 = vpop.trf.xlu0
        %v1004 = vpop.trf.xlu0
        %v1005 = vpop.trf.xlu0
        %v1006 = vpop.trf.xlu0
        %v1007 = vpop.trf.xlu0
        %1008 = vxpose.xlu0.b32.start [1/16] %v869, 128
        %1009 = vxpose.xlu0.b32.cont [2/16] 0.0, 128
        %1010 = vxpose.xlu0.b32.cont [3/16] 0.0, 128
        %1011 = vxpose.xlu0.b32.cont [4/16] 0.0, 128
        %1012 = vxpose.xlu0.b32.cont [5/16] 0.0, 128
        %1013 = vxpose.xlu0.b32.cont [6/16] 0.0, 128
        %1014 = vxpose.xlu0.b32.cont [7/16] 0.0, 128
        %1015 = vxpose.xlu0.b32.cont [8/16] 0.0, 128
        %1016 = vxpose.xlu0.b32.cont [9/16] 0.0, 128
        %1017 = vxpose.xlu0.b32.cont [10/16] 0.0, 128
        %1018 = vxpose.xlu0.b32.cont [11/16] 0.0, 128
        %1019 = vxpose.xlu0.b32.cont [12/16] 0.0, 128
        %1020 = vxpose.xlu0.b32.cont [13/16] 0.0, 128
        %1021 = vxpose.xlu0.b32.cont [14/16] 0.0, 128
        %1022 = vxpose.xlu0.b32.cont [15/16] 0.0, 128
        %1023 = vxpose.xlu0.b32.end [16/16] 0.0, 128
        %v1024 = vpop.trf.xlu0
        %v1025 = vpop.trf.xlu0
        %v1026 = vpop.trf.xlu0
        %v1027 = vpop.trf.xlu0
        %v1028 = vpop.trf.xlu0
        %v1029 = vpop.trf.xlu0
        %v1030 = vpop.trf.xlu0
        %v1031 = vpop.trf.xlu0
        %v1032 = vpop.trf.xlu0
        %v1033 = vpop.trf.xlu0
        %v1034 = vpop.trf.xlu0
        %v1035 = vpop.trf.xlu0
        %v1036 = vpop.trf.xlu0
        %v1037 = vpop.trf.xlu0
        %v1038 = vpop.trf.xlu0
        %v1039 = vpop.trf.xlu0
        %1040 = vxpose.xlu0.b32.start [1/16] %v941, 128
        %1041 = vxpose.xlu0.b32.cont [2/16] 0.0, 128
        %1042 = vxpose.xlu0.b32.cont [3/16] 0.0, 128
        %1043 = vxpose.xlu0.b32.cont [4/16] 0.0, 128
        %1044 = vxpose.xlu0.b32.cont [5/16] 0.0, 128
        %1045 = vxpose.xlu0.b32.cont [6/16] 0.0, 128
        %1046 = vxpose.xlu0.b32.cont [7/16] 0.0, 128
        %1047 = vxpose.xlu0.b32.cont [8/16] 0.0, 128
        %1048 = vxpose.xlu0.b32.cont [9/16] 0.0, 128
        %1049 = vxpose.xlu0.b32.cont [10/16] 0.0, 128
        %1050 = vxpose.xlu0.b32.cont [11/16] 0.0, 128
        %1051 = vxpose.xlu0.b32.cont [12/16] 0.0, 128
        %1052 = vxpose.xlu0.b32.cont [13/16] 0.0, 128
        %1053 = vxpose.xlu0.b32.cont [14/16] 0.0, 128
        %1054 = vxpose.xlu0.b32.cont [15/16] 0.0, 128
        %1055 = vxpose.xlu0.b32.end [16/16] 0.0, 128
        %v1056 = vpop.trf.xlu0
        %v1057 = vpop.trf.xlu0
        %v1058 = vpop.trf.xlu0
        %v1059 = vpop.trf.xlu0
        %v1060 = vpop.trf.xlu0
        %v1061 = vpop.trf.xlu0
        %v1062 = vpop.trf.xlu0
        %v1063 = vpop.trf.xlu0
        %v1064 = vpop.trf.xlu0
        %v1065 = vpop.trf.xlu0
        %v1066 = vpop.trf.xlu0
        %v1067 = vpop.trf.xlu0
        %v1068 = vpop.trf.xlu0
        %v1069 = vpop.trf.xlu0
        %v1070 = vpop.trf.xlu0
        %v1071 = vpop.trf.xlu0
        %v1072 = vcombine.low %v960, %v1024
        %v1073 = vcombine.high %v960, %v1024
        %v1075 = vunpack.c.l.s4 1983009808
        %v1076 = vunpack.c.0.s8 %v1075
        %v1077 = vlaneseq
        %v1078 = vshrl.u32 %v1077, 7
        %v1079 = vsub.s32 %v1076, %v1078
        %v1080 = vrot.slane %v1072, %v1079
        %v1082 = vunpack.c.l.s4 1983009808
        %v1083 = vunpack.c.0.s8 %v1082
        %v1084 = vlaneseq
        %v1085 = vshrl.u32 %v1084, 7
        %v1086 = vsub.s32 %v1083, %v1085
        %v1087 = vrot.slane %v1073, %v1086
        %v1088 = vcombine.low %v992, %v1056
        %v1089 = vcombine.high %v992, %v1056
        %v1091 = vunpack.c.l.s4 1983009808
        %v1092 = vunpack.c.0.s8 %v1091
        %v1093 = vlaneseq
        %v1094 = vshrl.u32 %v1093, 7
        %v1095 = vsub.s32 %v1092, %v1094
        %v1096 = vrot.slane %v1088, %v1095
        %v1098 = vunpack.c.l.s4 1983009808
        %v1099 = vunpack.c.0.s8 %v1098
        %v1100 = vlaneseq
        %v1101 = vshrl.u32 %v1100, 7
        %v1102 = vsub.s32 %v1099, %v1101
        %v1103 = vrot.slane %v1089, %v1102
        %v1104 = vcombine.low %v1080, %v1096
        %v1105 = vcombine.high %v1080, %v1096
        %v1107 = vunpack.c.l.s4 1934713408
        %v1108 = vunpack.c.0.s8 %v1107
        %v1109 = vlaneseq
        %v1110 = vshrl.u32 %v1109, 7
        %v1111 = vsub.s32 %v1108, %v1110
        %v1112 = vrot.slane %v1104, %v1111
        %v1114 = vunpack.c.l.s4 1934713408
        %v1115 = vunpack.c.0.s8 %v1114
        %v1116 = vlaneseq
        %v1117 = vshrl.u32 %v1116, 7
        %v1118 = vsub.s32 %v1115, %v1117
        %v1119 = vrot.slane %v1105, %v1118
        %v1120 = vcombine.low %v1087, %v1103
        %v1121 = vcombine.high %v1087, %v1103
        %v1123 = vunpack.c.l.s4 1934713408
        %v1124 = vunpack.c.0.s8 %v1123
        %v1125 = vlaneseq
        %v1126 = vshrl.u32 %v1125, 7
        %v1127 = vsub.s32 %v1124, %v1126
        %v1128 = vrot.slane %v1120, %v1127
        %v1130 = vunpack.c.l.s4 1934713408
        %v1131 = vunpack.c.0.s8 %v1130
        %v1132 = vlaneseq
        %v1133 = vshrl.u32 %v1132, 7
        %v1134 = vsub.s32 %v1131, %v1133
        %v1135 = vrot.slane %v1121, %v1134
        %v1136 = vcombine.high %v1112, 0.0
        %v1137 = vcombine.high %v1119, 0.0
        %v1138 = vcombine.high %v1128, 0.0
        %v1139 = vcombine.high %v1135, 0.0
        %v1140 = vcombine.low %v961, %v1025
        %v1141 = vcombine.high %v961, %v1025
        %v1143 = vunpack.c.l.s4 1983009808
        %v1144 = vunpack.c.0.s8 %v1143
        %v1145 = vlaneseq
        %v1146 = vshrl.u32 %v1145, 7
        %v1147 = vsub.s32 %v1144, %v1146
        %v1148 = vrot.slane %v1140, %v1147
        %v1150 = vunpack.c.l.s4 1983009808
        %v1151 = vunpack.c.0.s8 %v1150
        %v1152 = vlaneseq
        %v1153 = vshrl.u32 %v1152, 7
        %v1154 = vsub.s32 %v1151, %v1153
        %v1155 = vrot.slane %v1141, %v1154
        %v1156 = vcombine.low %v993, %v1057
        %v1157 = vcombine.high %v993, %v1057
        %v1159 = vunpack.c.l.s4 1983009808
        %v1160 = vunpack.c.0.s8 %v1159
        %v1161 = vlaneseq
        %v1162 = vshrl.u32 %v1161, 7
        %v1163 = vsub.s32 %v1160, %v1162
        %v1164 = vrot.slane %v1156, %v1163
        %v1166 = vunpack.c.l.s4 1983009808
        %v1167 = vunpack.c.0.s8 %v1166
        %v1168 = vlaneseq
        %v1169 = vshrl.u32 %v1168, 7
        %v1170 = vsub.s32 %v1167, %v1169
        %v1171 = vrot.slane %v1157, %v1170
        %v1172 = vcombine.low %v1148, %v1164
        %v1173 = vcombine.high %v1148, %v1164
        %v1175 = vunpack.c.l.s4 1934713408
        %v1176 = vunpack.c.0.s8 %v1175
        %v1177 = vlaneseq
        %v1178 = vshrl.u32 %v1177, 7
        %v1179 = vsub.s32 %v1176, %v1178
        %v1180 = vrot.slane %v1172, %v1179
        %v1182 = vunpack.c.l.s4 1934713408
        %v1183 = vunpack.c.0.s8 %v1182
        %v1184 = vlaneseq
        %v1185 = vshrl.u32 %v1184, 7
        %v1186 = vsub.s32 %v1183, %v1185
        %v1187 = vrot.slane %v1173, %v1186
        %v1188 = vcombine.low %v1155, %v1171
        %v1189 = vcombine.high %v1155, %v1171
        %v1191 = vunpack.c.l.s4 1934713408
        %v1192 = vunpack.c.0.s8 %v1191
        %v1193 = vlaneseq
        %v1194 = vshrl.u32 %v1193, 7
        %v1195 = vsub.s32 %v1192, %v1194
        %v1196 = vrot.slane %v1188, %v1195
        %v1198 = vunpack.c.l.s4 1934713408
        %v1199 = vunpack.c.0.s8 %v1198
        %v1200 = vlaneseq
        %v1201 = vshrl.u32 %v1200, 7
        %v1202 = vsub.s32 %v1199, %v1201
        %v1203 = vrot.slane %v1189, %v1202
        %v1204 = vcombine.high %v1180, 0.0
        %v1205 = vcombine.high %v1187, 0.0
        %v1206 = vcombine.high %v1196, 0.0
        %v1207 = vcombine.high %v1203, 0.0
        %v1208 = vmul.f32 %v1112, 0.35355338
        %v1209 = vmul.f32 %v1136, 0.35355338
        %v1210 = vmul.f32 %v1119, 0.35355338
        %v1211 = vmul.f32 %v1137, 0.35355338
        %v1212 = vmul.f32 %v1128, 0.35355338
        %v1213 = vmul.f32 %v1138, 0.35355338
        %v1214 = vmul.f32 %v1135, 0.35355338
        %v1215 = vmul.f32 %v1139, 0.35355338
        %v1216 = vmul.f32 %v1180, 0.35355338
        %v1217 = vmul.f32 %v1204, 0.35355338
        %v1218 = vmul.f32 %v1187, 0.35355338
        %v1219 = vmul.f32 %v1205, 0.35355338
        %v1220 = vmul.f32 %v1196, 0.35355338
        %v1221 = vmul.f32 %v1206, 0.35355338
        %v1222 = vmul.f32 %v1203, 0.35355338
        %v1223 = vmul.f32 %v1207, 0.35355338
        %vm1224 = vcmask 60416
        %v1225 = vsel %vm1224, %v1208, -inf
        %1226 = vmax.xlane.f32.xlu0 %v1225
        %v1227 = vpop.xlane.xlu0 %1226
        %v1228 = vsel %vm1224, %v1209, -inf
        %1229 = vmax.xlane.f32.xlu0 %v1228
        %v1230 = vpop.xlane.xlu0 %1229
        %v1231 = vsel %vm1224, %v1210, -inf
        %1232 = vmax.xlane.f32.xlu0 %v1231
        %v1233 = vpop.xlane.xlu0 %1232
        %v1234 = vsel %vm1224, %v1211, -inf
        %1235 = vmax.xlane.f32.xlu0 %v1234
        %v1236 = vpop.xlane.xlu0 %1235
        %v1237 = vsel %vm1224, %v1212, -inf
        %1238 = vmax.xlane.f32.xlu0 %v1237
        %v1239 = vpop.xlane.xlu0 %1238
        %v1240 = vsel %vm1224, %v1213, -inf
        %1241 = vmax.xlane.f32.xlu0 %v1240
        %v1242 = vpop.xlane.xlu0 %1241
        %v1243 = vsel %vm1224, %v1214, -inf
        %1244 = vmax.xlane.f32.xlu0 %v1243
        %v1245 = vpop.xlane.xlu0 %1244
        %v1246 = vsel %vm1224, %v1215, -inf
        %1247 = vmax.xlane.f32.xlu0 %v1246
        %v1248 = vpop.xlane.xlu0 %1247
        %v1249 = vsel %vm1224, %v1216, -inf
        %1250 = vmax.xlane.f32.xlu0 %v1249
        %v1251 = vpop.xlane.xlu0 %1250
        %v1252 = vsel %vm1224, %v1217, -inf
        %1253 = vmax.xlane.f32.xlu0 %v1252
        %v1254 = vpop.xlane.xlu0 %1253
        %v1255 = vsel %vm1224, %v1218, -inf
        %1256 = vmax.xlane.f32.xlu0 %v1255
        %v1257 = vpop.xlane.xlu0 %1256
        %v1258 = vsel %vm1224, %v1219, -inf
        %1259 = vmax.xlane.f32.xlu0 %v1258
        %v1260 = vpop.xlane.xlu0 %1259
        %v1261 = vsel %vm1224, %v1220, -inf
        %1262 = vmax.xlane.f32.xlu0 %v1261
        %v1263 = vpop.xlane.xlu0 %1262
        %v1264 = vsel %vm1224, %v1221, -inf
        %1265 = vmax.xlane.f32.xlu0 %v1264
        %v1266 = vpop.xlane.xlu0 %1265
        %v1267 = vsel %vm1224, %v1222, -inf
        %1268 = vmax.xlane.f32.xlu0 %v1267
        %v1269 = vpop.xlane.xlu0 %1268
        %v1270 = vsel %vm1224, %v1223, -inf
        %1271 = vmax.xlane.f32.xlu0 %v1270
        %v1272 = vpop.xlane.xlu0 %1271
        %v1273 = vsub.f32 %v1208, %v1227
        %v1274 = vsub.f32 %v1209, %v1230
        %v1275 = vsub.f32 %v1210, %v1233
        %v1276 = vsub.f32 %v1211, %v1236
        %v1277 = vsub.f32 %v1212, %v1239
        %v1278 = vsub.f32 %v1213, %v1242
        %v1279 = vsub.f32 %v1214, %v1245
        %v1280 = vsub.f32 %v1215, %v1248
        %v1281 = vsub.f32 %v1216, %v1251
        %v1282 = vsub.f32 %v1217, %v1254
        %v1283 = vsub.f32 %v1218, %v1257
        %v1284 = vsub.f32 %v1219, %v1260
        %v1285 = vsub.f32 %v1220, %v1263
        %v1286 = vsub.f32 %v1221, %v1266
        %v1287 = vsub.f32 %v1222, %v1269
        %v1288 = vsub.f32 %v1223, %v1272
        %v1289 = vmul.f32 %v1273, 1.442695
        %v1290 = vpow.pop %v1289
        %v1291 = vmul.f32 %v1274, 1.442695
        %v1292 = vpow.pop %v1291
        %v1293 = vmul.f32 %v1275, 1.442695
        %v1294 = vpow.pop %v1293
        %v1295 = vmul.f32 %v1276, 1.442695
        %v1296 = vpow.pop %v1295
        %v1297 = vmul.f32 %v1277, 1.442695
        %v1298 = vpow.pop %v1297
        %v1299 = vmul.f32 %v1278, 1.442695
        %v1300 = vpow.pop %v1299
        %v1301 = vmul.f32 %v1279, 1.442695
        %v1302 = vpow.pop %v1301
        %v1303 = vmul.f32 %v1280, 1.442695
        %v1304 = vpow.pop %v1303
        %v1305 = vmul.f32 %v1281, 1.442695
        %v1306 = vpow.pop %v1305
        %v1307 = vmul.f32 %v1282, 1.442695
        %v1308 = vpow.pop %v1307
        %v1309 = vmul.f32 %v1283, 1.442695
        %v1310 = vpow.pop %v1309
        %v1311 = vmul.f32 %v1284, 1.442695
        %v1312 = vpow.pop %v1311
        %v1313 = vmul.f32 %v1285, 1.442695
        %v1314 = vpow.pop %v1313
        %v1315 = vmul.f32 %v1286, 1.442695
        %v1316 = vpow.pop %v1315
        %v1317 = vmul.f32 %v1287, 1.442695
        %v1318 = vpow.pop %v1317
        %v1319 = vmul.f32 %v1288, 1.442695
        %v1320 = vpow.pop %v1319
        %v1321 = vsel %vm1224, %v1290, 0.0
        %1322 = vadd.xlane.f32.xlu0 %v1321
        %v1323 = vpop.xlane.xlu0 %1322
        %v1324 = vsel %vm1224, %v1292, 0.0
        %1325 = vadd.xlane.f32.xlu0 %v1324
        %v1326 = vpop.xlane.xlu0 %1325
        %v1327 = vsel %vm1224, %v1294, 0.0
        %1328 = vadd.xlane.f32.xlu0 %v1327
        %v1329 = vpop.xlane.xlu0 %1328
        %v1330 = vsel %vm1224, %v1296, 0.0
        %1331 = vadd.xlane.f32.xlu0 %v1330
        %v1332 = vpop.xlane.xlu0 %1331
        %v1333 = vsel %vm1224, %v1298, 0.0
        %1334 = vadd.xlane.f32.xlu0 %v1333
        %v1335 = vpop.xlane.xlu0 %1334
        %v1336 = vsel %vm1224, %v1300, 0.0
        %1337 = vadd.xlane.f32.xlu0 %v1336
        %v1338 = vpop.xlane.xlu0 %1337
        %v1339 = vsel %vm1224, %v1302, 0.0
        %1340 = vadd.xlane.f32.xlu0 %v1339
        %v1341 = vpop.xlane.xlu0 %1340
        %v1342 = vsel %vm1224, %v1304, 0.0
        %1343 = vadd.xlane.f32.xlu0 %v1342
        %v1344 = vpop.xlane.xlu0 %1343
        %v1345 = vsel %vm1224, %v1306, 0.0
        %1346 = vadd.xlane.f32.xlu0 %v1345
        %v1347 = vpop.xlane.xlu0 %1346
        %v1348 = vsel %vm1224, %v1308, 0.0
        %1349 = vadd.xlane.f32.xlu0 %v1348
        %v1350 = vpop.xlane.xlu0 %1349
        %v1351 = vsel %vm1224, %v1310, 0.0
        %1352 = vadd.xlane.f32.xlu0 %v1351
        %v1353 = vpop.xlane.xlu0 %1352
        %v1354 = vsel %vm1224, %v1312, 0.0
        %1355 = vadd.xlane.f32.xlu0 %v1354
        %v1356 = vpop.xlane.xlu0 %1355
        %v1357 = vsel %vm1224, %v1314, 0.0
        %1358 = vadd.xlane.f32.xlu0 %v1357
        %v1359 = vpop.xlane.xlu0 %1358
        %v1360 = vsel %vm1224, %v1316, 0.0
        %1361 = vadd.xlane.f32.xlu0 %v1360
        %v1362 = vpop.xlane.xlu0 %1361
        %v1363 = vsel %vm1224, %v1318, 0.0
        %1364 = vadd.xlane.f32.xlu0 %v1363
        %v1365 = vpop.xlane.xlu0 %1364
        %v1366 = vsel %vm1224, %v1320, 0.0
        %1367 = vadd.xlane.f32.xlu0 %v1366
        %v1368 = vpop.xlane.xlu0 %1367
        %v1369 = vrcp.pop %v1323
        %v1370 = vmul.f32 %v1290, %v1369
        %v1371 = vrcp.pop %v1326
        %v1372 = vmul.f32 %v1292, %v1371
        %v1373 = vrcp.pop %v1329
        %v1374 = vmul.f32 %v1294, %v1373
        %v1375 = vrcp.pop %v1332
        %v1376 = vmul.f32 %v1296, %v1375
        %v1377 = vrcp.pop %v1335
        %v1378 = vmul.f32 %v1298, %v1377
        %v1379 = vrcp.pop %v1338
        %v1380 = vmul.f32 %v1300, %v1379
        %v1381 = vrcp.pop %v1341
        %v1382 = vmul.f32 %v1302, %v1381
        %v1383 = vrcp.pop %v1344
        %v1384 = vmul.f32 %v1304, %v1383
        %v1385 = vrcp.pop %v1347
        %v1386 = vmul.f32 %v1306, %v1385
        %v1387 = vrcp.pop %v1350
        %v1388 = vmul.f32 %v1308, %v1387
        %v1389 = vrcp.pop %v1353
        %v1390 = vmul.f32 %v1310, %v1389
        %v1391 = vrcp.pop %v1356
        %v1392 = vmul.f32 %v1312, %v1391
        %v1393 = vrcp.pop %v1359
        %v1394 = vmul.f32 %v1314, %v1393
        %v1395 = vrcp.pop %v1362
        %v1396 = vmul.f32 %v1316, %v1395
        %v1397 = vrcp.pop %v1365
        %v1398 = vmul.f32 %v1318, %v1397
        %v1399 = vrcp.pop %v1368
        %v1400 = vmul.f32 %v1320, %v1399
        %1401 = vxpose.xlu0.b32.start [1/16] %v516, 128
        %1402 = vxpose.xlu0.b32.cont [2/16] 0.0, 128
        %1403 = vxpose.xlu0.b32.cont [3/16] 0.0, 128
        %1404 = vxpose.xlu0.b32.cont [4/16] 0.0, 128
        %1405 = vxpose.xlu0.b32.cont [5/16] 0.0, 128
        %1406 = vxpose.xlu0.b32.cont [6/16] 0.0, 128
        %1407 = vxpose.xlu0.b32.cont [7/16] 0.0, 128
        %1408 = vxpose.xlu0.b32.cont [8/16] 0.0, 128
        %1409 = vxpose.xlu0.b32.cont [9/16] 0.0, 128
        %1410 = vxpose.xlu0.b32.cont [10/16] 0.0, 128
        %1411 = vxpose.xlu0.b32.cont [11/16] 0.0, 128
        %1412 = vxpose.xlu0.b32.cont [12/16] 0.0, 128
        %1413 = vxpose.xlu0.b32.cont [13/16] 0.0, 128
        %1414 = vxpose.xlu0.b32.cont [14/16] 0.0, 128
        %1415 = vxpose.xlu0.b32.cont [15/16] 0.0, 128
        %1416 = vxpose.xlu0.b32.end [16/16] 0.0, 128
        %v1417 = vpop.trf.xlu0
        %v1418 = vpop.trf.xlu0
        %v1419 = vpop.trf.xlu0
        %v1420 = vpop.trf.xlu0
        %v1421 = vpop.trf.xlu0
        %v1422 = vpop.trf.xlu0
        %v1423 = vpop.trf.xlu0
        %v1424 = vpop.trf.xlu0
        %v1425 = vpop.trf.xlu0
        %v1426 = vpop.trf.xlu0
        %v1427 = vpop.trf.xlu0
        %v1428 = vpop.trf.xlu0
        %v1429 = vpop.trf.xlu0
        %v1430 = vpop.trf.xlu0
        %v1431 = vpop.trf.xlu0
        %v1432 = vpop.trf.xlu0
        %1433 = vxpose.xlu0.b32.start [1/16] %v519, 128
        %1434 = vxpose.xlu0.b32.cont [2/16] 0.0, 128
        %1435 = vxpose.xlu0.b32.cont [3/16] 0.0, 128
        %1436 = vxpose.xlu0.b32.cont [4/16] 0.0, 128
        %1437 = vxpose.xlu0.b32.cont [5/16] 0.0, 128
        %1438 = vxpose.xlu0.b32.cont [6/16] 0.0, 128
        %1439 = vxpose.xlu0.b32.cont [7/16] 0.0, 128
        %1440 = vxpose.xlu0.b32.cont [8/16] 0.0, 128
        %1441 = vxpose.xlu0.b32.cont [9/16] 0.0, 128
        %1442 = vxpose.xlu0.b32.cont [10/16] 0.0, 128
        %1443 = vxpose.xlu0.b32.cont [11/16] 0.0, 128
        %1444 = vxpose.xlu0.b32.cont [12/16] 0.0, 128
        %1445 = vxpose.xlu0.b32.cont [13/16] 0.0, 128
        %1446 = vxpose.xlu0.b32.cont [14/16] 0.0, 128
        %1447 = vxpose.xlu0.b32.cont [15/16] 0.0, 128
        %1448 = vxpose.xlu0.b32.end [16/16] 0.0, 128
        %v1449 = vpop.trf.xlu0
        %v1450 = vpop.trf.xlu0
        %v1451 = vpop.trf.xlu0
        %v1452 = vpop.trf.xlu0
        %v1453 = vpop.trf.xlu0
        %v1454 = vpop.trf.xlu0
        %v1455 = vpop.trf.xlu0
        %v1456 = vpop.trf.xlu0
        %v1457 = vpop.trf.xlu0
        %v1458 = vpop.trf.xlu0
        %v1459 = vpop.trf.xlu0
        %v1460 = vpop.trf.xlu0
        %v1461 = vpop.trf.xlu0
        %v1462 = vpop.trf.xlu0
        %v1463 = vpop.trf.xlu0
        %v1464 = vpop.trf.xlu0
        %1465 = vxpose.xlu0.b32.start [1/16] %v522, 128
        %1466 = vxpose.xlu0.b32.cont [2/16] 0.0, 128
        %1467 = vxpose.xlu0.b32.cont [3/16] 0.0, 128
        %1468 = vxpose.xlu0.b32.cont [4/16] 0.0, 128
        %1469 = vxpose.xlu0.b32.cont [5/16] 0.0, 128
        %1470 = vxpose.xlu0.b32.cont [6/16] 0.0, 128
        %1471 = vxpose.xlu0.b32.cont [7/16] 0.0, 128
        %1472 = vxpose.xlu0.b32.cont [8/16] 0.0, 128
        %1473 = vxpose.xlu0.b32.cont [9/16] 0.0, 128
        %1474 = vxpose.xlu0.b32.cont [10/16] 0.0, 128
        %1475 = vxpose.xlu0.b32.cont [11/16] 0.0, 128
        %1476 = vxpose.xlu0.b32.cont [12/16] 0.0, 128
        %1477 = vxpose.xlu0.b32.cont [13/16] 0.0, 128
        %1478 = vxpose.xlu0.b32.cont [14/16] 0.0, 128
        %1479 = vxpose.xlu0.b32.cont [15/16] 0.0, 128
        %1480 = vxpose.xlu0.b32.end [16/16] 0.0, 128
        %v1481 = vpop.trf.xlu0
        %v1482 = vpop.trf.xlu0
        %v1483 = vpop.trf.xlu0
        %v1484 = vpop.trf.xlu0
        %v1485 = vpop.trf.xlu0
        %v1486 = vpop.trf.xlu0
        %v1487 = vpop.trf.xlu0
        %v1488 = vpop.trf.xlu0
        %v1489 = vpop.trf.xlu0
        %v1490 = vpop.trf.xlu0
        %v1491 = vpop.trf.xlu0
        %v1492 = vpop.trf.xlu0
        %v1493 = vpop.trf.xlu0
        %v1494 = vpop.trf.xlu0
        %v1495 = vpop.trf.xlu0
        %v1496 = vpop.trf.xlu0
        %1497 = vxpose.xlu0.b32.start [1/16] %v525, 128
        %1498 = vxpose.xlu0.b32.cont [2/16] 0.0, 128
        %1499 = vxpose.xlu0.b32.cont [3/16] 0.0, 128
        %1500 = vxpose.xlu0.b32.cont [4/16] 0.0, 128
        %1501 = vxpose.xlu0.b32.cont [5/16] 0.0, 128
        %1502 = vxpose.xlu0.b32.cont [6/16] 0.0, 128
        %1503 = vxpose.xlu0.b32.cont [7/16] 0.0, 128
        %1504 = vxpose.xlu0.b32.cont [8/16] 0.0, 128
        %1505 = vxpose.xlu0.b32.cont [9/16] 0.0, 128
        %1506 = vxpose.xlu0.b32.cont [10/16] 0.0, 128
        %1507 = vxpose.xlu0.b32.cont [11/16] 0.0, 128
        %1508 = vxpose.xlu0.b32.cont [12/16] 0.0, 128
        %1509 = vxpose.xlu0.b32.cont [13/16] 0.0, 128
        %1510 = vxpose.xlu0.b32.cont [14/16] 0.0, 128
        %1511 = vxpose.xlu0.b32.cont [15/16] 0.0, 128
        %1512 = vxpose.xlu0.b32.end [16/16] 0.0, 128
        %v1513 = vpop.trf.xlu0
        %v1514 = vpop.trf.xlu0
        %v1515 = vpop.trf.xlu0
        %v1516 = vpop.trf.xlu0
        %v1517 = vpop.trf.xlu0
        %v1518 = vpop.trf.xlu0
        %v1519 = vpop.trf.xlu0
        %v1520 = vpop.trf.xlu0
        %v1521 = vpop.trf.xlu0
        %v1522 = vpop.trf.xlu0
        %v1523 = vpop.trf.xlu0
        %v1524 = vpop.trf.xlu0
        %v1525 = vpop.trf.xlu0
        %v1526 = vpop.trf.xlu0
        %v1527 = vpop.trf.xlu0
        %v1528 = vpop.trf.xlu0
        %1529 = vxpose.xlu0.b32.start [1/16] %v1370, 128
        %1530 = vxpose.xlu0.b32.cont [2/16] 0.0, 128
        %1531 = vxpose.xlu0.b32.cont [3/16] 0.0, 128
        %1532 = vxpose.xlu0.b32.cont [4/16] 0.0, 128
        %1533 = vxpose.xlu0.b32.cont [5/16] 0.0, 128
        %1534 = vxpose.xlu0.b32.cont [6/16] 0.0, 128
        %1535 = vxpose.xlu0.b32.cont [7/16] 0.0, 128
        %1536 = vxpose.xlu0.b32.cont [8/16] 0.0, 128
        %1537 = vxpose.xlu0.b32.cont [9/16] 0.0, 128
        %1538 = vxpose.xlu0.b32.cont [10/16] 0.0, 128
        %1539 = vxpose.xlu0.b32.cont [11/16] 0.0, 128
        %1540 = vxpose.xlu0.b32.cont [12/16] 0.0, 128
        %1541 = vxpose.xlu0.b32.cont [13/16] 0.0, 128
        %1542 = vxpose.xlu0.b32.cont [14/16] 0.0, 128
        %1543 = vxpose.xlu0.b32.cont [15/16] 0.0, 128
        %1544 = vxpose.xlu0.b32.end [16/16] 0.0, 128
        %v1545 = vpop.trf.xlu0
        %v1546 = vpop.trf.xlu0
        %v1547 = vpop.trf.xlu0
        %v1548 = vpop.trf.xlu0
        %v1549 = vpop.trf.xlu0
        %v1550 = vpop.trf.xlu0
        %v1551 = vpop.trf.xlu0
        %v1552 = vpop.trf.xlu0
        %v1553 = vpop.trf.xlu0
        %v1554 = vpop.trf.xlu0
        %v1555 = vpop.trf.xlu0
        %v1556 = vpop.trf.xlu0
        %v1557 = vpop.trf.xlu0
        %v1558 = vpop.trf.xlu0
        %v1559 = vpop.trf.xlu0
        %v1560 = vpop.trf.xlu0
        %1561 = vxpose.xlu0.b32.start [1/16] %v1372, 128
        %1562 = vxpose.xlu0.b32.cont [2/16] 0.0, 128
        %1563 = vxpose.xlu0.b32.cont [3/16] 0.0, 128
        %1564 = vxpose.xlu0.b32.cont [4/16] 0.0, 128
        %1565 = vxpose.xlu0.b32.cont [5/16] 0.0, 128
        %1566 = vxpose.xlu0.b32.cont [6/16] 0.0, 128
        %1567 = vxpose.xlu0.b32.cont [7/16] 0.0, 128
        %1568 = vxpose.xlu0.b32.cont [8/16] 0.0, 128
        %1569 = vxpose.xlu0.b32.cont [9/16] 0.0, 128
        %1570 = vxpose.xlu0.b32.cont [10/16] 0.0, 128
        %1571 = vxpose.xlu0.b32.cont [11/16] 0.0, 128
        %1572 = vxpose.xlu0.b32.cont [12/16] 0.0, 128
        %1573 = vxpose.xlu0.b32.cont [13/16] 0.0, 128
        %1574 = vxpose.xlu0.b32.cont [14/16] 0.0, 128
        %1575 = vxpose.xlu0.b32.cont [15/16] 0.0, 128
        %1576 = vxpose.xlu0.b32.end [16/16] 0.0, 128
        %v1577 = vpop.trf.xlu0
        %v1578 = vpop.trf.xlu0
        %v1579 = vpop.trf.xlu0
        %v1580 = vpop.trf.xlu0
        %v1581 = vpop.trf.xlu0
        %v1582 = vpop.trf.xlu0
        %v1583 = vpop.trf.xlu0
        %v1584 = vpop.trf.xlu0
        %v1585 = vpop.trf.xlu0
        %v1586 = vpop.trf.xlu0
        %v1587 = vpop.trf.xlu0
        %v1588 = vpop.trf.xlu0
        %v1589 = vpop.trf.xlu0
        %v1590 = vpop.trf.xlu0
        %v1591 = vpop.trf.xlu0
        %v1592 = vpop.trf.xlu0
        %1593 = vxpose.xlu0.b32.start [1/16] %v1374, 128
        %1594 = vxpose.xlu0.b32.cont [2/16] 0.0, 128
        %1595 = vxpose.xlu0.b32.cont [3/16] 0.0, 128
        %1596 = vxpose.xlu0.b32.cont [4/16] 0.0, 128
        %1597 = vxpose.xlu0.b32.cont [5/16] 0.0, 128
        %1598 = vxpose.xlu0.b32.cont [6/16] 0.0, 128
        %1599 = vxpose.xlu0.b32.cont [7/16] 0.0, 128
        %1600 = vxpose.xlu0.b32.cont [8/16] 0.0, 128
        %1601 = vxpose.xlu0.b32.cont [9/16] 0.0, 128
        %1602 = vxpose.xlu0.b32.cont [10/16] 0.0, 128
        %1603 = vxpose.xlu0.b32.cont [11/16] 0.0, 128
        %1604 = vxpose.xlu0.b32.cont [12/16] 0.0, 128
        %1605 = vxpose.xlu0.b32.cont [13/16] 0.0, 128
        %1606 = vxpose.xlu0.b32.cont [14/16] 0.0, 128
        %1607 = vxpose.xlu0.b32.cont [15/16] 0.0, 128
        %1608 = vxpose.xlu0.b32.end [16/16] 0.0, 128
        %v1609 = vpop.trf.xlu0
        %v1610 = vpop.trf.xlu0
        %v1611 = vpop.trf.xlu0
        %v1612 = vpop.trf.xlu0
        %v1613 = vpop.trf.xlu0
        %v1614 = vpop.trf.xlu0
        %v1615 = vpop.trf.xlu0
        %v1616 = vpop.trf.xlu0
        %v1617 = vpop.trf.xlu0
        %v1618 = vpop.trf.xlu0
        %v1619 = vpop.trf.xlu0
        %v1620 = vpop.trf.xlu0
        %v1621 = vpop.trf.xlu0
        %v1622 = vpop.trf.xlu0
        %v1623 = vpop.trf.xlu0
        %v1624 = vpop.trf.xlu0
        %1625 = vxpose.xlu0.b32.start [1/16] %v1376, 128
        %1626 = vxpose.xlu0.b32.cont [2/16] 0.0, 128
        %1627 = vxpose.xlu0.b32.cont [3/16] 0.0, 128
        %1628 = vxpose.xlu0.b32.cont [4/16] 0.0, 128
        %1629 = vxpose.xlu0.b32.cont [5/16] 0.0, 128
        %1630 = vxpose.xlu0.b32.cont [6/16] 0.0, 128
        %1631 = vxpose.xlu0.b32.cont [7/16] 0.0, 128
        %1632 = vxpose.xlu0.b32.cont [8/16] 0.0, 128
        %1633 = vxpose.xlu0.b32.cont [9/16] 0.0, 128
        %1634 = vxpose.xlu0.b32.cont [10/16] 0.0, 128
        %1635 = vxpose.xlu0.b32.cont [11/16] 0.0, 128
        %1636 = vxpose.xlu0.b32.cont [12/16] 0.0, 128
        %1637 = vxpose.xlu0.b32.cont [13/16] 0.0, 128
        %1638 = vxpose.xlu0.b32.cont [14/16] 0.0, 128
        %1639 = vxpose.xlu0.b32.cont [15/16] 0.0, 128
        %1640 = vxpose.xlu0.b32.end [16/16] 0.0, 128
        %v1641 = vpop.trf.xlu0
        %v1642 = vpop.trf.xlu0
        %v1643 = vpop.trf.xlu0
        %v1644 = vpop.trf.xlu0
        %v1645 = vpop.trf.xlu0
        %v1646 = vpop.trf.xlu0
        %v1647 = vpop.trf.xlu0
        %v1648 = vpop.trf.xlu0
        %v1649 = vpop.trf.xlu0
        %v1650 = vpop.trf.xlu0
        %v1651 = vpop.trf.xlu0
        %v1652 = vpop.trf.xlu0
        %v1653 = vpop.trf.xlu0
        %v1654 = vpop.trf.xlu0
        %v1655 = vpop.trf.xlu0
        %v1656 = vpop.trf.xlu0
        %1657 = vxpose.xlu0.b32.start [1/16] %v1378, 128
        %1658 = vxpose.xlu0.b32.cont [2/16] 0.0, 128
        %1659 = vxpose.xlu0.b32.cont [3/16] 0.0, 128
        %1660 = vxpose.xlu0.b32.cont [4/16] 0.0, 128
        %1661 = vxpose.xlu0.b32.cont [5/16] 0.0, 128
        %1662 = vxpose.xlu0.b32.cont [6/16] 0.0, 128
        %1663 = vxpose.xlu0.b32.cont [7/16] 0.0, 128
        %1664 = vxpose.xlu0.b32.cont [8/16] 0.0, 128
        %1665 = vxpose.xlu0.b32.cont [9/16] 0.0, 128
        %1666 = vxpose.xlu0.b32.cont [10/16] 0.0, 128
        %1667 = vxpose.xlu0.b32.cont [11/16] 0.0, 128
        %1668 = vxpose.xlu0.b32.cont [12/16] 0.0, 128
        %1669 = vxpose.xlu0.b32.cont [13/16] 0.0, 128
        %1670 = vxpose.xlu0.b32.cont [14/16] 0.0, 128
        %1671 = vxpose.xlu0.b32.cont [15/16] 0.0, 128
        %1672 = vxpose.xlu0.b32.end [16/16] 0.0, 128
        %v1673 = vpop.trf.xlu0
        %v1674 = vpop.trf.xlu0
        %v1675 = vpop.trf.xlu0
        %v1676 = vpop.trf.xlu0
        %v1677 = vpop.trf.xlu0
        %v1678 = vpop.trf.xlu0
        %v1679 = vpop.trf.xlu0
        %v1680 = vpop.trf.xlu0
        %v1681 = vpop.trf.xlu0
        %v1682 = vpop.trf.xlu0
        %v1683 = vpop.trf.xlu0
        %v1684 = vpop.trf.xlu0
        %v1685 = vpop.trf.xlu0
        %v1686 = vpop.trf.xlu0
        %v1687 = vpop.trf.xlu0
        %v1688 = vpop.trf.xlu0
        %1689 = vxpose.xlu0.b32.start [1/16] %v1380, 128
        %1690 = vxpose.xlu0.b32.cont [2/16] 0.0, 128
        %1691 = vxpose.xlu0.b32.cont [3/16] 0.0, 128
        %1692 = vxpose.xlu0.b32.cont [4/16] 0.0, 128
        %1693 = vxpose.xlu0.b32.cont [5/16] 0.0, 128
        %1694 = vxpose.xlu0.b32.cont [6/16] 0.0, 128
        %1695 = vxpose.xlu0.b32.cont [7/16] 0.0, 128
        %1696 = vxpose.xlu0.b32.cont [8/16] 0.0, 128
        %1697 = vxpose.xlu0.b32.cont [9/16] 0.0, 128
        %1698 = vxpose.xlu0.b32.cont [10/16] 0.0, 128
        %1699 = vxpose.xlu0.b32.cont [11/16] 0.0, 128
        %1700 = vxpose.xlu0.b32.cont [12/16] 0.0, 128
        %1701 = vxpose.xlu0.b32.cont [13/16] 0.0, 128
        %1702 = vxpose.xlu0.b32.cont [14/16] 0.0, 128
        %1703 = vxpose.xlu0.b32.cont [15/16] 0.0, 128
        %1704 = vxpose.xlu0.b32.end [16/16] 0.0, 128
        %v1705 = vpop.trf.xlu0
        %v1706 = vpop.trf.xlu0
        %v1707 = vpop.trf.xlu0
        %v1708 = vpop.trf.xlu0
        %v1709 = vpop.trf.xlu0
        %v1710 = vpop.trf.xlu0
        %v1711 = vpop.trf.xlu0
        %v1712 = vpop.trf.xlu0
        %v1713 = vpop.trf.xlu0
        %v1714 = vpop.trf.xlu0
        %v1715 = vpop.trf.xlu0
        %v1716 = vpop.trf.xlu0
        %v1717 = vpop.trf.xlu0
        %v1718 = vpop.trf.xlu0
        %v1719 = vpop.trf.xlu0
        %v1720 = vpop.trf.xlu0
        %1721 = vxpose.xlu0.b32.start [1/16] %v1382, 128
        %1722 = vxpose.xlu0.b32.cont [2/16] 0.0, 128
        %1723 = vxpose.xlu0.b32.cont [3/16] 0.0, 128
        %1724 = vxpose.xlu0.b32.cont [4/16] 0.0, 128
        %1725 = vxpose.xlu0.b32.cont [5/16] 0.0, 128
        %1726 = vxpose.xlu0.b32.cont [6/16] 0.0, 128
        %1727 = vxpose.xlu0.b32.cont [7/16] 0.0, 128
        %1728 = vxpose.xlu0.b32.cont [8/16] 0.0, 128
        %1729 = vxpose.xlu0.b32.cont [9/16] 0.0, 128
        %1730 = vxpose.xlu0.b32.cont [10/16] 0.0, 128
        %1731 = vxpose.xlu0.b32.cont [11/16] 0.0, 128
        %1732 = vxpose.xlu0.b32.cont [12/16] 0.0, 128
        %1733 = vxpose.xlu0.b32.cont [13/16] 0.0, 128
        %1734 = vxpose.xlu0.b32.cont [14/16] 0.0, 128
        %1735 = vxpose.xlu0.b32.cont [15/16] 0.0, 128
        %1736 = vxpose.xlu0.b32.end [16/16] 0.0, 128
        %v1737 = vpop.trf.xlu0
        %v1738 = vpop.trf.xlu0
        %v1739 = vpop.trf.xlu0
        %v1740 = vpop.trf.xlu0
        %v1741 = vpop.trf.xlu0
        %v1742 = vpop.trf.xlu0
        %v1743 = vpop.trf.xlu0
        %v1744 = vpop.trf.xlu0
        %v1745 = vpop.trf.xlu0
        %v1746 = vpop.trf.xlu0
        %v1747 = vpop.trf.xlu0
        %v1748 = vpop.trf.xlu0
        %v1749 = vpop.trf.xlu0
        %v1750 = vpop.trf.xlu0
        %v1751 = vpop.trf.xlu0
        %v1752 = vpop.trf.xlu0
        %1753 = vxpose.xlu0.b32.start [1/16] %v1384, 128
        %1754 = vxpose.xlu0.b32.cont [2/16] 0.0, 128
        %1755 = vxpose.xlu0.b32.cont [3/16] 0.0, 128
        %1756 = vxpose.xlu0.b32.cont [4/16] 0.0, 128
        %1757 = vxpose.xlu0.b32.cont [5/16] 0.0, 128
        %1758 = vxpose.xlu0.b32.cont [6/16] 0.0, 128
        %1759 = vxpose.xlu0.b32.cont [7/16] 0.0, 128
        %1760 = vxpose.xlu0.b32.cont [8/16] 0.0, 128
        %1761 = vxpose.xlu0.b32.cont [9/16] 0.0, 128
        %1762 = vxpose.xlu0.b32.cont [10/16] 0.0, 128
        %1763 = vxpose.xlu0.b32.cont [11/16] 0.0, 128
        %1764 = vxpose.xlu0.b32.cont [12/16] 0.0, 128
        %1765 = vxpose.xlu0.b32.cont [13/16] 0.0, 128
        %1766 = vxpose.xlu0.b32.cont [14/16] 0.0, 128
        %1767 = vxpose.xlu0.b32.cont [15/16] 0.0, 128
        %1768 = vxpose.xlu0.b32.end [16/16] 0.0, 128
        %v1769 = vpop.trf.xlu0
        %v1770 = vpop.trf.xlu0
        %v1771 = vpop.trf.xlu0
        %v1772 = vpop.trf.xlu0
        %v1773 = vpop.trf.xlu0
        %v1774 = vpop.trf.xlu0
        %v1775 = vpop.trf.xlu0
        %v1776 = vpop.trf.xlu0
        %v1777 = vpop.trf.xlu0
        %v1778 = vpop.trf.xlu0
        %v1779 = vpop.trf.xlu0
        %v1780 = vpop.trf.xlu0
        %v1781 = vpop.trf.xlu0
        %v1782 = vpop.trf.xlu0
        %v1783 = vpop.trf.xlu0
        %v1784 = vpop.trf.xlu0
        %1785 = vxpose.xlu0.b32.start [1/16] %v1386, 128
        %1786 = vxpose.xlu0.b32.cont [2/16] 0.0, 128
        %1787 = vxpose.xlu0.b32.cont [3/16] 0.0, 128
        %1788 = vxpose.xlu0.b32.cont [4/16] 0.0, 128
        %1789 = vxpose.xlu0.b32.cont [5/16] 0.0, 128
        %1790 = vxpose.xlu0.b32.cont [6/16] 0.0, 128
        %1791 = vxpose.xlu0.b32.cont [7/16] 0.0, 128
        %1792 = vxpose.xlu0.b32.cont [8/16] 0.0, 128
        %1793 = vxpose.xlu0.b32.cont [9/16] 0.0, 128
        %1794 = vxpose.xlu0.b32.cont [10/16] 0.0, 128
        %1795 = vxpose.xlu0.b32.cont [11/16] 0.0, 128
        %1796 = vxpose.xlu0.b32.cont [12/16] 0.0, 128
        %1797 = vxpose.xlu0.b32.cont [13/16] 0.0, 128
        %1798 = vxpose.xlu0.b32.cont [14/16] 0.0, 128
        %1799 = vxpose.xlu0.b32.cont [15/16] 0.0, 128
        %1800 = vxpose.xlu0.b32.end [16/16] 0.0, 128
        %v1801 = vpop.trf.xlu0
        %v1802 = vpop.trf.xlu0
        %v1803 = vpop.trf.xlu0
        %v1804 = vpop.trf.xlu0
        %v1805 = vpop.trf.xlu0
        %v1806 = vpop.trf.xlu0
        %v1807 = vpop.trf.xlu0
        %v1808 = vpop.trf.xlu0
        %v1809 = vpop.trf.xlu0
        %v1810 = vpop.trf.xlu0
        %v1811 = vpop.trf.xlu0
        %v1812 = vpop.trf.xlu0
        %v1813 = vpop.trf.xlu0
        %v1814 = vpop.trf.xlu0
        %v1815 = vpop.trf.xlu0
        %v1816 = vpop.trf.xlu0
        %1817 = vxpose.xlu0.b32.start [1/16] %v1388, 128
        %1818 = vxpose.xlu0.b32.cont [2/16] 0.0, 128
        %1819 = vxpose.xlu0.b32.cont [3/16] 0.0, 128
        %1820 = vxpose.xlu0.b32.cont [4/16] 0.0, 128
        %1821 = vxpose.xlu0.b32.cont [5/16] 0.0, 128
        %1822 = vxpose.xlu0.b32.cont [6/16] 0.0, 128
        %1823 = vxpose.xlu0.b32.cont [7/16] 0.0, 128
        %1824 = vxpose.xlu0.b32.cont [8/16] 0.0, 128
        %1825 = vxpose.xlu0.b32.cont [9/16] 0.0, 128
        %1826 = vxpose.xlu0.b32.cont [10/16] 0.0, 128
        %1827 = vxpose.xlu0.b32.cont [11/16] 0.0, 128
        %1828 = vxpose.xlu0.b32.cont [12/16] 0.0, 128
        %1829 = vxpose.xlu0.b32.cont [13/16] 0.0, 128
        %1830 = vxpose.xlu0.b32.cont [14/16] 0.0, 128
        %1831 = vxpose.xlu0.b32.cont [15/16] 0.0, 128
        %1832 = vxpose.xlu0.b32.end [16/16] 0.0, 128
        %v1833 = vpop.trf.xlu0
        %v1834 = vpop.trf.xlu0
        %v1835 = vpop.trf.xlu0
        %v1836 = vpop.trf.xlu0
        %v1837 = vpop.trf.xlu0
        %v1838 = vpop.trf.xlu0
        %v1839 = vpop.trf.xlu0
        %v1840 = vpop.trf.xlu0
        %v1841 = vpop.trf.xlu0
        %v1842 = vpop.trf.xlu0
        %v1843 = vpop.trf.xlu0
        %v1844 = vpop.trf.xlu0
        %v1845 = vpop.trf.xlu0
        %v1846 = vpop.trf.xlu0
        %v1847 = vpop.trf.xlu0
        %v1848 = vpop.trf.xlu0
        %1849 = vxpose.xlu0.b32.start [1/16] %v1390, 128
        %1850 = vxpose.xlu0.b32.cont [2/16] 0.0, 128
        %1851 = vxpose.xlu0.b32.cont [3/16] 0.0, 128
        %1852 = vxpose.xlu0.b32.cont [4/16] 0.0, 128
        %1853 = vxpose.xlu0.b32.cont [5/16] 0.0, 128
        %1854 = vxpose.xlu0.b32.cont [6/16] 0.0, 128
        %1855 = vxpose.xlu0.b32.cont [7/16] 0.0, 128
        %1856 = vxpose.xlu0.b32.cont [8/16] 0.0, 128
        %1857 = vxpose.xlu0.b32.cont [9/16] 0.0, 128
        %1858 = vxpose.xlu0.b32.cont [10/16] 0.0, 128
        %1859 = vxpose.xlu0.b32.cont [11/16] 0.0, 128
        %1860 = vxpose.xlu0.b32.cont [12/16] 0.0, 128
        %1861 = vxpose.xlu0.b32.cont [13/16] 0.0, 128
        %1862 = vxpose.xlu0.b32.cont [14/16] 0.0, 128
        %1863 = vxpose.xlu0.b32.cont [15/16] 0.0, 128
        %1864 = vxpose.xlu0.b32.end [16/16] 0.0, 128
        %v1865 = vpop.trf.xlu0
        %v1866 = vpop.trf.xlu0
        %v1867 = vpop.trf.xlu0
        %v1868 = vpop.trf.xlu0
        %v1869 = vpop.trf.xlu0
        %v1870 = vpop.trf.xlu0
        %v1871 = vpop.trf.xlu0
        %v1872 = vpop.trf.xlu0
        %v1873 = vpop.trf.xlu0
        %v1874 = vpop.trf.xlu0
        %v1875 = vpop.trf.xlu0
        %v1876 = vpop.trf.xlu0
        %v1877 = vpop.trf.xlu0
        %v1878 = vpop.trf.xlu0
        %v1879 = vpop.trf.xlu0
        %v1880 = vpop.trf.xlu0
        %1881 = vxpose.xlu0.b32.start [1/16] %v1392, 128
        %1882 = vxpose.xlu0.b32.cont [2/16] 0.0, 128
        %1883 = vxpose.xlu0.b32.cont [3/16] 0.0, 128
        %1884 = vxpose.xlu0.b32.cont [4/16] 0.0, 128
        %1885 = vxpose.xlu0.b32.cont [5/16] 0.0, 128
        %1886 = vxpose.xlu0.b32.cont [6/16] 0.0, 128
        %1887 = vxpose.xlu0.b32.cont [7/16] 0.0, 128
        %1888 = vxpose.xlu0.b32.cont [8/16] 0.0, 128
        %1889 = vxpose.xlu0.b32.cont [9/16] 0.0, 128
        %1890 = vxpose.xlu0.b32.cont [10/16] 0.0, 128
        %1891 = vxpose.xlu0.b32.cont [11/16] 0.0, 128
        %1892 = vxpose.xlu0.b32.cont [12/16] 0.0, 128
        %1893 = vxpose.xlu0.b32.cont [13/16] 0.0, 128
        %1894 = vxpose.xlu0.b32.cont [14/16] 0.0, 128
        %1895 = vxpose.xlu0.b32.cont [15/16] 0.0, 128
        %1896 = vxpose.xlu0.b32.end [16/16] 0.0, 128
        %v1897 = vpop.trf.xlu0
        %v1898 = vpop.trf.xlu0
        %v1899 = vpop.trf.xlu0
        %v1900 = vpop.trf.xlu0
        %v1901 = vpop.trf.xlu0
        %v1902 = vpop.trf.xlu0
        %v1903 = vpop.trf.xlu0
        %v1904 = vpop.trf.xlu0
        %v1905 = vpop.trf.xlu0
        %v1906 = vpop.trf.xlu0
        %v1907 = vpop.trf.xlu0
        %v1908 = vpop.trf.xlu0
        %v1909 = vpop.trf.xlu0
        %v1910 = vpop.trf.xlu0
        %v1911 = vpop.trf.xlu0
        %v1912 = vpop.trf.xlu0
        %1913 = vxpose.xlu0.b32.start [1/16] %v1394, 128
        %1914 = vxpose.xlu0.b32.cont [2/16] 0.0, 128
        %1915 = vxpose.xlu0.b32.cont [3/16] 0.0, 128
        %1916 = vxpose.xlu0.b32.cont [4/16] 0.0, 128
        %1917 = vxpose.xlu0.b32.cont [5/16] 0.0, 128
        %1918 = vxpose.xlu0.b32.cont [6/16] 0.0, 128
        %1919 = vxpose.xlu0.b32.cont [7/16] 0.0, 128
        %1920 = vxpose.xlu0.b32.cont [8/16] 0.0, 128
        %1921 = vxpose.xlu0.b32.cont [9/16] 0.0, 128
        %1922 = vxpose.xlu0.b32.cont [10/16] 0.0, 128
        %1923 = vxpose.xlu0.b32.cont [11/16] 0.0, 128
        %1924 = vxpose.xlu0.b32.cont [12/16] 0.0, 128
        %1925 = vxpose.xlu0.b32.cont [13/16] 0.0, 128
        %1926 = vxpose.xlu0.b32.cont [14/16] 0.0, 128
        %1927 = vxpose.xlu0.b32.cont [15/16] 0.0, 128
        %1928 = vxpose.xlu0.b32.end [16/16] 0.0, 128
        %v1929 = vpop.trf.xlu0
        %v1930 = vpop.trf.xlu0
        %v1931 = vpop.trf.xlu0
        %v1932 = vpop.trf.xlu0
        %v1933 = vpop.trf.xlu0
        %v1934 = vpop.trf.xlu0
        %v1935 = vpop.trf.xlu0
        %v1936 = vpop.trf.xlu0
        %v1937 = vpop.trf.xlu0
        %v1938 = vpop.trf.xlu0
        %v1939 = vpop.trf.xlu0
        %v1940 = vpop.trf.xlu0
        %v1941 = vpop.trf.xlu0
        %v1942 = vpop.trf.xlu0
        %v1943 = vpop.trf.xlu0
        %v1944 = vpop.trf.xlu0
        %1945 = vxpose.xlu0.b32.start [1/16] %v1396, 128
        %1946 = vxpose.xlu0.b32.cont [2/16] 0.0, 128
        %1947 = vxpose.xlu0.b32.cont [3/16] 0.0, 128
        %1948 = vxpose.xlu0.b32.cont [4/16] 0.0, 128
        %1949 = vxpose.xlu0.b32.cont [5/16] 0.0, 128
        %1950 = vxpose.xlu0.b32.cont [6/16] 0.0, 128
        %1951 = vxpose.xlu0.b32.cont [7/16] 0.0, 128
        %1952 = vxpose.xlu0.b32.cont [8/16] 0.0, 128
        %1953 = vxpose.xlu0.b32.cont [9/16] 0.0, 128
        %1954 = vxpose.xlu0.b32.cont [10/16] 0.0, 128
        %1955 = vxpose.xlu0.b32.cont [11/16] 0.0, 128
        %1956 = vxpose.xlu0.b32.cont [12/16] 0.0, 128
        %1957 = vxpose.xlu0.b32.cont [13/16] 0.0, 128
        %1958 = vxpose.xlu0.b32.cont [14/16] 0.0, 128
        %1959 = vxpose.xlu0.b32.cont [15/16] 0.0, 128
        %1960 = vxpose.xlu0.b32.end [16/16] 0.0, 128
        %v1961 = vpop.trf.xlu0
        %v1962 = vpop.trf.xlu0
        %v1963 = vpop.trf.xlu0
        %v1964 = vpop.trf.xlu0
        %v1965 = vpop.trf.xlu0
        %v1966 = vpop.trf.xlu0
        %v1967 = vpop.trf.xlu0
        %v1968 = vpop.trf.xlu0
        %v1969 = vpop.trf.xlu0
        %v1970 = vpop.trf.xlu0
        %v1971 = vpop.trf.xlu0
        %v1972 = vpop.trf.xlu0
        %v1973 = vpop.trf.xlu0
        %v1974 = vpop.trf.xlu0
        %v1975 = vpop.trf.xlu0
        %v1976 = vpop.trf.xlu0
        %1977 = vxpose.xlu0.b32.start [1/16] %v1398, 128
        %1978 = vxpose.xlu0.b32.cont [2/16] 0.0, 128
        %1979 = vxpose.xlu0.b32.cont [3/16] 0.0, 128
        %1980 = vxpose.xlu0.b32.cont [4/16] 0.0, 128
        %1981 = vxpose.xlu0.b32.cont [5/16] 0.0, 128
        %1982 = vxpose.xlu0.b32.cont [6/16] 0.0, 128
        %1983 = vxpose.xlu0.b32.cont [7/16] 0.0, 128
        %1984 = vxpose.xlu0.b32.cont [8/16] 0.0, 128
        %1985 = vxpose.xlu0.b32.cont [9/16] 0.0, 128
        %1986 = vxpose.xlu0.b32.cont [10/16] 0.0, 128
        %1987 = vxpose.xlu0.b32.cont [11/16] 0.0, 128
        %1988 = vxpose.xlu0.b32.cont [12/16] 0.0, 128
        %1989 = vxpose.xlu0.b32.cont [13/16] 0.0, 128
        %1990 = vxpose.xlu0.b32.cont [14/16] 0.0, 128
        %1991 = vxpose.xlu0.b32.cont [15/16] 0.0, 128
        %1992 = vxpose.xlu0.b32.end [16/16] 0.0, 128
        %v1993 = vpop.trf.xlu0
        %v1994 = vpop.trf.xlu0
        %v1995 = vpop.trf.xlu0
        %v1996 = vpop.trf.xlu0
        %v1997 = vpop.trf.xlu0
        %v1998 = vpop.trf.xlu0
        %v1999 = vpop.trf.xlu0
        %v2000 = vpop.trf.xlu0
        %v2001 = vpop.trf.xlu0
        %v2002 = vpop.trf.xlu0
        %v2003 = vpop.trf.xlu0
        %v2004 = vpop.trf.xlu0
        %v2005 = vpop.trf.xlu0
        %v2006 = vpop.trf.xlu0
        %v2007 = vpop.trf.xlu0
        %v2008 = vpop.trf.xlu0
        %2009 = vxpose.xlu0.b32.start [1/16] %v1400, 128
        %2010 = vxpose.xlu0.b32.cont [2/16] 0.0, 128
        %2011 = vxpose.xlu0.b32.cont [3/16] 0.0, 128
        %2012 = vxpose.xlu0.b32.cont [4/16] 0.0, 128
        %2013 = vxpose.xlu0.b32.cont [5/16] 0.0, 128
        %2014 = vxpose.xlu0.b32.cont [6/16] 0.0, 128
        %2015 = vxpose.xlu0.b32.cont [7/16] 0.0, 128
        %2016 = vxpose.xlu0.b32.cont [8/16] 0.0, 128
        %2017 = vxpose.xlu0.b32.cont [9/16] 0.0, 128
        %2018 = vxpose.xlu0.b32.cont [10/16] 0.0, 128
        %2019 = vxpose.xlu0.b32.cont [11/16] 0.0, 128
        %2020 = vxpose.xlu0.b32.cont [12/16] 0.0, 128
        %2021 = vxpose.xlu0.b32.cont [13/16] 0.0, 128
        %2022 = vxpose.xlu0.b32.cont [14/16] 0.0, 128
        %2023 = vxpose.xlu0.b32.cont [15/16] 0.0, 128
        %2024 = vxpose.xlu0.b32.end [16/16] 0.0, 128
        %v2025 = vpop.trf.xlu0
        %v2026 = vpop.trf.xlu0
        %v2027 = vpop.trf.xlu0
        %v2028 = vpop.trf.xlu0
        %v2029 = vpop.trf.xlu0
        %v2030 = vpop.trf.xlu0
        %v2031 = vpop.trf.xlu0
        %v2032 = vpop.trf.xlu0
        %v2033 = vpop.trf.xlu0
        %v2034 = vpop.trf.xlu0
        %v2035 = vpop.trf.xlu0
        %v2036 = vpop.trf.xlu0
        %v2037 = vpop.trf.xlu0
        %v2038 = vpop.trf.xlu0
        %v2039 = vpop.trf.xlu0
        %v2040 = vpop.trf.xlu0
        %v2041 = vcombine.low %v1545, %v1609
        %v2042 = vcombine.high %v1545, %v1609
        %v2044 = vunpack.c.l.s4 1983009808
        %v2045 = vunpack.c.0.s8 %v2044
        %v2046 = vlaneseq
        %v2047 = vshrl.u32 %v2046, 7
        %v2048 = vsub.s32 %v2045, %v2047
        %v2049 = vrot.slane %v2041, %v2048
        %v2051 = vunpack.c.l.s4 1983009808
        %v2052 = vunpack.c.0.s8 %v2051
        %v2053 = vlaneseq
        %v2054 = vshrl.u32 %v2053, 7
        %v2055 = vsub.s32 %v2052, %v2054
        %v2056 = vrot.slane %v2042, %v2055
        %v2057 = vcombine.low %v1577, %v1641
        %v2058 = vcombine.high %v1577, %v1641
        %v2060 = vunpack.c.l.s4 1983009808
        %v2061 = vunpack.c.0.s8 %v2060
        %v2062 = vlaneseq
        %v2063 = vshrl.u32 %v2062, 7
        %v2064 = vsub.s32 %v2061, %v2063
        %v2065 = vrot.slane %v2057, %v2064
        %v2067 = vunpack.c.l.s4 1983009808
        %v2068 = vunpack.c.0.s8 %v2067
        %v2069 = vlaneseq
        %v2070 = vshrl.u32 %v2069, 7
        %v2071 = vsub.s32 %v2068, %v2070
        %v2072 = vrot.slane %v2058, %v2071
        %v2073 = vcombine.low %v1673, %v1737
        %v2074 = vcombine.high %v1673, %v1737
        %v2076 = vunpack.c.l.s4 1983009808
        %v2077 = vunpack.c.0.s8 %v2076
        %v2078 = vlaneseq
        %v2079 = vshrl.u32 %v2078, 7
        %v2080 = vsub.s32 %v2077, %v2079
        %v2081 = vrot.slane %v2073, %v2080
        %v2083 = vunpack.c.l.s4 1983009808
        %v2084 = vunpack.c.0.s8 %v2083
        %v2085 = vlaneseq
        %v2086 = vshrl.u32 %v2085, 7
        %v2087 = vsub.s32 %v2084, %v2086
        %v2088 = vrot.slane %v2074, %v2087
        %v2089 = vcombine.low %v1705, %v1769
        %v2090 = vcombine.high %v1705, %v1769
        %v2092 = vunpack.c.l.s4 1983009808
        %v2093 = vunpack.c.0.s8 %v2092
        %v2094 = vlaneseq
        %v2095 = vshrl.u32 %v2094, 7
        %v2096 = vsub.s32 %v2093, %v2095
        %v2097 = vrot.slane %v2089, %v2096
        %v2099 = vunpack.c.l.s4 1983009808
        %v2100 = vunpack.c.0.s8 %v2099
        %v2101 = vlaneseq
        %v2102 = vshrl.u32 %v2101, 7
        %v2103 = vsub.s32 %v2100, %v2102
        %v2104 = vrot.slane %v2090, %v2103
        %v2105 = vcombine.low %v2049, %v2065
        %v2106 = vcombine.high %v2049, %v2065
        %v2108 = vunpack.c.l.s4 1934713408
        %v2109 = vunpack.c.0.s8 %v2108
        %v2110 = vlaneseq
        %v2111 = vshrl.u32 %v2110, 7
        %v2112 = vsub.s32 %v2109, %v2111
        %v2113 = vrot.slane %v2105, %v2112
        %v2115 = vunpack.c.l.s4 1934713408
        %v2116 = vunpack.c.0.s8 %v2115
        %v2117 = vlaneseq
        %v2118 = vshrl.u32 %v2117, 7
        %v2119 = vsub.s32 %v2116, %v2118
        %v2120 = vrot.slane %v2106, %v2119
        %v2121 = vcombine.low %v2056, %v2072
        %v2122 = vcombine.high %v2056, %v2072
        %v2124 = vunpack.c.l.s4 1934713408
        %v2125 = vunpack.c.0.s8 %v2124
        %v2126 = vlaneseq
        %v2127 = vshrl.u32 %v2126, 7
        %v2128 = vsub.s32 %v2125, %v2127
        %v2129 = vrot.slane %v2121, %v2128
        %v2131 = vunpack.c.l.s4 1934713408
        %v2132 = vunpack.c.0.s8 %v2131
        %v2133 = vlaneseq
        %v2134 = vshrl.u32 %v2133, 7
        %v2135 = vsub.s32 %v2132, %v2134
        %v2136 = vrot.slane %v2122, %v2135
        %v2137 = vcombine.low %v2081, %v2097
        %v2138 = vcombine.high %v2081, %v2097
        %v2140 = vunpack.c.l.s4 1934713408
        %v2141 = vunpack.c.0.s8 %v2140
        %v2142 = vlaneseq
        %v2143 = vshrl.u32 %v2142, 7
        %v2144 = vsub.s32 %v2141, %v2143
        %v2145 = vrot.slane %v2137, %v2144
        %v2147 = vunpack.c.l.s4 1934713408
        %v2148 = vunpack.c.0.s8 %v2147
        %v2149 = vlaneseq
        %v2150 = vshrl.u32 %v2149, 7
        %v2151 = vsub.s32 %v2148, %v2150
        %v2152 = vrot.slane %v2138, %v2151
        %v2153 = vcombine.low %v2088, %v2104
        %v2154 = vcombine.high %v2088, %v2104
        %v2156 = vunpack.c.l.s4 1934713408
        %v2157 = vunpack.c.0.s8 %v2156
        %v2158 = vlaneseq
        %v2159 = vshrl.u32 %v2158, 7
        %v2160 = vsub.s32 %v2157, %v2159
        %v2161 = vrot.slane %v2153, %v2160
        %v2163 = vunpack.c.l.s4 1934713408
        %v2164 = vunpack.c.0.s8 %v2163
        %v2165 = vlaneseq
        %v2166 = vshrl.u32 %v2165, 7
        %v2167 = vsub.s32 %v2164, %v2166
        %v2168 = vrot.slane %v2154, %v2167
        %v2169 = vcombine.low %v2113, %v2145
        %v2170 = vcombine.high %v2113, %v2145
        %v2171 = vcombine.low %v2120, %v2152
        %v2172 = vcombine.high %v2120, %v2152
        %v2173 = vcombine.low %v2129, %v2161
        %v2174 = vcombine.high %v2129, %v2161
        %v2175 = vcombine.low %v2136, %v2168
        %v2176 = vcombine.high %v2136, %v2168
        %v2177 = vcombine.low %v1801, %v1865
        %v2178 = vcombine.high %v1801, %v1865
        %v2180 = vunpack.c.l.s4 1983009808
        %v2181 = vunpack.c.0.s8 %v2180
        %v2182 = vlaneseq
        %v2183 = vshrl.u32 %v2182, 7
        %v2184 = vsub.s32 %v2181, %v2183
        %v2185 = vrot.slane %v2177, %v2184
        %v2187 = vunpack.c.l.s4 1983009808
        %v2188 = vunpack.c.0.s8 %v2187
        %v2189 = vlaneseq
        %v2190 = vshrl.u32 %v2189, 7
        %v2191 = vsub.s32 %v2188, %v2190
        %v2192 = vrot.slane %v2178, %v2191
        %v2193 = vcombine.low %v1833, %v1897
        %v2194 = vcombine.high %v1833, %v1897
        %v2196 = vunpack.c.l.s4 1983009808
        %v2197 = vunpack.c.0.s8 %v2196
        %v2198 = vlaneseq
        %v2199 = vshrl.u32 %v2198, 7
        %v2200 = vsub.s32 %v2197, %v2199
        %v2201 = vrot.slane %v2193, %v2200
        %v2203 = vunpack.c.l.s4 1983009808
        %v2204 = vunpack.c.0.s8 %v2203
        %v2205 = vlaneseq
        %v2206 = vshrl.u32 %v2205, 7
        %v2207 = vsub.s32 %v2204, %v2206
        %v2208 = vrot.slane %v2194, %v2207
        %v2209 = vcombine.low %v1929, %v1993
        %v2210 = vcombine.high %v1929, %v1993
        %v2212 = vunpack.c.l.s4 1983009808
        %v2213 = vunpack.c.0.s8 %v2212
        %v2214 = vlaneseq
        %v2215 = vshrl.u32 %v2214, 7
        %v2216 = vsub.s32 %v2213, %v2215
        %v2217 = vrot.slane %v2209, %v2216
        %v2219 = vunpack.c.l.s4 1983009808
        %v2220 = vunpack.c.0.s8 %v2219
        %v2221 = vlaneseq
        %v2222 = vshrl.u32 %v2221, 7
        %v2223 = vsub.s32 %v2220, %v2222
        %v2224 = vrot.slane %v2210, %v2223
        %v2225 = vcombine.low %v1961, %v2025
        %v2226 = vcombine.high %v1961, %v2025
        %v2228 = vunpack.c.l.s4 1983009808
        %v2229 = vunpack.c.0.s8 %v2228
        %v2230 = vlaneseq
        %v2231 = vshrl.u32 %v2230, 7
        %v2232 = vsub.s32 %v2229, %v2231
        %v2233 = vrot.slane %v2225, %v2232
        %v2235 = vunpack.c.l.s4 1983009808
        %v2236 = vunpack.c.0.s8 %v2235
        %v2237 = vlaneseq
        %v2238 = vshrl.u32 %v2237, 7
        %v2239 = vsub.s32 %v2236, %v2238
        %v2240 = vrot.slane %v2226, %v2239
        %v2241 = vcombine.low %v2185, %v2201
        %v2242 = vcombine.high %v2185, %v2201
        %v2244 = vunpack.c.l.s4 1934713408
        %v2245 = vunpack.c.0.s8 %v2244
        %v2246 = vlaneseq
        %v2247 = vshrl.u32 %v2246, 7
        %v2248 = vsub.s32 %v2245, %v2247
        %v2249 = vrot.slane %v2241, %v2248
        %v2251 = vunpack.c.l.s4 1934713408
        %v2252 = vunpack.c.0.s8 %v2251
        %v2253 = vlaneseq
        %v2254 = vshrl.u32 %v2253, 7
        %v2255 = vsub.s32 %v2252, %v2254
        %v2256 = vrot.slane %v2242, %v2255
        %v2257 = vcombine.low %v2192, %v2208
        %v2258 = vcombine.high %v2192, %v2208
        %v2260 = vunpack.c.l.s4 1934713408
        %v2261 = vunpack.c.0.s8 %v2260
        %v2262 = vlaneseq
        %v2263 = vshrl.u32 %v2262, 7
        %v2264 = vsub.s32 %v2261, %v2263
        %v2265 = vrot.slane %v2257, %v2264
        %v2267 = vunpack.c.l.s4 1934713408
        %v2268 = vunpack.c.0.s8 %v2267
        %v2269 = vlaneseq
        %v2270 = vshrl.u32 %v2269, 7
        %v2271 = vsub.s32 %v2268, %v2270
        %v2272 = vrot.slane %v2258, %v2271
        %v2273 = vcombine.low %v2217, %v2233
        %v2274 = vcombine.high %v2217, %v2233
        %v2276 = vunpack.c.l.s4 1934713408
        %v2277 = vunpack.c.0.s8 %v2276
        %v2278 = vlaneseq
        %v2279 = vshrl.u32 %v2278, 7
        %v2280 = vsub.s32 %v2277, %v2279
        %v2281 = vrot.slane %v2273, %v2280
        %v2283 = vunpack.c.l.s4 1934713408
        %v2284 = vunpack.c.0.s8 %v2283
        %v2285 = vlaneseq
        %v2286 = vshrl.u32 %v2285, 7
        %v2287 = vsub.s32 %v2284, %v2286
        %v2288 = vrot.slane %v2274, %v2287
        %v2289 = vcombine.low %v2224, %v2240
        %v2290 = vcombine.high %v2224, %v2240
        %v2292 = vunpack.c.l.s4 1934713408
        %v2293 = vunpack.c.0.s8 %v2292
        %v2294 = vlaneseq
        %v2295 = vshrl.u32 %v2294, 7
        %v2296 = vsub.s32 %v2293, %v2295
        %v2297 = vrot.slane %v2289, %v2296
        %v2299 = vunpack.c.l.s4 1934713408
        %v2300 = vunpack.c.0.s8 %v2299
        %v2301 = vlaneseq
        %v2302 = vshrl.u32 %v2301, 7
        %v2303 = vsub.s32 %v2300, %v2302
        %v2304 = vrot.slane %v2290, %v2303
        %v2305 = vcombine.low %v2249, %v2281
        %v2306 = vcombine.high %v2249, %v2281
        %v2307 = vcombine.low %v2256, %v2288
        %v2308 = vcombine.high %v2256, %v2288
        %v2309 = vcombine.low %v2265, %v2297
        %v2310 = vcombine.high %v2265, %v2297
        %v2311 = vcombine.low %v2272, %v2304
        %v2312 = vcombine.high %v2272, %v2304
        %2313 = vxpose.xlu0.b32.start [1/16] %v2169, 128
        %2314 = vxpose.xlu0.b32.cont [2/16] %v2305, 128
        %2315 = vxpose.xlu0.b32.cont [3/16] 0.0, 128
        %2316 = vxpose.xlu0.b32.cont [4/16] 0.0, 128
        %2317 = vxpose.xlu0.b32.cont [5/16] 0.0, 128
        %2318 = vxpose.xlu0.b32.cont [6/16] 0.0, 128
        %2319 = vxpose.xlu0.b32.cont [7/16] 0.0, 128
        %2320 = vxpose.xlu0.b32.cont [8/16] 0.0, 128
        %2321 = vxpose.xlu0.b32.cont [9/16] 0.0, 128
        %2322 = vxpose.xlu0.b32.cont [10/16] 0.0, 128
        %2323 = vxpose.xlu0.b32.cont [11/16] 0.0, 128
        %2324 = vxpose.xlu0.b32.cont [12/16] 0.0, 128
        %2325 = vxpose.xlu0.b32.cont [13/16] 0.0, 128
        %2326 = vxpose.xlu0.b32.cont [14/16] 0.0, 128
        %2327 = vxpose.xlu0.b32.cont [15/16] 0.0, 128
        %2328 = vxpose.xlu0.b32.end [16/16] 0.0, 128
        %v2329 = vpop.trf.xlu0
        %v2330 = vpop.trf.xlu0
        %v2331 = vpop.trf.xlu0
        %v2332 = vpop.trf.xlu0
        %v2333 = vpop.trf.xlu0
        %v2334 = vpop.trf.xlu0
        %v2335 = vpop.trf.xlu0
        %v2336 = vpop.trf.xlu0
        %v2337 = vpop.trf.xlu0
        %v2338 = vpop.trf.xlu0
        %v2339 = vpop.trf.xlu0
        %v2340 = vpop.trf.xlu0
        %v2341 = vpop.trf.xlu0
        %v2342 = vpop.trf.xlu0
        %v2343 = vpop.trf.xlu0
        %v2344 = vpop.trf.xlu0
        %2345 = vxpose.xlu0.b32.start [1/16] %v2170, 128
        %2346 = vxpose.xlu0.b32.cont [2/16] %v2306, 128
        %2347 = vxpose.xlu0.b32.cont [3/16] 0.0, 128
        %2348 = vxpose.xlu0.b32.cont [4/16] 0.0, 128
        %2349 = vxpose.xlu0.b32.cont [5/16] 0.0, 128
        %2350 = vxpose.xlu0.b32.cont [6/16] 0.0, 128
        %2351 = vxpose.xlu0.b32.cont [7/16] 0.0, 128
        %2352 = vxpose.xlu0.b32.cont [8/16] 0.0, 128
        %2353 = vxpose.xlu0.b32.cont [9/16] 0.0, 128
        %2354 = vxpose.xlu0.b32.cont [10/16] 0.0, 128
        %2355 = vxpose.xlu0.b32.cont [11/16] 0.0, 128
        %2356 = vxpose.xlu0.b32.cont [12/16] 0.0, 128
        %2357 = vxpose.xlu0.b32.cont [13/16] 0.0, 128
        %2358 = vxpose.xlu0.b32.cont [14/16] 0.0, 128
        %2359 = vxpose.xlu0.b32.cont [15/16] 0.0, 128
        %2360 = vxpose.xlu0.b32.end [16/16] 0.0, 128
        %v2361 = vpop.trf.xlu0
        %v2362 = vpop.trf.xlu0
        %v2363 = vpop.trf.xlu0
        %v2364 = vpop.trf.xlu0
        %v2365 = vpop.trf.xlu0
        %v2366 = vpop.trf.xlu0
        %v2367 = vpop.trf.xlu0
        %v2368 = vpop.trf.xlu0
        %v2369 = vpop.trf.xlu0
        %v2370 = vpop.trf.xlu0
        %v2371 = vpop.trf.xlu0
        %v2372 = vpop.trf.xlu0
        %v2373 = vpop.trf.xlu0
        %v2374 = vpop.trf.xlu0
        %v2375 = vpop.trf.xlu0
        %v2376 = vpop.trf.xlu0
        %2377 = vxpose.xlu0.b32.start [1/16] %v2171, 128
        %2378 = vxpose.xlu0.b32.cont [2/16] %v2307, 128
        %2379 = vxpose.xlu0.b32.cont [3/16] 0.0, 128
        %2380 = vxpose.xlu0.b32.cont [4/16] 0.0, 128
        %2381 = vxpose.xlu0.b32.cont [5/16] 0.0, 128
        %2382 = vxpose.xlu0.b32.cont [6/16] 0.0, 128
        %2383 = vxpose.xlu0.b32.cont [7/16] 0.0, 128
        %2384 = vxpose.xlu0.b32.cont [8/16] 0.0, 128
        %2385 = vxpose.xlu0.b32.cont [9/16] 0.0, 128
        %2386 = vxpose.xlu0.b32.cont [10/16] 0.0, 128
        %2387 = vxpose.xlu0.b32.cont [11/16] 0.0, 128
        %2388 = vxpose.xlu0.b32.cont [12/16] 0.0, 128
        %2389 = vxpose.xlu0.b32.cont [13/16] 0.0, 128
        %2390 = vxpose.xlu0.b32.cont [14/16] 0.0, 128
        %2391 = vxpose.xlu0.b32.cont [15/16] 0.0, 128
        %2392 = vxpose.xlu0.b32.end [16/16] 0.0, 128
        %v2393 = vpop.trf.xlu0
        %v2394 = vpop.trf.xlu0
        %v2395 = vpop.trf.xlu0
        %v2396 = vpop.trf.xlu0
        %v2397 = vpop.trf.xlu0
        %v2398 = vpop.trf.xlu0
        %v2399 = vpop.trf.xlu0
        %v2400 = vpop.trf.xlu0
        %v2401 = vpop.trf.xlu0
        %v2402 = vpop.trf.xlu0
        %v2403 = vpop.trf.xlu0
        %v2404 = vpop.trf.xlu0
        %v2405 = vpop.trf.xlu0
        %v2406 = vpop.trf.xlu0
        %v2407 = vpop.trf.xlu0
        %v2408 = vpop.trf.xlu0
        %2409 = vxpose.xlu0.b32.start [1/16] %v2172, 128
        %2410 = vxpose.xlu0.b32.cont [2/16] %v2308, 128
        %2411 = vxpose.xlu0.b32.cont [3/16] 0.0, 128
        %2412 = vxpose.xlu0.b32.cont [4/16] 0.0, 128
        %2413 = vxpose.xlu0.b32.cont [5/16] 0.0, 128
        %2414 = vxpose.xlu0.b32.cont [6/16] 0.0, 128
        %2415 = vxpose.xlu0.b32.cont [7/16] 0.0, 128
        %2416 = vxpose.xlu0.b32.cont [8/16] 0.0, 128
        %2417 = vxpose.xlu0.b32.cont [9/16] 0.0, 128
        %2418 = vxpose.xlu0.b32.cont [10/16] 0.0, 128
        %2419 = vxpose.xlu0.b32.cont [11/16] 0.0, 128
        %2420 = vxpose.xlu0.b32.cont [12/16] 0.0, 128
        %2421 = vxpose.xlu0.b32.cont [13/16] 0.0, 128
        %2422 = vxpose.xlu0.b32.cont [14/16] 0.0, 128
        %2423 = vxpose.xlu0.b32.cont [15/16] 0.0, 128
        %2424 = vxpose.xlu0.b32.end [16/16] 0.0, 128
        %v2425 = vpop.trf.xlu0
        %v2426 = vpop.trf.xlu0
        %v2427 = vpop.trf.xlu0
        %v2428 = vpop.trf.xlu0
        %v2429 = vpop.trf.xlu0
        %v2430 = vpop.trf.xlu0
        %v2431 = vpop.trf.xlu0
        %v2432 = vpop.trf.xlu0
        %v2433 = vpop.trf.xlu0
        %v2434 = vpop.trf.xlu0
        %v2435 = vpop.trf.xlu0
        %v2436 = vpop.trf.xlu0
        %v2437 = vpop.trf.xlu0
        %v2438 = vpop.trf.xlu0
        %v2439 = vpop.trf.xlu0
        %v2440 = vpop.trf.xlu0
        %2441 = vxpose.xlu0.b32.start [1/16] %v2173, 128
        %2442 = vxpose.xlu0.b32.cont [2/16] %v2309, 128
        %2443 = vxpose.xlu0.b32.cont [3/16] 0.0, 128
        %2444 = vxpose.xlu0.b32.cont [4/16] 0.0, 128
        %2445 = vxpose.xlu0.b32.cont [5/16] 0.0, 128
        %2446 = vxpose.xlu0.b32.cont [6/16] 0.0, 128
        %2447 = vxpose.xlu0.b32.cont [7/16] 0.0, 128
        %2448 = vxpose.xlu0.b32.cont [8/16] 0.0, 128
        %2449 = vxpose.xlu0.b32.cont [9/16] 0.0, 128
        %2450 = vxpose.xlu0.b32.cont [10/16] 0.0, 128
        %2451 = vxpose.xlu0.b32.cont [11/16] 0.0, 128
        %2452 = vxpose.xlu0.b32.cont [12/16] 0.0, 128
        %2453 = vxpose.xlu0.b32.cont [13/16] 0.0, 128
        %2454 = vxpose.xlu0.b32.cont [14/16] 0.0, 128
        %2455 = vxpose.xlu0.b32.cont [15/16] 0.0, 128
        %2456 = vxpose.xlu0.b32.end [16/16] 0.0, 128
        %v2457 = vpop.trf.xlu0
        %v2458 = vpop.trf.xlu0
        %v2459 = vpop.trf.xlu0
        %v2460 = vpop.trf.xlu0
        %v2461 = vpop.trf.xlu0
        %v2462 = vpop.trf.xlu0
        %v2463 = vpop.trf.xlu0
        %v2464 = vpop.trf.xlu0
        %v2465 = vpop.trf.xlu0
        %v2466 = vpop.trf.xlu0
        %v2467 = vpop.trf.xlu0
        %v2468 = vpop.trf.xlu0
        %v2469 = vpop.trf.xlu0
        %v2470 = vpop.trf.xlu0
        %v2471 = vpop.trf.xlu0
        %v2472 = vpop.trf.xlu0
        %2473 = vxpose.xlu0.b32.start [1/16] %v2174, 128
        %2474 = vxpose.xlu0.b32.cont [2/16] %v2310, 128
        %2475 = vxpose.xlu0.b32.cont [3/16] 0.0, 128
        %2476 = vxpose.xlu0.b32.cont [4/16] 0.0, 128
        %2477 = vxpose.xlu0.b32.cont [5/16] 0.0, 128
        %2478 = vxpose.xlu0.b32.cont [6/16] 0.0, 128
        %2479 = vxpose.xlu0.b32.cont [7/16] 0.0, 128
        %2480 = vxpose.xlu0.b32.cont [8/16] 0.0, 128
        %2481 = vxpose.xlu0.b32.cont [9/16] 0.0, 128
        %2482 = vxpose.xlu0.b32.cont [10/16] 0.0, 128
        %2483 = vxpose.xlu0.b32.cont [11/16] 0.0, 128
        %2484 = vxpose.xlu0.b32.cont [12/16] 0.0, 128
        %2485 = vxpose.xlu0.b32.cont [13/16] 0.0, 128
        %2486 = vxpose.xlu0.b32.cont [14/16] 0.0, 128
        %2487 = vxpose.xlu0.b32.cont [15/16] 0.0, 128
        %2488 = vxpose.xlu0.b32.end [16/16] 0.0, 128
        %v2489 = vpop.trf.xlu0
        %v2490 = vpop.trf.xlu0
        %v2491 = vpop.trf.xlu0
        %v2492 = vpop.trf.xlu0
        %v2493 = vpop.trf.xlu0
        %v2494 = vpop.trf.xlu0
        %v2495 = vpop.trf.xlu0
        %v2496 = vpop.trf.xlu0
        %v2497 = vpop.trf.xlu0
        %v2498 = vpop.trf.xlu0
        %v2499 = vpop.trf.xlu0
        %v2500 = vpop.trf.xlu0
        %v2501 = vpop.trf.xlu0
        %v2502 = vpop.trf.xlu0
        %v2503 = vpop.trf.xlu0
        %v2504 = vpop.trf.xlu0
        %2505 = vxpose.xlu0.b32.start [1/16] %v2175, 128
        %2506 = vxpose.xlu0.b32.cont [2/16] %v2311, 128
        %2507 = vxpose.xlu0.b32.cont [3/16] 0.0, 128
        %2508 = vxpose.xlu0.b32.cont [4/16] 0.0, 128
        %2509 = vxpose.xlu0.b32.cont [5/16] 0.0, 128
        %2510 = vxpose.xlu0.b32.cont [6/16] 0.0, 128
        %2511 = vxpose.xlu0.b32.cont [7/16] 0.0, 128
        %2512 = vxpose.xlu0.b32.cont [8/16] 0.0, 128
        %2513 = vxpose.xlu0.b32.cont [9/16] 0.0, 128
        %2514 = vxpose.xlu0.b32.cont [10/16] 0.0, 128
        %2515 = vxpose.xlu0.b32.cont [11/16] 0.0, 128
        %2516 = vxpose.xlu0.b32.cont [12/16] 0.0, 128
        %2517 = vxpose.xlu0.b32.cont [13/16] 0.0, 128
        %2518 = vxpose.xlu0.b32.cont [14/16] 0.0, 128
        %2519 = vxpose.xlu0.b32.cont [15/16] 0.0, 128
        %2520 = vxpose.xlu0.b32.end [16/16] 0.0, 128
        %v2521 = vpop.trf.xlu0
        %v2522 = vpop.trf.xlu0
        %v2523 = vpop.trf.xlu0
        %v2524 = vpop.trf.xlu0
        %v2525 = vpop.trf.xlu0
        %v2526 = vpop.trf.xlu0
        %v2527 = vpop.trf.xlu0
        %v2528 = vpop.trf.xlu0
        %v2529 = vpop.trf.xlu0
        %v2530 = vpop.trf.xlu0
        %v2531 = vpop.trf.xlu0
        %v2532 = vpop.trf.xlu0
        %v2533 = vpop.trf.xlu0
        %v2534 = vpop.trf.xlu0
        %v2535 = vpop.trf.xlu0
        %v2536 = vpop.trf.xlu0
        %2537 = vxpose.xlu0.b32.start [1/16] %v2176, 128
        %2538 = vxpose.xlu0.b32.cont [2/16] %v2312, 128
        %2539 = vxpose.xlu0.b32.cont [3/16] 0.0, 128
        %2540 = vxpose.xlu0.b32.cont [4/16] 0.0, 128
        %2541 = vxpose.xlu0.b32.cont [5/16] 0.0, 128
        %2542 = vxpose.xlu0.b32.cont [6/16] 0.0, 128
        %2543 = vxpose.xlu0.b32.cont [7/16] 0.0, 128
        %2544 = vxpose.xlu0.b32.cont [8/16] 0.0, 128
        %2545 = vxpose.xlu0.b32.cont [9/16] 0.0, 128
        %2546 = vxpose.xlu0.b32.cont [10/16] 0.0, 128
        %2547 = vxpose.xlu0.b32.cont [11/16] 0.0, 128
        %2548 = vxpose.xlu0.b32.cont [12/16] 0.0, 128
        %2549 = vxpose.xlu0.b32.cont [13/16] 0.0, 128
        %2550 = vxpose.xlu0.b32.cont [14/16] 0.0, 128
        %2551 = vxpose.xlu0.b32.cont [15/16] 0.0, 128
        %2552 = vxpose.xlu0.b32.end [16/16] 0.0, 128
        %v2553 = vpop.trf.xlu0
        %v2554 = vpop.trf.xlu0
        %v2555 = vpop.trf.xlu0
        %v2556 = vpop.trf.xlu0
        %v2557 = vpop.trf.xlu0
        %v2558 = vpop.trf.xlu0
        %v2559 = vpop.trf.xlu0
        %v2560 = vpop.trf.xlu0
        %v2561 = vpop.trf.xlu0
        %v2562 = vpop.trf.xlu0
        %v2563 = vpop.trf.xlu0
        %v2564 = vpop.trf.xlu0
        %v2565 = vpop.trf.xlu0
        %v2566 = vpop.trf.xlu0
        %v2567 = vpop.trf.xlu0
        %v2568 = vpop.trf.xlu0
        %v2569 = vcombine.low %v2329, %v2393
        %v2571 = vunpack.c.l.s4 1983009808
        %v2572 = vunpack.c.0.s8 %v2571
        %v2573 = vlaneseq
        %v2574 = vshrl.u32 %v2573, 7
        %v2575 = vsub.s32 %v2572, %v2574
        %v2576 = vrot.slane %v2569, %v2575
        %v2577 = vcombine.low %v2361, %v2425
        %v2579 = vunpack.c.l.s4 1983009808
        %v2580 = vunpack.c.0.s8 %v2579
        %v2581 = vlaneseq
        %v2582 = vshrl.u32 %v2581, 7
        %v2583 = vsub.s32 %v2580, %v2582
        %v2584 = vrot.slane %v2577, %v2583
        %v2585 = vcombine.low %v2457, %v2521
        %v2587 = vunpack.c.l.s4 1983009808
        %v2588 = vunpack.c.0.s8 %v2587
        %v2589 = vlaneseq
        %v2590 = vshrl.u32 %v2589, 7
        %v2591 = vsub.s32 %v2588, %v2590
        %v2592 = vrot.slane %v2585, %v2591
        %v2593 = vcombine.low %v2489, %v2553
        %v2595 = vunpack.c.l.s4 1983009808
        %v2596 = vunpack.c.0.s8 %v2595
        %v2597 = vlaneseq
        %v2598 = vshrl.u32 %v2597, 7
        %v2599 = vsub.s32 %v2596, %v2598
        %v2600 = vrot.slane %v2593, %v2599
        %v2601 = vcombine.low %v2576, %v2584
        %v2602 = vcombine.high %v2576, %v2584
        %v2604 = vunpack.c.l.s4 1934713408
        %v2605 = vunpack.c.0.s8 %v2604
        %v2606 = vlaneseq
        %v2607 = vshrl.u32 %v2606, 7
        %v2608 = vsub.s32 %v2605, %v2607
        %v2609 = vrot.slane %v2601, %v2608
        %v2611 = vunpack.c.l.s4 1934713408
        %v2612 = vunpack.c.0.s8 %v2611
        %v2613 = vlaneseq
        %v2614 = vshrl.u32 %v2613, 7
        %v2615 = vsub.s32 %v2612, %v2614
        %v2616 = vrot.slane %v2602, %v2615
        %v2617 = vcombine.low %v2592, %v2600
        %v2618 = vcombine.high %v2592, %v2600
        %v2620 = vunpack.c.l.s4 1934713408
        %v2621 = vunpack.c.0.s8 %v2620
        %v2622 = vlaneseq
        %v2623 = vshrl.u32 %v2622, 7
        %v2624 = vsub.s32 %v2621, %v2623
        %v2625 = vrot.slane %v2617, %v2624
        %v2627 = vunpack.c.l.s4 1934713408
        %v2628 = vunpack.c.0.s8 %v2627
        %v2629 = vlaneseq
        %v2630 = vshrl.u32 %v2629, 7
        %v2631 = vsub.s32 %v2628, %v2630
        %v2632 = vrot.slane %v2618, %v2631
        %v2633 = vcombine.low %v2609, %v2625
        %v2634 = vcombine.high %v2609, %v2625
        %v2635 = vcombine.low %v2616, %v2632
        %v2636 = vcombine.high %v2616, %v2632
        %v2638 = vsel %vm655, %v1417, 0
        %2640 = vmatprep.subr.mxu0 0.0
        %2641 = vmatpush1.msra.mxu0 0.0
        %2642 = vmatprep.subr.mxu0 0.0
        %2643 = vmatpush1.msra.mxu0 0.0
        %2644 = vmatprep.subr.mxu0 0.0
        %2645 = vmatpush1.msra.mxu0 0.0
        %2646 = vmatprep.subr.mxu0 0.0
        %2647 = vmatpush1.msra.mxu0 0.0
        %2648 = vmatprep.subr.mxu0 0.0
        %2649 = vmatpush1.msra.mxu0 0.0
        %2650 = vmatprep.subr.mxu0 0.0
        %2651 = vmatpush1.msra.mxu0 0.0
        %2652 = vmatprep.subr.mxu0 0.0
        %2653 = vmatpush1.msra.mxu0 0.0
        %2654 = vmatprep.subr.mxu0 0.0
        %2655 = vmatpush1.msra.mxu0 0.0
        %2656 = vmatprep.subr.mxu0 0.0
        %2657 = vmatpush1.msra.mxu0 0.0
        %2658 = vmatprep.subr.mxu0 0.0
        %2659 = vmatpush1.msra.mxu0 0.0
        %2660 = vmatprep.subr.mxu0 0.0
        %2661 = vmatpush1.msra.mxu0 0.0
        %2662 = vmatprep.subr.mxu0 0.0
        %2663 = vmatpush1.msra.mxu0 0.0
        %2664 = vmatprep.subr.mxu0 0.0
        %2665 = vmatpush1.msra.mxu0 0.0
        %2666 = vmatprep.subr.mxu0 0.0
        %2667 = vmatpush1.msra.mxu0 0.0
        %2668 = vmatprep.subr.mxu0 0.0
        %2669 = vmatpush1.msra.mxu0 0.0
        %2670 = vmatprep.subr.mxu0 0.0
        %2671 = vmatpush1.msra.mxu0 %v2633
        %2672 = vmatprep.subr.mxu0 0.0
        %2673 = vmatpush2.msra.mxu0 0.0
        %2674 = vmatprep.subr.mxu0 0.0
        %2675 = vmatpush2.msra.mxu0 0.0
        %2676 = vmatprep.subr.mxu0 0.0
        %2677 = vmatpush2.msra.mxu0 0.0
        %2678 = vmatprep.subr.mxu0 0.0
        %2679 = vmatpush2.msra.mxu0 0.0
        %2680 = vmatprep.subr.mxu0 0.0
        %2681 = vmatpush2.msra.mxu0 0.0
        %2682 = vmatprep.subr.mxu0 0.0
        %2683 = vmatpush2.msra.mxu0 0.0
        %2684 = vmatprep.subr.mxu0 0.0
        %2685 = vmatpush2.msra.mxu0 0.0
        %2686 = vmatprep.subr.mxu0 0.0
        %2687 = vmatpush2.msra.mxu0 0.0
        %2688 = vmatprep.subr.mxu0 0.0
        %2689 = vmatpush2.msra.mxu0 0.0
        %2690 = vmatprep.subr.mxu0 0.0
        %2691 = vmatpush2.msra.mxu0 0.0
        %2692 = vmatprep.subr.mxu0 0.0
        %2693 = vmatpush2.msra.mxu0 0.0
        %2694 = vmatprep.subr.mxu0 0.0
        %2695 = vmatpush2.msra.mxu0 0.0
        %2696 = vmatprep.subr.mxu0 0.0
        %2697 = vmatpush2.msra.mxu0 0.0
        %2698 = vmatprep.subr.mxu0 0.0
        %2699 = vmatpush2.msra.mxu0 0.0
        %2700 = vmatprep.subr.mxu0 0.0
        %2701 = vmatpush2.msra.mxu0 0.0
        %2702 = vmatprep.subr.mxu0 0.0
        %2703 = vmatpush2.msra.mxu0 0.0
        %2704 = vmatprep.mubr.f32.mxu0 0.0
        %2705 = vmatmul.mubr.f32.gmra.mxu0 %v2638
        %v2706 = vpop.f32.mrf.mxu0
        %v2707 = vadd.f32 0.0, %v2706
        %v2708 = vpop.f32.mrf.mxu0
        %2709 = vdwg.mxu0
        %v2711 = vsel %vm655, %v1449, 0
        %2713 = vmatprep.subr.mxu0 0.0
        %2714 = vmatpush1.msra.mxu0 0.0
        %2715 = vmatprep.subr.mxu0 0.0
        %2716 = vmatpush1.msra.mxu0 0.0
        %2717 = vmatprep.subr.mxu0 0.0
        %2718 = vmatpush1.msra.mxu0 0.0
        %2719 = vmatprep.subr.mxu0 0.0
        %2720 = vmatpush1.msra.mxu0 0.0
        %2721 = vmatprep.subr.mxu0 0.0
        %2722 = vmatpush1.msra.mxu0 0.0
        %2723 = vmatprep.subr.mxu0 0.0
        %2724 = vmatpush1.msra.mxu0 0.0
        %2725 = vmatprep.subr.mxu0 0.0
        %2726 = vmatpush1.msra.mxu0 0.0
        %2727 = vmatprep.subr.mxu0 0.0
        %2728 = vmatpush1.msra.mxu0 0.0
        %2729 = vmatprep.subr.mxu0 0.0
        %2730 = vmatpush1.msra.mxu0 0.0
        %2731 = vmatprep.subr.mxu0 0.0
        %2732 = vmatpush1.msra.mxu0 0.0
        %2733 = vmatprep.subr.mxu0 0.0
        %2734 = vmatpush1.msra.mxu0 0.0
        %2735 = vmatprep.subr.mxu0 0.0
        %2736 = vmatpush1.msra.mxu0 0.0
        %2737 = vmatprep.subr.mxu0 0.0
        %2738 = vmatpush1.msra.mxu0 0.0
        %2739 = vmatprep.subr.mxu0 0.0
        %2740 = vmatpush1.msra.mxu0 0.0
        %2741 = vmatprep.subr.mxu0 0.0
        %2742 = vmatpush1.msra.mxu0 0.0
        %2743 = vmatprep.subr.mxu0 0.0
        %2744 = vmatpush1.msra.mxu0 %v2634
        %2745 = vmatprep.subr.mxu0 0.0
        %2746 = vmatpush2.msra.mxu0 0.0
        %2747 = vmatprep.subr.mxu0 0.0
        %2748 = vmatpush2.msra.mxu0 0.0
        %2749 = vmatprep.subr.mxu0 0.0
        %2750 = vmatpush2.msra.mxu0 0.0
        %2751 = vmatprep.subr.mxu0 0.0
        %2752 = vmatpush2.msra.mxu0 0.0
        %2753 = vmatprep.subr.mxu0 0.0
        %2754 = vmatpush2.msra.mxu0 0.0
        %2755 = vmatprep.subr.mxu0 0.0
        %2756 = vmatpush2.msra.mxu0 0.0
        %2757 = vmatprep.subr.mxu0 0.0
        %2758 = vmatpush2.msra.mxu0 0.0
        %2759 = vmatprep.subr.mxu0 0.0
        %2760 = vmatpush2.msra.mxu0 0.0
        %2761 = vmatprep.subr.mxu0 0.0
        %2762 = vmatpush2.msra.mxu0 0.0
        %2763 = vmatprep.subr.mxu0 0.0
        %2764 = vmatpush2.msra.mxu0 0.0
        %2765 = vmatprep.subr.mxu0 0.0
        %2766 = vmatpush2.msra.mxu0 0.0
        %2767 = vmatprep.subr.mxu0 0.0
        %2768 = vmatpush2.msra.mxu0 0.0
        %2769 = vmatprep.subr.mxu0 0.0
        %2770 = vmatpush2.msra.mxu0 0.0
        %2771 = vmatprep.subr.mxu0 0.0
        %2772 = vmatpush2.msra.mxu0 0.0
        %2773 = vmatprep.subr.mxu0 0.0
        %2774 = vmatpush2.msra.mxu0 0.0
        %2775 = vmatprep.subr.mxu0 0.0
        %2776 = vmatpush2.msra.mxu0 0.0
        %2777 = vmatprep.mubr.f32.mxu0 0.0
        %2778 = vmatmul.mubr.f32.gmra.mxu0 %v2711
        %v2779 = vpop.f32.mrf.mxu0
        %v2780 = vadd.f32 0.0, %v2779
        %v2781 = vpop.f32.mrf.mxu0
        %2782 = vdwg.mxu0
        %v2784 = vsel %vm655, %v1481, 0
        %2786 = vmatprep.subr.mxu0 0.0
        %2787 = vmatpush1.msra.mxu0 0.0
        %2788 = vmatprep.subr.mxu0 0.0
        %2789 = vmatpush1.msra.mxu0 0.0
        %2790 = vmatprep.subr.mxu0 0.0
        %2791 = vmatpush1.msra.mxu0 0.0
        %2792 = vmatprep.subr.mxu0 0.0
        %2793 = vmatpush1.msra.mxu0 0.0
        %2794 = vmatprep.subr.mxu0 0.0
        %2795 = vmatpush1.msra.mxu0 0.0
        %2796 = vmatprep.subr.mxu0 0.0
        %2797 = vmatpush1.msra.mxu0 0.0
        %2798 = vmatprep.subr.mxu0 0.0
        %2799 = vmatpush1.msra.mxu0 0.0
        %2800 = vmatprep.subr.mxu0 0.0
        %2801 = vmatpush1.msra.mxu0 0.0
        %2802 = vmatprep.subr.mxu0 0.0
        %2803 = vmatpush1.msra.mxu0 0.0
        %2804 = vmatprep.subr.mxu0 0.0
        %2805 = vmatpush1.msra.mxu0 0.0
        %2806 = vmatprep.subr.mxu0 0.0
        %2807 = vmatpush1.msra.mxu0 0.0
        %2808 = vmatprep.subr.mxu0 0.0
        %2809 = vmatpush1.msra.mxu0 0.0
        %2810 = vmatprep.subr.mxu0 0.0
        %2811 = vmatpush1.msra.mxu0 0.0
        %2812 = vmatprep.subr.mxu0 0.0
        %2813 = vmatpush1.msra.mxu0 0.0
        %2814 = vmatprep.subr.mxu0 0.0
        %2815 = vmatpush1.msra.mxu0 0.0
        %2816 = vmatprep.subr.mxu0 0.0
        %2817 = vmatpush1.msra.mxu0 %v2635
        %2818 = vmatprep.subr.mxu0 0.0
        %2819 = vmatpush2.msra.mxu0 0.0
        %2820 = vmatprep.subr.mxu0 0.0
        %2821 = vmatpush2.msra.mxu0 0.0
        %2822 = vmatprep.subr.mxu0 0.0
        %2823 = vmatpush2.msra.mxu0 0.0
        %2824 = vmatprep.subr.mxu0 0.0
        %2825 = vmatpush2.msra.mxu0 0.0
        %2826 = vmatprep.subr.mxu0 0.0
        %2827 = vmatpush2.msra.mxu0 0.0
        %2828 = vmatprep.subr.mxu0 0.0
        %2829 = vmatpush2.msra.mxu0 0.0
        %2830 = vmatprep.subr.mxu0 0.0
        %2831 = vmatpush2.msra.mxu0 0.0
        %2832 = vmatprep.subr.mxu0 0.0
        %2833 = vmatpush2.msra.mxu0 0.0
        %2834 = vmatprep.subr.mxu0 0.0
        %2835 = vmatpush2.msra.mxu0 0.0
        %2836 = vmatprep.subr.mxu0 0.0
        %2837 = vmatpush2.msra.mxu0 0.0
        %2838 = vmatprep.subr.mxu0 0.0
        %2839 = vmatpush2.msra.mxu0 0.0
        %2840 = vmatprep.subr.mxu0 0.0
        %2841 = vmatpush2.msra.mxu0 0.0
        %2842 = vmatprep.subr.mxu0 0.0
        %2843 = vmatpush2.msra.mxu0 0.0
        %2844 = vmatprep.subr.mxu0 0.0
        %2845 = vmatpush2.msra.mxu0 0.0
        %2846 = vmatprep.subr.mxu0 0.0
        %2847 = vmatpush2.msra.mxu0 0.0
        %2848 = vmatprep.subr.mxu0 0.0
        %2849 = vmatpush2.msra.mxu0 0.0
        %2850 = vmatprep.mubr.f32.mxu0 0.0
        %2851 = vmatmul.mubr.f32.gmra.mxu0 %v2784
        %v2852 = vpop.f32.mrf.mxu0
        %v2853 = vadd.f32 0.0, %v2852
        %v2854 = vpop.f32.mrf.mxu0
        %2855 = vdwg.mxu0
        %v2857 = vsel %vm655, %v1513, 0
        %2859 = vmatprep.subr.mxu0 0.0
        %2860 = vmatpush1.msra.mxu0 0.0
        %2861 = vmatprep.subr.mxu0 0.0
        %2862 = vmatpush1.msra.mxu0 0.0
        %2863 = vmatprep.subr.mxu0 0.0
        %2864 = vmatpush1.msra.mxu0 0.0
        %2865 = vmatprep.subr.mxu0 0.0
        %2866 = vmatpush1.msra.mxu0 0.0
        %2867 = vmatprep.subr.mxu0 0.0
        %2868 = vmatpush1.msra.mxu0 0.0
        %2869 = vmatprep.subr.mxu0 0.0
        %2870 = vmatpush1.msra.mxu0 0.0
        %2871 = vmatprep.subr.mxu0 0.0
        %2872 = vmatpush1.msra.mxu0 0.0
        %2873 = vmatprep.subr.mxu0 0.0
        %2874 = vmatpush1.msra.mxu0 0.0
        %2875 = vmatprep.subr.mxu0 0.0
        %2876 = vmatpush1.msra.mxu0 0.0
        %2877 = vmatprep.subr.mxu0 0.0
        %2878 = vmatpush1.msra.mxu0 0.0
        %2879 = vmatprep.subr.mxu0 0.0
        %2880 = vmatpush1.msra.mxu0 0.0
        %2881 = vmatprep.subr.mxu0 0.0
        %2882 = vmatpush1.msra.mxu0 0.0
        %2883 = vmatprep.subr.mxu0 0.0
        %2884 = vmatpush1.msra.mxu0 0.0
        %2885 = vmatprep.subr.mxu0 0.0
        %2886 = vmatpush1.msra.mxu0 0.0
        %2887 = vmatprep.subr.mxu0 0.0
        %2888 = vmatpush1.msra.mxu0 0.0
        %2889 = vmatprep.subr.mxu0 0.0
        %2890 = vmatpush1.msra.mxu0 %v2636
        %2891 = vmatprep.subr.mxu0 0.0
        %2892 = vmatpush2.msra.mxu0 0.0
        %2893 = vmatprep.subr.mxu0 0.0
        %2894 = vmatpush2.msra.mxu0 0.0
        %2895 = vmatprep.subr.mxu0 0.0
        %2896 = vmatpush2.msra.mxu0 0.0
        %2897 = vmatprep.subr.mxu0 0.0
        %2898 = vmatpush2.msra.mxu0 0.0
        %2899 = vmatprep.subr.mxu0 0.0
        %2900 = vmatpush2.msra.mxu0 0.0
        %2901 = vmatprep.subr.mxu0 0.0
        %2902 = vmatpush2.msra.mxu0 0.0
        %2903 = vmatprep.subr.mxu0 0.0
        %2904 = vmatpush2.msra.mxu0 0.0
        %2905 = vmatprep.subr.mxu0 0.0
        %2906 = vmatpush2.msra.mxu0 0.0
        %2907 = vmatprep.subr.mxu0 0.0
        %2908 = vmatpush2.msra.mxu0 0.0
        %2909 = vmatprep.subr.mxu0 0.0
        %2910 = vmatpush2.msra.mxu0 0.0
        %2911 = vmatprep.subr.mxu0 0.0
        %2912 = vmatpush2.msra.mxu0 0.0
        %2913 = vmatprep.subr.mxu0 0.0
        %2914 = vmatpush2.msra.mxu0 0.0
        %2915 = vmatprep.subr.mxu0 0.0
        %2916 = vmatpush2.msra.mxu0 0.0
        %2917 = vmatprep.subr.mxu0 0.0
        %2918 = vmatpush2.msra.mxu0 0.0
        %2919 = vmatprep.subr.mxu0 0.0
        %2920 = vmatpush2.msra.mxu0 0.0
        %2921 = vmatprep.subr.mxu0 0.0
        %2922 = vmatpush2.msra.mxu0 0.0
        %2923 = vmatprep.mubr.f32.mxu0 0.0
        %2924 = vmatmul.mubr.f32.gmra.mxu0 %v2857
        %v2925 = vpop.f32.mrf.mxu0
        %v2926 = vadd.f32 0.0, %v2925
        %v2927 = vpop.f32.mrf.mxu0
        %2928 = vdwg.mxu0
        %2929 = vxpose.xlu0.b32.start [1/16] %v2707, 128
        %2930 = vxpose.xlu0.b32.cont [2/16] 0.0, 128
        %2931 = vxpose.xlu0.b32.cont [3/16] 0.0, 128
        %2932 = vxpose.xlu0.b32.cont [4/16] 0.0, 128
        %2933 = vxpose.xlu0.b32.cont [5/16] 0.0, 128
        %2934 = vxpose.xlu0.b32.cont [6/16] 0.0, 128
        %2935 = vxpose.xlu0.b32.cont [7/16] 0.0, 128
        %2936 = vxpose.xlu0.b32.cont [8/16] 0.0, 128
        %2937 = vxpose.xlu0.b32.cont [9/16] 0.0, 128
        %2938 = vxpose.xlu0.b32.cont [10/16] 0.0, 128
        %2939 = vxpose.xlu0.b32.cont [11/16] 0.0, 128
        %2940 = vxpose.xlu0.b32.cont [12/16] 0.0, 128
        %2941 = vxpose.xlu0.b32.cont [13/16] 0.0, 128
        %2942 = vxpose.xlu0.b32.cont [14/16] 0.0, 128
        %2943 = vxpose.xlu0.b32.cont [15/16] 0.0, 128
        %2944 = vxpose.xlu0.b32.end [16/16] 0.0, 128
        %v2945 = vpop.trf.xlu0
        %v2946 = vpop.trf.xlu0
        %v2947 = vpop.trf.xlu0
        %v2948 = vpop.trf.xlu0
        %v2949 = vpop.trf.xlu0
        %v2950 = vpop.trf.xlu0
        %v2951 = vpop.trf.xlu0
        %v2952 = vpop.trf.xlu0
        %v2953 = vpop.trf.xlu0
        %v2954 = vpop.trf.xlu0
        %v2955 = vpop.trf.xlu0
        %v2956 = vpop.trf.xlu0
        %v2957 = vpop.trf.xlu0
        %v2958 = vpop.trf.xlu0
        %v2959 = vpop.trf.xlu0
        %v2960 = vpop.trf.xlu0
        %2961 = vxpose.xlu0.b32.start [1/16] %v2780, 128
        %2962 = vxpose.xlu0.b32.cont [2/16] 0.0, 128
        %2963 = vxpose.xlu0.b32.cont [3/16] 0.0, 128
        %2964 = vxpose.xlu0.b32.cont [4/16] 0.0, 128
        %2965 = vxpose.xlu0.b32.cont [5/16] 0.0, 128
        %2966 = vxpose.xlu0.b32.cont [6/16] 0.0, 128
        %2967 = vxpose.xlu0.b32.cont [7/16] 0.0, 128
        %2968 = vxpose.xlu0.b32.cont [8/16] 0.0, 128
        %2969 = vxpose.xlu0.b32.cont [9/16] 0.0, 128
        %2970 = vxpose.xlu0.b32.cont [10/16] 0.0, 128
        %2971 = vxpose.xlu0.b32.cont [11/16] 0.0, 128
        %2972 = vxpose.xlu0.b32.cont [12/16] 0.0, 128
        %2973 = vxpose.xlu0.b32.cont [13/16] 0.0, 128
        %2974 = vxpose.xlu0.b32.cont [14/16] 0.0, 128
        %2975 = vxpose.xlu0.b32.cont [15/16] 0.0, 128
        %2976 = vxpose.xlu0.b32.end [16/16] 0.0, 128
        %v2977 = vpop.trf.xlu0
        %v2978 = vpop.trf.xlu0
        %v2979 = vpop.trf.xlu0
        %v2980 = vpop.trf.xlu0
        %v2981 = vpop.trf.xlu0
        %v2982 = vpop.trf.xlu0
        %v2983 = vpop.trf.xlu0
        %v2984 = vpop.trf.xlu0
        %v2985 = vpop.trf.xlu0
        %v2986 = vpop.trf.xlu0
        %v2987 = vpop.trf.xlu0
        %v2988 = vpop.trf.xlu0
        %v2989 = vpop.trf.xlu0
        %v2990 = vpop.trf.xlu0
        %v2991 = vpop.trf.xlu0
        %v2992 = vpop.trf.xlu0
        %2993 = vxpose.xlu0.b32.start [1/16] %v2853, 128
        %2994 = vxpose.xlu0.b32.cont [2/16] 0.0, 128
        %2995 = vxpose.xlu0.b32.cont [3/16] 0.0, 128
        %2996 = vxpose.xlu0.b32.cont [4/16] 0.0, 128
        %2997 = vxpose.xlu0.b32.cont [5/16] 0.0, 128
        %2998 = vxpose.xlu0.b32.cont [6/16] 0.0, 128
        %2999 = vxpose.xlu0.b32.cont [7/16] 0.0, 128
        %3000 = vxpose.xlu0.b32.cont [8/16] 0.0, 128
        %3001 = vxpose.xlu0.b32.cont [9/16] 0.0, 128
        %3002 = vxpose.xlu0.b32.cont [10/16] 0.0, 128
        %3003 = vxpose.xlu0.b32.cont [11/16] 0.0, 128
        %3004 = vxpose.xlu0.b32.cont [12/16] 0.0, 128
        %3005 = vxpose.xlu0.b32.cont [13/16] 0.0, 128
        %3006 = vxpose.xlu0.b32.cont [14/16] 0.0, 128
        %3007 = vxpose.xlu0.b32.cont [15/16] 0.0, 128
        %3008 = vxpose.xlu0.b32.end [16/16] 0.0, 128
        %v3009 = vpop.trf.xlu0
        %v3010 = vpop.trf.xlu0
        %v3011 = vpop.trf.xlu0
        %v3012 = vpop.trf.xlu0
        %v3013 = vpop.trf.xlu0
        %v3014 = vpop.trf.xlu0
        %v3015 = vpop.trf.xlu0
        %v3016 = vpop.trf.xlu0
        %v3017 = vpop.trf.xlu0
        %v3018 = vpop.trf.xlu0
        %v3019 = vpop.trf.xlu0
        %v3020 = vpop.trf.xlu0
        %v3021 = vpop.trf.xlu0
        %v3022 = vpop.trf.xlu0
        %v3023 = vpop.trf.xlu0
        %v3024 = vpop.trf.xlu0
        %3025 = vxpose.xlu0.b32.start [1/16] %v2926, 128
        %3026 = vxpose.xlu0.b32.cont [2/16] 0.0, 128
        %3027 = vxpose.xlu0.b32.cont [3/16] 0.0, 128
        %3028 = vxpose.xlu0.b32.cont [4/16] 0.0, 128
        %3029 = vxpose.xlu0.b32.cont [5/16] 0.0, 128
        %3030 = vxpose.xlu0.b32.cont [6/16] 0.0, 128
        %3031 = vxpose.xlu0.b32.cont [7/16] 0.0, 128
        %3032 = vxpose.xlu0.b32.cont [8/16] 0.0, 128
        %3033 = vxpose.xlu0.b32.cont [9/16] 0.0, 128
        %3034 = vxpose.xlu0.b32.cont [10/16] 0.0, 128
        %3035 = vxpose.xlu0.b32.cont [11/16] 0.0, 128
        %3036 = vxpose.xlu0.b32.cont [12/16] 0.0, 128
        %3037 = vxpose.xlu0.b32.cont [13/16] 0.0, 128
        %3038 = vxpose.xlu0.b32.cont [14/16] 0.0, 128
        %3039 = vxpose.xlu0.b32.cont [15/16] 0.0, 128
        %3040 = vxpose.xlu0.b32.end [16/16] 0.0, 128
        %v3041 = vpop.trf.xlu0
        %v3042 = vpop.trf.xlu0
        %v3043 = vpop.trf.xlu0
        %v3044 = vpop.trf.xlu0
        %v3045 = vpop.trf.xlu0
        %v3046 = vpop.trf.xlu0
        %v3047 = vpop.trf.xlu0
        %v3048 = vpop.trf.xlu0
        %v3049 = vpop.trf.xlu0
        %v3050 = vpop.trf.xlu0
        %v3051 = vpop.trf.xlu0
        %v3052 = vpop.trf.xlu0
        %v3053 = vpop.trf.xlu0
        %v3054 = vpop.trf.xlu0
        %v3055 = vpop.trf.xlu0
        %v3056 = vpop.trf.xlu0
        %v3057 = vcombine.low %v2945, %v3009
        %v3058 = vcombine.high %v2945, %v3009
        %v3060 = vunpack.c.l.s4 1983009808
        %v3061 = vunpack.c.0.s8 %v3060
        %v3062 = vlaneseq
        %v3063 = vshrl.u32 %v3062, 7
        %v3064 = vsub.s32 %v3061, %v3063
        %v3065 = vrot.slane %v3057, %v3064
        %v3067 = vunpack.c.l.s4 1983009808
        %v3068 = vunpack.c.0.s8 %v3067
        %v3069 = vlaneseq
        %v3070 = vshrl.u32 %v3069, 7
        %v3071 = vsub.s32 %v3068, %v3070
        %v3072 = vrot.slane %v3058, %v3071
        %v3073 = vcombine.low %v2977, %v3041
        %v3074 = vcombine.high %v2977, %v3041
        %v3076 = vunpack.c.l.s4 1983009808
        %v3077 = vunpack.c.0.s8 %v3076
        %v3078 = vlaneseq
        %v3079 = vshrl.u32 %v3078, 7
        %v3080 = vsub.s32 %v3077, %v3079
        %v3081 = vrot.slane %v3073, %v3080
        %v3083 = vunpack.c.l.s4 1983009808
        %v3084 = vunpack.c.0.s8 %v3083
        %v3085 = vlaneseq
        %v3086 = vshrl.u32 %v3085, 7
        %v3087 = vsub.s32 %v3084, %v3086
        %v3088 = vrot.slane %v3074, %v3087
        %v3089 = vcombine.low %v3065, %v3081
        %v3090 = vcombine.high %v3065, %v3081
        %v3092 = vunpack.c.l.s4 1934713408
        %v3093 = vunpack.c.0.s8 %v3092
        %v3094 = vlaneseq
        %v3095 = vshrl.u32 %v3094, 7
        %v3096 = vsub.s32 %v3093, %v3095
        %v3097 = vrot.slane %v3089, %v3096
        %v3099 = vunpack.c.l.s4 1934713408
        %v3100 = vunpack.c.0.s8 %v3099
        %v3101 = vlaneseq
        %v3102 = vshrl.u32 %v3101, 7
        %v3103 = vsub.s32 %v3100, %v3102
        %v3104 = vrot.slane %v3090, %v3103
        %v3105 = vcombine.low %v3072, %v3088
        %v3106 = vcombine.high %v3072, %v3088
        %v3108 = vunpack.c.l.s4 1934713408
        %v3109 = vunpack.c.0.s8 %v3108
        %v3110 = vlaneseq
        %v3111 = vshrl.u32 %v3110, 7
        %v3112 = vsub.s32 %v3109, %v3111
        %v3113 = vrot.slane %v3105, %v3112
        %v3115 = vunpack.c.l.s4 1934713408
        %v3116 = vunpack.c.0.s8 %v3115
        %v3117 = vlaneseq
        %v3118 = vshrl.u32 %v3117, 7
        %v3119 = vsub.s32 %v3116, %v3118
        %v3120 = vrot.slane %v3106, %v3119
        %v3121 = vcombine.high %v3097, 0.0
        %v3122 = vcombine.high %v3104, 0.0
        %v3123 = vcombine.high %v3113, 0.0
        %v3124 = vcombine.high %v3120, 0.0
        %v3125 = vcombine.low %v2946, %v3010
        %v3126 = vcombine.high %v2946, %v3010
        %v3128 = vunpack.c.l.s4 1983009808
        %v3129 = vunpack.c.0.s8 %v3128
        %v3130 = vlaneseq
        %v3131 = vshrl.u32 %v3130, 7
        %v3132 = vsub.s32 %v3129, %v3131
        %v3133 = vrot.slane %v3125, %v3132
        %v3135 = vunpack.c.l.s4 1983009808
        %v3136 = vunpack.c.0.s8 %v3135
        %v3137 = vlaneseq
        %v3138 = vshrl.u32 %v3137, 7
        %v3139 = vsub.s32 %v3136, %v3138
        %v3140 = vrot.slane %v3126, %v3139
        %v3141 = vcombine.low %v2978, %v3042
        %v3142 = vcombine.high %v2978, %v3042
        %v3144 = vunpack.c.l.s4 1983009808
        %v3145 = vunpack.c.0.s8 %v3144
        %v3146 = vlaneseq
        %v3147 = vshrl.u32 %v3146, 7
        %v3148 = vsub.s32 %v3145, %v3147
        %v3149 = vrot.slane %v3141, %v3148
        %v3151 = vunpack.c.l.s4 1983009808
        %v3152 = vunpack.c.0.s8 %v3151
        %v3153 = vlaneseq
        %v3154 = vshrl.u32 %v3153, 7
        %v3155 = vsub.s32 %v3152, %v3154
        %v3156 = vrot.slane %v3142, %v3155
        %v3157 = vcombine.low %v3133, %v3149
        %v3158 = vcombine.high %v3133, %v3149
        %v3160 = vunpack.c.l.s4 1934713408
        %v3161 = vunpack.c.0.s8 %v3160
        %v3162 = vlaneseq
        %v3163 = vshrl.u32 %v3162, 7
        %v3164 = vsub.s32 %v3161, %v3163
        %v3165 = vrot.slane %v3157, %v3164
        %v3167 = vunpack.c.l.s4 1934713408
        %v3168 = vunpack.c.0.s8 %v3167
        %v3169 = vlaneseq
        %v3170 = vshrl.u32 %v3169, 7
        %v3171 = vsub.s32 %v3168, %v3170
        %v3172 = vrot.slane %v3158, %v3171
        %v3173 = vcombine.low %v3140, %v3156
        %v3174 = vcombine.high %v3140, %v3156
        %v3176 = vunpack.c.l.s4 1934713408
        %v3177 = vunpack.c.0.s8 %v3176
        %v3178 = vlaneseq
        %v3179 = vshrl.u32 %v3178, 7
        %v3180 = vsub.s32 %v3177, %v3179
        %v3181 = vrot.slane %v3173, %v3180
        %v3183 = vunpack.c.l.s4 1934713408
        %v3184 = vunpack.c.0.s8 %v3183
        %v3185 = vlaneseq
        %v3186 = vshrl.u32 %v3185, 7
        %v3187 = vsub.s32 %v3184, %v3186
        %v3188 = vrot.slane %v3174, %v3187
        %v3189 = vcombine.high %v3165, 0.0
        %v3190 = vcombine.high %v3172, 0.0
        %v3191 = vcombine.high %v3181, 0.0
        %v3192 = vcombine.high %v3188, 0.0
        %v3193 = vcombine.low %v3097, %v3104
        %v3195 = vunpack.c.l.s4 1983009808
        %v3196 = vunpack.c.0.s8 %v3195
        %v3197 = vlaneseq
        %v3198 = vshrl.u32 %v3197, 7
        %v3199 = vsub.s32 %v3196, %v3198
        %v3200 = vrot.slane %v3193, %v3199
        %v3201 = vcombine.low %v3121, %v3122
        %v3203 = vunpack.c.l.s4 1983009808
        %v3204 = vunpack.c.0.s8 %v3203
        %v3205 = vlaneseq
        %v3206 = vshrl.u32 %v3205, 7
        %v3207 = vsub.s32 %v3204, %v3206
        %v3208 = vrot.slane %v3201, %v3207
        %v3209 = vcombine.low %v3113, %v3120
        %v3211 = vunpack.c.l.s4 1983009808
        %v3212 = vunpack.c.0.s8 %v3211
        %v3213 = vlaneseq
        %v3214 = vshrl.u32 %v3213, 7
        %v3215 = vsub.s32 %v3212, %v3214
        %v3216 = vrot.slane %v3209, %v3215
        %v3217 = vcombine.low %v3123, %v3124
        %v3219 = vunpack.c.l.s4 1983009808
        %v3220 = vunpack.c.0.s8 %v3219
        %v3221 = vlaneseq
        %v3222 = vshrl.u32 %v3221, 7
        %v3223 = vsub.s32 %v3220, %v3222
        %v3224 = vrot.slane %v3217, %v3223
        %v3225 = vcombine.low %v3200, %v3208
        %v3226 = vcombine.high %v3200, %v3208
        %v3228 = vunpack.c.l.s4 1934713408
        %v3229 = vunpack.c.0.s8 %v3228
        %v3230 = vlaneseq
        %v3231 = vshrl.u32 %v3230, 7
        %v3232 = vsub.s32 %v3229, %v3231
        %v3233 = vrot.slane %v3225, %v3232
        %v3235 = vunpack.c.l.s4 1934713408
        %v3236 = vunpack.c.0.s8 %v3235
        %v3237 = vlaneseq
        %v3238 = vshrl.u32 %v3237, 7
        %v3239 = vsub.s32 %v3236, %v3238
        %v3240 = vrot.slane %v3226, %v3239
        %v3241 = vcombine.low %v3216, %v3224
        %v3242 = vcombine.high %v3216, %v3224
        %v3244 = vunpack.c.l.s4 1934713408
        %v3245 = vunpack.c.0.s8 %v3244
        %v3246 = vlaneseq
        %v3247 = vshrl.u32 %v3246, 7
        %v3248 = vsub.s32 %v3245, %v3247
        %v3249 = vrot.slane %v3241, %v3248
        %v3251 = vunpack.c.l.s4 1934713408
        %v3252 = vunpack.c.0.s8 %v3251
        %v3253 = vlaneseq
        %v3254 = vshrl.u32 %v3253, 7
        %v3255 = vsub.s32 %v3252, %v3254
        %v3256 = vrot.slane %v3242, %v3255
        %v3257 = vcombine.low %v3233, %v3249
        %v3258 = vcombine.high %v3233, %v3249
        %v3259 = vcombine.low %v3240, %v3256
        %v3260 = vcombine.high %v3240, %v3256
        %v3261 = vcombine.low %v3165, %v3172
        %v3263 = vunpack.c.l.s4 1983009808
        %v3264 = vunpack.c.0.s8 %v3263
        %v3265 = vlaneseq
        %v3266 = vshrl.u32 %v3265, 7
        %v3267 = vsub.s32 %v3264, %v3266
        %v3268 = vrot.slane %v3261, %v3267
        %v3269 = vcombine.low %v3189, %v3190
        %v3271 = vunpack.c.l.s4 1983009808
        %v3272 = vunpack.c.0.s8 %v3271
        %v3273 = vlaneseq
        %v3274 = vshrl.u32 %v3273, 7
        %v3275 = vsub.s32 %v3272, %v3274
        %v3276 = vrot.slane %v3269, %v3275
        %v3277 = vcombine.low %v3181, %v3188
        %v3279 = vunpack.c.l.s4 1983009808
        %v3280 = vunpack.c.0.s8 %v3279
        %v3281 = vlaneseq
        %v3282 = vshrl.u32 %v3281, 7
        %v3283 = vsub.s32 %v3280, %v3282
        %v3284 = vrot.slane %v3277, %v3283
        %v3285 = vcombine.low %v3191, %v3192
        %v3287 = vunpack.c.l.s4 1983009808
        %v3288 = vunpack.c.0.s8 %v3287
        %v3289 = vlaneseq
        %v3290 = vshrl.u32 %v3289, 7
        %v3291 = vsub.s32 %v3288, %v3290
        %v3292 = vrot.slane %v3285, %v3291
        %v3293 = vcombine.low %v3268, %v3276
        %v3294 = vcombine.high %v3268, %v3276
        %v3296 = vunpack.c.l.s4 1934713408
        %v3297 = vunpack.c.0.s8 %v3296
        %v3298 = vlaneseq
        %v3299 = vshrl.u32 %v3298, 7
        %v3300 = vsub.s32 %v3297, %v3299
        %v3301 = vrot.slane %v3293, %v3300
        %v3303 = vunpack.c.l.s4 1934713408
        %v3304 = vunpack.c.0.s8 %v3303
        %v3305 = vlaneseq
        %v3306 = vshrl.u32 %v3305, 7
        %v3307 = vsub.s32 %v3304, %v3306
        %v3308 = vrot.slane %v3294, %v3307
        %v3309 = vcombine.low %v3284, %v3292
        %v3310 = vcombine.high %v3284, %v3292
        %v3312 = vunpack.c.l.s4 1934713408
        %v3313 = vunpack.c.0.s8 %v3312
        %v3314 = vlaneseq
        %v3315 = vshrl.u32 %v3314, 7
        %v3316 = vsub.s32 %v3313, %v3315
        %v3317 = vrot.slane %v3309, %v3316
        %v3319 = vunpack.c.l.s4 1934713408
        %v3320 = vunpack.c.0.s8 %v3319
        %v3321 = vlaneseq
        %v3322 = vshrl.u32 %v3321, 7
        %v3323 = vsub.s32 %v3320, %v3322
        %v3324 = vrot.slane %v3310, %v3323
        %v3325 = vcombine.low %v3301, %v3317
        %v3326 = vcombine.high %v3301, %v3317
        %v3327 = vcombine.low %v3308, %v3324
        %v3328 = vcombine.high %v3308, %v3324
        %3331 = vrot.lane.b32.xlu0 %v3258, 8
        %v3332 = vpop.permute.xlu0 %3331
        %3333 = vrot.lane.b32.xlu0 %v3326, 8
        %v3334 = vpop.permute.xlu0 %3333
        %3339 = vrot.lane.b32.xlu0 %v3259, 16
        %v3340 = vpop.permute.xlu0 %3339
        %3341 = vrot.lane.b32.xlu0 %v3327, 16
        %v3342 = vpop.permute.xlu0 %3341
        %3347 = vrot.lane.b32.xlu0 %v3260, 24
        %v3348 = vpop.permute.xlu0 %3347
        %3349 = vrot.lane.b32.xlu0 %v3328, 24
        %v3350 = vpop.permute.xlu0 %3349
        %v3353 = vsel %vm655, %v3257, %v3332
        %v3354 = vsel %vm655, %v3325, %v3334
        %vm3355 = vcmask 130048
        %v3356 = vsel %vm3355, %v3353, %v3340
        %v3357 = vsel %vm3355, %v3354, %v3342
        %vm3358 = vcmask 195584
        %v3359 = vsel %vm3358, %v3356, %v3348
        %v3360 = vsel %vm3358, %v3357, %v3350
        %v3361 = vadd.f32 %v486, %v3359
        %v3362 = vadd.f32 %v487, %v3360
        %vm3363 = vcmask 261120
        %v3364 = vsel %vm3363, %v3361, 0.0
        %v3365 = vsel %vm3363, %v3362, 0.0
        %v3366 = vadd.f32 %v3364, %v3365
        %v3367 = vrot.slane %v3366, 4
        %v3368 = vadd.f32 %v3366, %v3367
        %v3369 = vrot.slane %v3368, 2
        %v3370 = vadd.f32 %v3368, %v3369
        %v3371 = vrot.slane %v3370, 1
        %v3372 = vadd.f32 %v3370, %v3371
        %v3373 = vrcp.pop 16.0
        %v3374 = vmul.f32 %v3372, %v3373
        %v3375 = vsub.f32 %v3361, %v3374
        %v3376 = vsub.f32 %v3362, %v3374
        %v3377 = vmul.f32 %v3375, %v3375
        %v3378 = vmul.f32 %v3376, %v3376
        %v3379 = vsel %vm3363, %v3377, 0.0
        %v3380 = vsel %vm3363, %v3378, 0.0
        %v3381 = vadd.f32 %v3379, %v3380
        %v3382 = vrot.slane %v3381, 4
        %v3383 = vadd.f32 %v3381, %v3382
        %v3384 = vrot.slane %v3383, 2
        %v3385 = vadd.f32 %v3383, %v3384
        %v3386 = vrot.slane %v3385, 1
        %v3387 = vadd.f32 %v3385, %v3386
        %v3388 = vmul.f32 %v3387, %v3373
        %v3389 = vadd.f32 %v3388, 1e-05
        %v3390 = vrsqrt.pop %v3389
        %v3391 = vmul.f32 %v3389, %v3390
        %vm3392 = vcmp.eq.f32.partialorder %v3389, inf
        %v3393 = vsel %vm3392, %v3389, %v3391
        %vm3394 = vcmp.eq.f32.partialorder %v3389, 0.0
        %v3395 = vand.u32 %v3389, 2147483648
        %v3396 = vsel %vm3394, %v3395, %v3393
        %v3397 = vrcp.pop %v3396
        %v3398 = vmul.f32 %v3375, %v3397
        %v3399 = vmul.f32 %v3376, %v3397
        %v3400 = vld [vmem:[%s451] sm:$0x1]
        %v3402 = vlaneseq
        %v3403 = vshrl.u32 %v3402, 7
        %v3404 = vsub.s32 0, %v3403
        %v3405 = vrot.slane %v3400, %v3404
        %v3407 = vmul.f32 %v3398, %v3405
        %v3408 = vmul.f32 %v3399, %v3405
        %v3409 = vld [vmem:[%s454] sm:$0x1]
        %v3411 = vlaneseq
        %v3412 = vshrl.u32 %v3411, 7
        %v3413 = vsub.s32 0, %v3412
        %v3414 = vrot.slane %v3409, %v3413
        %v3416 = vadd.f32 %v3407, %v3414
        %v3417 = vadd.f32 %v3408, %v3414
        %v3418 = vld [vmem:[%s459] sm:$0xff]
        %v3419 = vld [vmem:[%s459 + $0x8] sm:$0xff]
        %v3420 = vld [vmem:[%s459 + $0x10] sm:$0xff]
        %v3421 = vld [vmem:[%s459 + $0x18] sm:$0xff]
        %v3422 = vld [vmem:[%s462] sm:$0x1]
        %v3424 = vlaneseq
        %v3425 = vshrl.u32 %v3424, 7
        %v3426 = vsub.s32 0, %v3425
        %v3427 = vrot.slane %v3422, %v3426
        %v3430 = vsel %vm3363, %v3416, 0
        %v3433 = vsel %vm3363, %v3417, 0
        %3435 = vmatprep.subr.mxu0 0.0
        %3436 = vmatpush1.msra.mxu0 0.0
        %3437 = vmatprep.subr.mxu0 0.0
        %3438 = vmatpush1.msra.mxu0 0.0
        %3439 = vmatprep.subr.mxu0 0.0
        %3440 = vmatpush1.msra.mxu0 0.0
        %3441 = vmatprep.subr.mxu0 0.0
        %3442 = vmatpush1.msra.mxu0 0.0
        %3443 = vmatprep.subr.mxu0 0.0
        %3444 = vmatpush1.msra.mxu0 0.0
        %3445 = vmatprep.subr.mxu0 0.0
        %3446 = vmatpush1.msra.mxu0 0.0
        %3447 = vmatprep.subr.mxu0 0.0
        %3448 = vmatpush1.msra.mxu0 0.0
        %3449 = vmatprep.subr.mxu0 0.0
        %3450 = vmatpush1.msra.mxu0 0.0
        %3451 = vmatprep.subr.mxu0 0.0
        %3452 = vmatpush1.msra.mxu0 0.0
        %3453 = vmatprep.subr.mxu0 0.0
        %3454 = vmatpush1.msra.mxu0 0.0
        %3455 = vmatprep.subr.mxu0 0.0
        %3456 = vmatpush1.msra.mxu0 0.0
        %3457 = vmatprep.subr.mxu0 0.0
        %3458 = vmatpush1.msra.mxu0 0.0
        %3459 = vmatprep.subr.mxu0 0.0
        %3460 = vmatpush1.msra.mxu0 %v3421
        %3461 = vmatprep.subr.mxu0 0.0
        %3462 = vmatpush1.msra.mxu0 %v3420
        %3463 = vmatprep.subr.mxu0 0.0
        %3464 = vmatpush1.msra.mxu0 %v3419
        %3465 = vmatprep.subr.mxu0 0.0
        %3466 = vmatpush1.msra.mxu0 %v3418
        %3467 = vmatprep.subr.mxu0 0.0
        %3468 = vmatpush2.msra.mxu0 0.0
        %3469 = vmatprep.subr.mxu0 0.0
        %3470 = vmatpush2.msra.mxu0 0.0
        %3471 = vmatprep.subr.mxu0 0.0
        %3472 = vmatpush2.msra.mxu0 0.0
        %3473 = vmatprep.subr.mxu0 0.0
        %3474 = vmatpush2.msra.mxu0 0.0
        %3475 = vmatprep.subr.mxu0 0.0
        %3476 = vmatpush2.msra.mxu0 0.0
        %3477 = vmatprep.subr.mxu0 0.0
        %3478 = vmatpush2.msra.mxu0 0.0
        %3479 = vmatprep.subr.mxu0 0.0
        %3480 = vmatpush2.msra.mxu0 0.0
        %3481 = vmatprep.subr.mxu0 0.0
        %3482 = vmatpush2.msra.mxu0 0.0
        %3483 = vmatprep.subr.mxu0 0.0
        %3484 = vmatpush2.msra.mxu0 0.0
        %3485 = vmatprep.subr.mxu0 0.0
        %3486 = vmatpush2.msra.mxu0 0.0
        %3487 = vmatprep.subr.mxu0 0.0
        %3488 = vmatpush2.msra.mxu0 0.0
        %3489 = vmatprep.subr.mxu0 0.0
        %3490 = vmatpush2.msra.mxu0 0.0
        %3491 = vmatprep.subr.mxu0 0.0
        %3492 = vmatpush2.msra.mxu0 0.0
        %3493 = vmatprep.subr.mxu0 0.0
        %3494 = vmatpush2.msra.mxu0 0.0
        %3495 = vmatprep.subr.mxu0 0.0
        %3496 = vmatpush2.msra.mxu0 0.0
        %3497 = vmatprep.subr.mxu0 0.0
        %3498 = vmatpush2.msra.mxu0 0.0
        %3499 = vmatprep.mubr.f32.mxu0 0.0
        %3500 = vmatmul.mubr.f32.gmra.mxu0 %v3430
        %v3501 = vpop.f32.mrf.mxu0
        %v3502 = vadd.f32 %v3427, %v3501
        %v3503 = vpop.f32.mrf.mxu0
        %3504 = vmatprep.mubr.f32.mxu0 0.0
        %3505 = vmatmul.mubr.f32.gmra.mxu0 %v3433
        %v3506 = vpop.f32.mrf.mxu0
        %v3507 = vadd.f32 %v3427, %v3506
        %v3508 = vpop.f32.mrf.mxu0
        %3509 = vdwg.mxu0
        %v3510 = vmax.f32 %v3502, 0.0
        %v3511 = vmax.f32 %v3507, 0.0
        %v3512 = vld [vmem:[%s467] sm:$0xff]
        %v3513 = vld [vmem:[%s467 + $0x8] sm:$0xff]
        %v3514 = vld [vmem:[%s467 + $0x10] sm:$0xff]
        %v3515 = vld [vmem:[%s467 + $0x18] sm:$0xff]
        %v3516 = vld [vmem:[%s467 + $0x20] sm:$0xff]
        %v3517 = vld [vmem:[%s467 + $0x28] sm:$0xff]
        %v3518 = vld [vmem:[%s467 + $0x30] sm:$0xff]
        %v3519 = vld [vmem:[%s467 + $0x38] sm:$0xff]
        %v3520 = vld [vmem:[%s470] sm:$0x1]
        %v3522 = vlaneseq
        %v3523 = vshrl.u32 %v3522, 7
        %v3524 = vsub.s32 0, %v3523
        %v3525 = vrot.slane %v3520, %v3524
        %vm3527 = vcmask 523264
        %v3529 = vsel %vm3527, %v3510, 0
        %v3532 = vsel %vm3527, %v3511, 0
        %3534 = vmatprep.subr.mxu0 0.0
        %3535 = vmatpush1.msra.mxu0 0.0
        %3536 = vmatprep.subr.mxu0 0.0
        %3537 = vmatpush1.msra.mxu0 0.0
        %3538 = vmatprep.subr.mxu0 0.0
        %3539 = vmatpush1.msra.mxu0 0.0
        %3540 = vmatprep.subr.mxu0 0.0
        %3541 = vmatpush1.msra.mxu0 0.0
        %3542 = vmatprep.subr.mxu0 0.0
        %3543 = vmatpush1.msra.mxu0 0.0
        %3544 = vmatprep.subr.mxu0 0.0
        %3545 = vmatpush1.msra.mxu0 0.0
        %3546 = vmatprep.subr.mxu0 0.0
        %3547 = vmatpush1.msra.mxu0 0.0
        %3548 = vmatprep.subr.mxu0 0.0
        %3549 = vmatpush1.msra.mxu0 0.0
        %3550 = vmatprep.subr.mxu0 0.0
        %3551 = vmatpush1.msra.mxu0 %v3519
        %3552 = vmatprep.subr.mxu0 0.0
        %3553 = vmatpush1.msra.mxu0 %v3518
        %3554 = vmatprep.subr.mxu0 0.0
        %3555 = vmatpush1.msra.mxu0 %v3517
        %3556 = vmatprep.subr.mxu0 0.0
        %3557 = vmatpush1.msra.mxu0 %v3516
        %3558 = vmatprep.subr.mxu0 0.0
        %3559 = vmatpush1.msra.mxu0 %v3515
        %3560 = vmatprep.subr.mxu0 0.0
        %3561 = vmatpush1.msra.mxu0 %v3514
        %3562 = vmatprep.subr.mxu0 0.0
        %3563 = vmatpush1.msra.mxu0 %v3513
        %3564 = vmatprep.subr.mxu0 0.0
        %3565 = vmatpush1.msra.mxu0 %v3512
        %3566 = vmatprep.subr.mxu0 0.0
        %3567 = vmatpush2.msra.mxu0 0.0
        %3568 = vmatprep.subr.mxu0 0.0
        %3569 = vmatpush2.msra.mxu0 0.0
        %3570 = vmatprep.subr.mxu0 0.0
        %3571 = vmatpush2.msra.mxu0 0.0
        %3572 = vmatprep.subr.mxu0 0.0
        %3573 = vmatpush2.msra.mxu0 0.0
        %3574 = vmatprep.subr.mxu0 0.0
        %3575 = vmatpush2.msra.mxu0 0.0
        %3576 = vmatprep.subr.mxu0 0.0
        %3577 = vmatpush2.msra.mxu0 0.0
        %3578 = vmatprep.subr.mxu0 0.0
        %3579 = vmatpush2.msra.mxu0 0.0
        %3580 = vmatprep.subr.mxu0 0.0
        %3581 = vmatpush2.msra.mxu0 0.0
        %3582 = vmatprep.subr.mxu0 0.0
        %3583 = vmatpush2.msra.mxu0 0.0
        %3584 = vmatprep.subr.mxu0 0.0
        %3585 = vmatpush2.msra.mxu0 0.0
        %3586 = vmatprep.subr.mxu0 0.0
        %3587 = vmatpush2.msra.mxu0 0.0
        %3588 = vmatprep.subr.mxu0 0.0
        %3589 = vmatpush2.msra.mxu0 0.0
        %3590 = vmatprep.subr.mxu0 0.0
        %3591 = vmatpush2.msra.mxu0 0.0
        %3592 = vmatprep.subr.mxu0 0.0
        %3593 = vmatpush2.msra.mxu0 0.0
        %3594 = vmatprep.subr.mxu0 0.0
        %3595 = vmatpush2.msra.mxu0 0.0
        %3596 = vmatprep.subr.mxu0 0.0
        %3597 = vmatpush2.msra.mxu0 0.0
        %3598 = vmatprep.mubr.f32.mxu0 0.0
        %3599 = vmatmul.mubr.f32.gmra.mxu0 %v3529
        %v3600 = vpop.f32.mrf.mxu0
        %v3601 = vadd.f32 %v3525, %v3600
        %v3602 = vpop.f32.mrf.mxu0
        %3603 = vmatprep.mubr.f32.mxu0 0.0
        %3604 = vmatmul.mubr.f32.gmra.mxu0 %v3532
        %v3605 = vpop.f32.mrf.mxu0
        %v3606 = vadd.f32 %v3525, %v3605
        %v3607 = vpop.f32.mrf.mxu0
        %3608 = vdwg.mxu0
        %v3609 = vadd.f32 %v3416, %v3601
        %v3610 = vadd.f32 %v3417, %v3606
        %v3611 = vsel %vm3363, %v3609, 0.0
        %v3612 = vsel %vm3363, %v3610, 0.0
        %v3613 = vadd.f32 %v3611, %v3612
        %v3614 = vrot.slane %v3613, 4
        %v3615 = vadd.f32 %v3613, %v3614
        %v3616 = vrot.slane %v3615, 2
        %v3617 = vadd.f32 %v3615, %v3616
        %v3618 = vrot.slane %v3617, 1
        %v3619 = vadd.f32 %v3617, %v3618
        %v3620 = vmul.f32 %v3619, %v3373
        %v3621 = vsub.f32 %v3609, %v3620
        %v3622 = vsub.f32 %v3610, %v3620
        %v3623 = vmul.f32 %v3621, %v3621
        %v3624 = vmul.f32 %v3622, %v3622
        %v3625 = vsel %vm3363, %v3623, 0.0
        %v3626 = vsel %vm3363, %v3624, 0.0
        %v3627 = vadd.f32 %v3625, %v3626
        %v3628 = vrot.slane %v3627, 4
        %v3629 = vadd.f32 %v3627, %v3628
        %v3630 = vrot.slane %v3629, 2
        %v3631 = vadd.f32 %v3629, %v3630
        %v3632 = vrot.slane %v3631, 1
        %v3633 = vadd.f32 %v3631, %v3632
        %v3634 = vmul.f32 %v3633, %v3373
        %v3635 = vadd.f32 %v3634, 1e-05
        %v3636 = vrsqrt.pop %v3635
        %v3637 = vmul.f32 %v3635, %v3636
        %vm3638 = vcmp.eq.f32.partialorder %v3635, inf
        %v3639 = vsel %vm3638, %v3635, %v3637
        %vm3640 = vcmp.eq.f32.partialorder %v3635, 0.0
        %v3641 = vand.u32 %v3635, 2147483648
        %v3642 = vsel %vm3640, %v3641, %v3639
        %v3643 = vrcp.pop %v3642
        %v3644 = vmul.f32 %v3621, %v3643
        %v3645 = vmul.f32 %v3622, %v3643
        %v3646 = vld [vmem:[%s473] sm:$0x1]
        %v3648 = vlaneseq
        %v3649 = vshrl.u32 %v3648, 7
        %v3650 = vsub.s32 0, %v3649
        %v3651 = vrot.slane %v3646, %v3650
        %v3653 = vmul.f32 %v3644, %v3651
        %v3654 = vmul.f32 %v3645, %v3651
        %v3655 = vld [vmem:[%s476] sm:$0x1]
        %v3657 = vlaneseq
        %v3658 = vshrl.u32 %v3657, 7
        %v3659 = vsub.s32 0, %v3658
        %v3660 = vrot.slane %v3655, %v3659
        %v3662 = vadd.f32 %v3653, %v3660
        %v3663 = vadd.f32 %v3654, %v3660
        %3664 = vst.msk [vmem:[#allocation2] sm:$0xff] %vm3363, %v3662
        %3665 = vst.msk [vmem:[#allocation2 + $0x8] sm:$0xff] %vm3363, %v3663
        %p3666 = scmp.eq.s32.totalorder %s23, 1
        // Predicated region
        $region69: #{decoder.1} parent=63 // pred_check
          %p3667 = pneg %p3666
        $region70: #{decoder.1} parent=63 // pred_check_branch
          %3669 = sbr.rel (%p3667) target = $region72
        $region71: #{decoder.1} parent=63 // pred_region
          %v3670 = vld [vmem:[#allocation2] sm:$0xff]
          %v3671 = vld [vmem:[#allocation2 + $0x8] sm:$0xff]
          %3672 = vst.msk [vmem:[#allocation3] sm:$0xff] %vm3363, %v3670
          %3673 = vst.msk [vmem:[#allocation3 + $0x8] sm:$0xff] %vm3363, %v3671
        $region72: #{decoder.1} parent=63 // pred_fallthru
          _
        // Predicated region
        $region73: #{decoder.1} parent=63 // pred_check
          %p3674 = pneg %p307
        $region74: #{decoder.1} parent=63 // pred_check_branch
          %3676 = sbr.rel (%p3674) target = $region76
        $region75: #{decoder.1} parent=63 // pred_region
          %s3678 = ssub.s32 256, 256
          %3679 = vsyncadd [#allocation4], %s3678
          %s3680 = sshll.u32 [#allocation3], 4
          %s3681 = int_to_ptr.vmem [resolvable:$true] %s3680
          %3686 = dma.vmem_to_hbm [thread:$0]  %s3681, 256, %s11, [#allocation4], 128, 128, 8
        $region76: #{decoder.1} parent=63 // pred_fallthru
          _
        // Predicated region
        $region77: #{decoder.1} parent=63 // pred_check
          %p3687 = pneg %p307
        $region78: #{decoder.1} parent=63 // pred_check_branch
          %3689 = sbr.rel (%p3687) target = $region80
        $region79: #{decoder.1} parent=63 // pred_region
          %3690 = dma.done [#allocation4], 256
        $region80: #{decoder.1} parent=63 // pred_fallthru
          _
      $region64: #{decoder.1} parent=5 // pred_fallthru
        _
      %p3691 = scmp.le.s32.totalorder 2, %s18
      // Predicated region
      $region81: #{decoder.1} parent=5 // pred_check
        %p3692 = pneg %p3691
      $region82: #{decoder.1} parent=5 // pred_check_branch
        %3694 = sbr.rel (%p3692) target = $region84
      $region83: #{decoder.1} parent=5 // pred_region
        %s3695 = ssub.s32 %s18, 2
      $region84: #{decoder.1} parent=5 // pred_fallthru
        _
    $region6: #{decoder.1} parent=1 // loop_footer
      %s22 = sadd.s32 1, %s18
    $region7: #{decoder.1} parent=1 // loop_footer_branch
      %17 = sbr.rel target = $region3
    $region8: #{decoder.1} parent=1 // loop_exit
      _
    %3696 = vsyncpa [#allocation4], 1
    %s3697 = scalar_lea.sflag [#allocation4], 1
    %3698 = vsyncpa %s3697, 1

</llo_original>
